<compile_context>
chip_gen: v5e
topology: v5e:2x2
jax: 0.10.0
libtpu: 0.0.40
codegen_flags: <defaults>
</compile_context>

<pallas_src>
import math
import functools

import jax
import jax.numpy as jnp
from jax.experimental import pallas as pl
from jax.experimental.pallas import tpu as pltpu


# --------------------------------------------------------------------------------------
# Kernel: one encoder layer per grid step; grid = (batch_tiles, layers).
# The (Bt, S, D) activation is carried across the layer axis in the resident output block.
# --------------------------------------------------------------------------------------
def _encoder_kernel(
    x_ref,        # (Bt, S, D)             f32   input activations (read only at layer 0)
    wqkv_ref,     # (1, D, 2*H*dk + H*dv)  bf16  fused Q/K/V projection weights
    wo_ref,       # (1, H*dv, D)           bf16
    ln1g_ref,     # (1, 1, D)              f32
    ln1b_ref,     # (1, 1, D)              f32
    w1_ref,       # (1, D, d_ff)           bf16
    b1_ref,       # (1, 1, d_ff)           f32
    w2_ref,       # (1, d_ff, D)           bf16
    b2_ref,       # (1, 1, D)              f32
    ln2g_ref,     # (1, 1, D)              f32
    ln2b_ref,     # (1, 1, D)              f32
    o_ref,        # (Bt, S, D)             f32   output; VMEM-resident across layer axis
    *,
    n_heads,
    d_k,
    d_v,
    eps=1e-5,
):
    layer = pl.program_id(1)
    H, dk, dv = n_heads, d_k, d_v

    # Layer 0: seed the resident output block with the inputs.  o_ref doubles as the
    # layer-to-layer activation carry (its block index is constant along the layer axis),
    # so there is no extra scratch and only one (Bt,S,D) store per layer.
    @pl.when(layer == 0)
    def _():
        o_ref[...] = x_ref[...]

    x3 = o_ref[...]                                   # (Bt, S, D) f32
    Bt, S, D = x3.shape
    M = Bt * S
    x = x3.reshape(M, D)                              # fold batch rows into matmul M
    xb = x.astype(jnp.bfloat16)

    def layer_norm(y, g, b):                          # f32 VPU math (v5e-safe)
        mean = jnp.mean(y, axis=-1, keepdims=True)
        var = jnp.mean((y - mean) ** 2, axis=-1, keepdims=True)
        return (y - mean) * jax.lax.rsqrt(var + eps) * g + b

    # ---- Multi-head self attention (no mask; self_attn_mask=None in the reference) ----
    # One wide MXU matmul for Q/K/V instead of three narrow ones.
    qkv = jnp.dot(xb, wqkv_ref[0], preferred_element_type=jnp.float32)   # (M, 2Hdk+Hdv)
    q = qkv[:, : H * dk] * (1.0 / math.sqrt(dk))      # scale folded into the small q
    k = qkv[:, H * dk: 2 * H * dk]
    v = qkv[:, 2 * H * dk:]

    # Heads (and batch) on the leading axis; batched matmuls, no per-head Python loop.
    qh = q.reshape(Bt, S, H, dk).transpose(0, 2, 1, 3).reshape(Bt * H, S, dk)
    kh = k.reshape(Bt, S, H, dk).transpose(0, 2, 1, 3).reshape(Bt * H, S, dk)
    vh = v.reshape(Bt, S, H, dv).transpose(0, 2, 1, 3).reshape(Bt * H, S, dv)
    qh = qh.astype(jnp.bfloat16)
    kh = kh.astype(jnp.bfloat16)
    vh = vh.astype(jnp.bfloat16)

    scores = jnp.einsum("bqd,bkd->bqk", qh, kh,
                        preferred_element_type=jnp.float32)              # (Bt*H, S, S)
    scores = scores - jnp.max(scores, axis=-1, keepdims=True)
    e = jnp.exp(scores)
    denom = jnp.sum(e, axis=-1, keepdims=True)
    attn = (e * pl.reciprocal(denom, approx=True)).astype(jnp.bfloat16)  # (Bt*H, S, S)

    ctx = jnp.einsum("bqk,bkd->bqd", attn, vh,
                     preferred_element_type=jnp.float32)                 # (Bt*H, S, dv)

    # Concat heads -> single full-K (K = H*dv) output projection on the MXU.
    ctx2d = (ctx.reshape(Bt, H, S, dv).transpose(0, 2, 1, 3)
                .reshape(M, H * dv).astype(jnp.bfloat16))
    attn_out = jnp.dot(ctx2d, wo_ref[0], preferred_element_type=jnp.float32)  # (M, D)

    # TODO(synk): dropout is identity (eval / inference semantics).
    y = layer_norm(x + attn_out, ln1g_ref[0], ln1b_ref[0])               # (M, D)

    # ---- Position-wise feed forward --------------------------------------------------
    h1 = jnp.dot(y.astype(jnp.bfloat16), w1_ref[0],
                 preferred_element_type=jnp.float32) + b1_ref[0]         # (M, d_ff)
    h1 = jnp.maximum(h1, 0.0)                                            # ReLU
    h2 = jnp.dot(h1.astype(jnp.bfloat16), w2_ref[0],
                 preferred_element_type=jnp.float32) + b2_ref[0]         # (M, D)

    z = layer_norm(y + h2, ln2g_ref[0], ln2b_ref[0])

    # Carry to the next layer; written back to HBM only once per batch tile.
    o_ref[...] = z.reshape(Bt, S, D)


# --------------------------------------------------------------------------------------
# One-time parameter prep: fuse Q/K/V and pre-cast MXU weights to bf16 so the per-call
# forward does no weight casting (no extra HBM traffic per call).
# --------------------------------------------------------------------------------------
def pack_params(params):
    wqkv = jnp.concatenate([params["wq"], params["wk"], params["wv"]], axis=-1)
    return dict(
        wqkv=wqkv.astype(jnp.bfloat16),
        wo=params["wo"].astype(jnp.bfloat16),
        ln1_g=params["ln1_g"], ln1_b=params["ln1_b"],
        w1=params["w1"].astype(jnp.bfloat16), b1=params["b1"],
        w2=params["w2"].astype(jnp.bfloat16), b2=params["b2"],
        ln2_g=params["ln2_g"], ln2_b=params["ln2_b"],
    )


# --------------------------------------------------------------------------------------
# Wrapper: one pallas_call for the whole encoder (all layers fused).
# --------------------------------------------------------------------------------------
def encoder_forward(enc_inputs, packed, *, n_heads, d_k, d_v,
                    batch_tile=None, return_attn=False):
    """Mirrors Encoder.forward (return_attn=False path): returns (enc_outputs, [])."""
    B, S, D = enc_inputs.shape
    L = packed["wqkv"].shape[0]

    # Default: whole batch per grid step -> weights DMA'd once per layer per forward.
    # On v7x, pick batch_tile = B // 2 to split the batch axis across the two TensorCores.
    Bt = B if batch_tile is None else batch_tile
    assert B % Bt == 0, "batch must be divisible by batch_tile"
    nb = B // Bt

    names = ("wqkv", "wo", "ln1_g", "ln1_b", "w1", "b1", "w2", "b2", "ln2_g", "ln2_b")
    weights = [packed[n] for n in names]

    def w_spec(arr):
        # One layer slab per grid step; double-buffered -> layer l+1 prefetch overlaps l.
        # TODO(synk): at production d_model/d_ff on v7x (64 MiB VMEM) use
        # pipeline_mode=pl.Buffered(1) on w1/w2 or add a d_ff tiling grid axis.
        return pl.BlockSpec((1,) + arr.shape[1:], lambda b, l: (l, 0, 0))

    kernel = functools.partial(_encoder_kernel, n_heads=n_heads, d_k=d_k, d_v=d_v)

    # TODO(synk): for long sequences, add a query-tile grid axis with flash-style
    # streaming softmax; at these S the full (Bt*H, S, S) scores fit comfortably.
    enc_outputs = pl.pallas_call(
        kernel,
        out_shape=jax.ShapeDtypeStruct((B, S, D), jnp.float32),
        grid=(nb, L),
        in_specs=[pl.BlockSpec((Bt, S, D), lambda b, l: (b, 0, 0))]
                 + [w_spec(w) for w in weights],
        out_specs=pl.BlockSpec((Bt, S, D), lambda b, l: (b, 0, 0)),
        compiler_params=pltpu.CompilerParams(
            dimension_semantics=("parallel", "arbitrary"),
            vmem_limit_bytes=32 * 1024 * 1024,
        ),
    )(enc_inputs, *weights)

    # TODO(synk): per-layer attention maps are not materialized (return_attn=False path).
    return enc_outputs, []


# --------------------------------------------------------------------------------------
# Deterministic synthetic parameters (stacked over layers; shapes from Encoder.__init__).
# --------------------------------------------------------------------------------------
def init_params(key, n_layers, d_k, d_v, d_model, d_ff, n_heads):
    ks = jax.random.split(key, 6)
    s = 0.02
    L = n_layers
    return dict(
        wq=jax.random.normal(ks[0], (L, d_model, n_heads * d_k), jnp.float32) * s,
        wk=jax.random.normal(ks[1], (L, d_model, n_heads * d_k), jnp.float32) * s,
        wv=jax.random.normal(ks[2], (L, d_model, n_heads * d_v), jnp.float32) * s,
        wo=jax.random.normal(ks[3], (L, n_heads * d_v, d_model), jnp.float32) * s,
        ln1_g=jnp.ones((L, 1, d_model), jnp.float32),
        ln1_b=jnp.zeros((L, 1, d_model), jnp.float32),
        w1=jax.random.normal(ks[4], (L, d_model, d_ff), jnp.float32) * s,
        b1=jnp.zeros((L, 1, d_ff), jnp.float32),
        w2=jax.random.normal(ks[5], (L, d_ff, d_model), jnp.float32) * s,
        b2=jnp.zeros((L, 1, d_model), jnp.float32),
        ln2_g=jnp.ones((L, 1, d_model), jnp.float32),
        ln2_b=jnp.zeros((L, 1, d_model), jnp.float32),
    )


if __name__ == "__main__":
    # Small but lane-dense shapes (d_model, d_ff multiples of 128; H*d_k = d_model).
    n_layers, d_k, d_v, d_model, d_ff, n_heads = 2, 32, 32, 128, 256, 4
    B, S = 2, 16

    key = jax.random.PRNGKey(0)
    x = jax.random.normal(jax.random.fold_in(key, 123), (B, S, d_model), jnp.float32)
    layer_params = init_params(key, n_layers, d_k, d_v, d_model, d_ff, n_heads)

    packed = jax.tree_util.tree_map(jax.block_until_ready, pack_params(layer_params))

    enc_outputs, enc_self_attns = encoder_forward(
        x, packed, n_heads=n_heads, d_k=d_k, d_v=d_v, return_attn=False
    )
    enc_outputs = jax.block_until_ready(enc_outputs)

    assert enc_outputs.shape == (B, S, d_model)
    assert enc_self_attns == []
    assert bool(jnp.all(jnp.isfinite(enc_outputs)))
    print("KERNEL_OK")
</pallas_src>

<mosaic_0001>
module attributes {stable_mosaic.version = 11 : i64} {
  func.func @_encoder_kernel(%arg0: i32, %arg1: i32, %arg2: memref<2x16x128xf32, #tpu.memory_space<vmem>>, %arg3: memref<1x128x384xbf16, #tpu.memory_space<vmem>>, %arg4: memref<1x128x128xbf16, #tpu.memory_space<vmem>>, %arg5: memref<1x1x128xf32, #tpu.memory_space<vmem>>, %arg6: memref<1x1x128xf32, #tpu.memory_space<vmem>>, %arg7: memref<1x128x256xbf16, #tpu.memory_space<vmem>>, %arg8: memref<1x1x256xf32, #tpu.memory_space<vmem>>, %arg9: memref<1x256x128xbf16, #tpu.memory_space<vmem>>, %arg10: memref<1x1x128xf32, #tpu.memory_space<vmem>>, %arg11: memref<1x1x128xf32, #tpu.memory_space<vmem>>, %arg12: memref<1x1x128xf32, #tpu.memory_space<vmem>>, %arg13: memref<2x16x128xf32, #tpu.memory_space<vmem>>) attributes {dimension_semantics = [#tpu.dimension_semantics<parallel>, #tpu.dimension_semantics<arbitrary>], iteration_bounds = array<i64: 1, 2>, scalar_prefetch = 0 : i64, scratch_operands = 0 : i64, tpu.core_type = #tpu.core_type<tc>, window_params = [{transform_indices = @transform_0, window_bounds = array<i64: 2, 16, 128>}, {transform_indices = @transform_1, window_bounds = array<i64: 1, 128, 384>}, {transform_indices = @transform_2, window_bounds = array<i64: 1, 128, 128>}, {transform_indices = @transform_3, window_bounds = array<i64: 1, 1, 128>}, {transform_indices = @transform_4, window_bounds = array<i64: 1, 1, 128>}, {transform_indices = @transform_5, window_bounds = array<i64: 1, 128, 256>}, {transform_indices = @transform_6, window_bounds = array<i64: 1, 1, 256>}, {transform_indices = @transform_7, window_bounds = array<i64: 1, 256, 128>}, {transform_indices = @transform_8, window_bounds = array<i64: 1, 1, 128>}, {transform_indices = @transform_9, window_bounds = array<i64: 1, 1, 128>}, {transform_indices = @transform_10, window_bounds = array<i64: 1, 1, 128>}, {transform_indices = @transform_11, window_bounds = array<i64: 2, 16, 128>}]} {
    %c0_i32 = arith.constant 0 : i32
    %0 = arith.cmpi eq, %arg1, %c0_i32 : i32
    %1 = arith.extui %0 : i1 to i32
    %c0_i32_0 = arith.constant 0 : i32
    %2 = arith.cmpi ne, %1, %c0_i32_0 : i32
    scf.if %2 {
      %c0_55 = arith.constant 0 : index
      %c0_56 = arith.constant 0 : index
      %c0_57 = arith.constant 0 : index
      %120 = vector.load %arg2[%c0_55, %c0_56, %c0_57] : memref<2x16x128xf32, #tpu.memory_space<vmem>>, vector<2x16x128xf32>
      %c0_58 = arith.constant 0 : index
      %c0_59 = arith.constant 0 : index
      %c0_60 = arith.constant 0 : index
      %121 = vector.load %arg13[%c0_58, %c0_59, %c0_60] : memref<2x16x128xf32, #tpu.memory_space<vmem>>, vector<2x16x128xf32>
      tpu.vector_store %arg13[%c0_58, %c0_59, %c0_60], %120 {strides = array<i32>} : memref<2x16x128xf32, #tpu.memory_space<vmem>>, vector<2x16x128xf32>,
    } else {
    }
    %c0 = arith.constant 0 : index
    %c0_1 = arith.constant 0 : index
    %c0_2 = arith.constant 0 : index
    %3 = vector.load %arg13[%c0, %c0_1, %c0_2] : memref<2x16x128xf32, #tpu.memory_space<vmem>>, vector<2x16x128xf32>
    %4 = vector.shape_cast %3 : vector<2x16x128xf32> to vector<32x128xf32>
    %5 = arith.truncf %4 : vector<32x128xf32> to vector<32x128xbf16>
    %c0_3 = arith.constant 0 : index
    %c0_4 = arith.constant 0 : index
    %c0_5 = arith.constant 0 : index
    %6 = vector.load %arg3[%c0_3, %c0_4, %c0_5] : memref<1x128x384xbf16, #tpu.memory_space<vmem>>, vector<1x128x384xbf16>
    %7 = vector.shape_cast %6 : vector<1x128x384xbf16> to vector<128x384xbf16>
    %cst = arith.constant dense<0.000000e+00> : vector<32x384xf32>
    %8 = tpu.matmul %5, %7, %cst {dimension_numbers = #tpu.dot_dimension_numbers<[1], [0], [0], [1], [0, 0, 1, 1], [], []>} : vector<32x128xbf16>, vector<128x384xbf16>, vector<32x384xf32> -> vector<32x384xf32>
    %9 = vector.extract_strided_slice %8 {offsets = [0, 0], sizes = [32, 128], strides = [1, 1]} : vector<32x384xf32> to vector<32x128xf32>
    %cst_6 = arith.constant 0.176776692 : f32
    %10 = vector.broadcast %cst_6 : f32 to vector<32x128xf32>
    %11 = arith.mulf %9, %10 : vector<32x128xf32>
    %12 = vector.extract_strided_slice %8 {offsets = [0, 128], sizes = [32, 128], strides = [1, 1]} : vector<32x384xf32> to vector<32x128xf32>
    %13 = vector.extract_strided_slice %8 {offsets = [0, 256], sizes = [32, 128], strides = [1, 1]} : vector<32x384xf32> to vector<32x128xf32>
    %14 = vector.shape_cast %11 : vector<32x128xf32> to vector<2x16x4x32xf32>
    %15 = tpu.transpose %14, [0, 2, 1, 3] : vector<2x16x4x32xf32> -> vector<2x4x16x32xf32>
    %16 = vector.shape_cast %15 : vector<2x4x16x32xf32> to vector<8x16x32xf32>
    %17 = vector.shape_cast %12 : vector<32x128xf32> to vector<2x16x4x32xf32>
    %18 = tpu.transpose %17, [0, 2, 1, 3] : vector<2x16x4x32xf32> -> vector<2x4x16x32xf32>
    %19 = vector.shape_cast %18 : vector<2x4x16x32xf32> to vector<8x16x32xf32>
    %20 = vector.shape_cast %13 : vector<32x128xf32> to vector<2x16x4x32xf32>
    %21 = tpu.transpose %20, [0, 2, 1, 3] : vector<2x16x4x32xf32> -> vector<2x4x16x32xf32>
    %22 = vector.shape_cast %21 : vector<2x4x16x32xf32> to vector<8x16x32xf32>
    %23 = arith.truncf %16 : vector<8x16x32xf32> to vector<8x16x32xbf16>
    %24 = arith.truncf %19 : vector<8x16x32xf32> to vector<8x16x32xbf16>
    %25 = arith.truncf %22 : vector<8x16x32xf32> to vector<8x16x32xbf16>
    "tpu.trace_start"() <{level = 10 : i32, message = "bqd,bkd->bqk"}> : () -> ()
    %cst_7 = arith.constant dense<0.000000e+00> : vector<8x16x16xf32>
    %26 = tpu.matmul %23, %24, %cst_7 {dimension_numbers = #tpu.dot_dimension_numbers<[2], [2], [1], [1], [0, 0, 0, 1, 1, 1], [0], [0]>} : vector<8x16x32xbf16>, vector<8x16x32xbf16>, vector<8x16x16xf32> -> vector<8x16x16xf32>
    "tpu.trace_stop"() : () -> ()
    %cst_8 = arith.constant dense<0xFF800000> : vector<8x16xf32>
    %27 = vector.multi_reduction <maximumf>, %26, %cst_8 [2] : vector<8x16x16xf32> to vector<8x16xf32>
    %28 = vector.shape_cast %27 : vector<8x16xf32> to vector<8x16x1xf32>
    %29 = vector.broadcast %28 : vector<8x16x1xf32> to vector<8x16x16xf32>
    %30 = arith.subf %26, %29 : vector<8x16x16xf32>
    %31 = math.exp %30 : vector<8x16x16xf32>
    %cst_9 = arith.constant dense<0.000000e+00> : vector<8x16xf32>
    %32 = vector.multi_reduction <add>, %31, %cst_9 [2] : vector<8x16x16xf32> to vector<8x16xf32>
    %33 = vector.shape_cast %32 : vector<8x16xf32> to vector<8x16x1xf32>
    %34 = tpu.reciprocal %33 {approx = true} : vector<8x16x1xf32> -> vector<8x16x1xf32>
    %35 = vector.broadcast %34 : vector<8x16x1xf32> to vector<8x16x16xf32>
    %36 = arith.mulf %31, %35 : vector<8x16x16xf32>
    %37 = arith.truncf %36 : vector<8x16x16xf32> to vector<8x16x16xbf16>
    "tpu.trace_start"() <{level = 10 : i32, message = "bqk,bkd->bqd"}> : () -> ()
    %cst_10 = arith.constant dense<0.000000e+00> : vector<8x16x32xf32>
    %38 = tpu.matmul %37, %25, %cst_10 {dimension_numbers = #tpu.dot_dimension_numbers<[2], [1], [1], [2], [0, 0, 0, 1, 1, 2], [0], [0]>} : vector<8x16x16xbf16>, vector<8x16x32xbf16>, vector<8x16x32xf32> -> vector<8x16x32xf32>
    "tpu.trace_stop"() : () -> ()
    %39 = vector.shape_cast %38 : vector<8x16x32xf32> to vector<2x4x16x32xf32>
    %40 = tpu.transpose %39, [0, 2, 1, 3] : vector<2x4x16x32xf32> -> vector<2x16x4x32xf32>
    %41 = vector.shape_cast %40 : vector<2x16x4x32xf32> to vector<32x128xf32>
    %42 = arith.truncf %41 : vector<32x128xf32> to vector<32x128xbf16>
    %c0_11 = arith.constant 0 : index
    %c0_12 = arith.constant 0 : index
    %c0_13 = arith.constant 0 : index
    %43 = vector.load %arg4[%c0_11, %c0_12, %c0_13] : memref<1x128x128xbf16, #tpu.memory_space<vmem>>, vector<1x128x128xbf16>
    %44 = vector.shape_cast %43 : vector<1x128x128xbf16> to vector<128x128xbf16>
    %cst_14 = arith.constant dense<0.000000e+00> : vector<32x128xf32>
    %45 = tpu.matmul %42, %44, %cst_14 {dimension_numbers = #tpu.dot_dimension_numbers<[1], [0], [0], [1], [0, 0, 1, 1], [], []>} : vector<32x128xbf16>, vector<128x128xbf16>, vector<32x128xf32> -> vector<32x128xf32>
    %46 = arith.addf %4, %45 : vector<32x128xf32>
    %c0_15 = arith.constant 0 : index
    %c0_16 = arith.constant 0 : index
    %c0_17 = arith.constant 0 : index
    %47 = vector.load %arg5[%c0_15, %c0_16, %c0_17] : memref<1x1x128xf32, #tpu.memory_space<vmem>>, vector<1x1x128xf32>
    %48 = vector.shape_cast %47 : vector<1x1x128xf32> to vector<1x128xf32>
    %c0_18 = arith.constant 0 : index
    %c0_19 = arith.constant 0 : index
    %c0_20 = arith.constant 0 : index
    %49 = vector.load %arg6[%c0_18, %c0_19, %c0_20] : memref<1x1x128xf32, #tpu.memory_space<vmem>>, vector<1x1x128xf32>
    %50 = vector.shape_cast %49 : vector<1x1x128xf32> to vector<1x128xf32>
    %cst_21 = arith.constant dense<0.000000e+00> : vector<32xf32>
    %51 = vector.multi_reduction <add>, %46, %cst_21 [1] : vector<32x128xf32> to vector<32xf32>
    %52 = vector.shape_cast %51 : vector<32xf32> to vector<32x1xf32>
    %cst_22 = arith.constant 1.280000e+02 : f32
    %53 = vector.broadcast %cst_22 : f32 to vector<32x1xf32>
    %54 = arith.divf %52, %53 : vector<32x1xf32>
    %55 = vector.broadcast %54 : vector<32x1xf32> to vector<32x128xf32>
    %56 = arith.subf %46, %55 : vector<32x128xf32>
    %57 = arith.mulf %56, %56 : vector<32x128xf32>
    %cst_23 = arith.constant dense<0.000000e+00> : vector<32xf32>
    %58 = vector.multi_reduction <add>, %57, %cst_23 [1] : vector<32x128xf32> to vector<32xf32>
    %59 = vector.shape_cast %58 : vector<32xf32> to vector<32x1xf32>
    %cst_24 = arith.constant 1.280000e+02 : f32
    %60 = vector.broadcast %cst_24 : f32 to vector<32x1xf32>
    %61 = arith.divf %59, %60 : vector<32x1xf32>
    %62 = vector.broadcast %54 : vector<32x1xf32> to vector<32x128xf32>
    %63 = arith.subf %46, %62 : vector<32x128xf32>
    %cst_25 = arith.constant 9.99999974E-6 : f32
    %64 = vector.broadcast %cst_25 : f32 to vector<32x1xf32>
    %65 = arith.addf %61, %64 : vector<32x1xf32>
    %66 = math.rsqrt %65 : vector<32x1xf32>
    %67 = vector.broadcast %66 : vector<32x1xf32> to vector<32x128xf32>
    %68 = arith.mulf %63, %67 : vector<32x128xf32>
    %69 = vector.broadcast %48 : vector<1x128xf32> to vector<32x128xf32>
    %70 = arith.mulf %68, %69 : vector<32x128xf32>
    %71 = vector.broadcast %50 : vector<1x128xf32> to vector<32x128xf32>
    %72 = arith.addf %70, %71 : vector<32x128xf32>
    %73 = arith.truncf %72 : vector<32x128xf32> to vector<32x128xbf16>
    %c0_26 = arith.constant 0 : index
    %c0_27 = arith.constant 0 : index
    %c0_28 = arith.constant 0 : index
    %74 = vector.load %arg7[%c0_26, %c0_27, %c0_28] : memref<1x128x256xbf16, #tpu.memory_space<vmem>>, vector<1x128x256xbf16>
    %75 = vector.shape_cast %74 : vector<1x128x256xbf16> to vector<128x256xbf16>
    %cst_29 = arith.constant dense<0.000000e+00> : vector<32x256xf32>
    %76 = tpu.matmul %73, %75, %cst_29 {dimension_numbers = #tpu.dot_dimension_numbers<[1], [0], [0], [1], [0, 0, 1, 1], [], []>} : vector<32x128xbf16>, vector<128x256xbf16>, vector<32x256xf32> -> vector<32x256xf32>
    %c0_30 = arith.constant 0 : index
    %c0_31 = arith.constant 0 : index
    %c0_32 = arith.constant 0 : index
    %77 = vector.load %arg8[%c0_30, %c0_31, %c0_32] : memref<1x1x256xf32, #tpu.memory_space<vmem>>, vector<1x1x256xf32>
    %78 = vector.shape_cast %77 : vector<1x1x256xf32> to vector<1x256xf32>
    %79 = vector.broadcast %78 : vector<1x256xf32> to vector<32x256xf32>
    %80 = arith.addf %76, %79 : vector<32x256xf32>
    %cst_33 = arith.constant 0.000000e+00 : f32
    %81 = vector.broadcast %cst_33 : f32 to vector<32x256xf32>
    %82 = arith.maximumf %80, %81 : vector<32x256xf32>
    %83 = arith.truncf %82 : vector<32x256xf32> to vector<32x256xbf16>
    %c0_34 = arith.constant 0 : index
    %c0_35 = arith.constant 0 : index
    %c0_36 = arith.constant 0 : index
    %84 = vector.load %arg9[%c0_34, %c0_35, %c0_36] : memref<1x256x128xbf16, #tpu.memory_space<vmem>>, vector<1x256x128xbf16>
    %85 = vector.shape_cast %84 : vector<1x256x128xbf16> to vector<256x128xbf16>
    %cst_37 = arith.constant dense<0.000000e+00> : vector<32x128xf32>
    %86 = tpu.matmul %83, %85, %cst_37 {dimension_numbers = #tpu.dot_dimension_numbers<[1], [0], [0], [1], [0, 0, 1, 1], [], []>} : vector<32x256xbf16>, vector<256x128xbf16>, vector<32x128xf32> -> vector<32x128xf32>
    %c0_38 = arith.constant 0 : index
    %c0_39 = arith.constant 0 : index
    %c0_40 = arith.constant 0 : index
    %87 = vector.load %arg10[%c0_38, %c0_39, %c0_40] : memref<1x1x128xf32, #tpu.memory_space<vmem>>, vector<1x1x128xf32>
    %88 = vector.shape_cast %87 : vector<1x1x128xf32> to vector<1x128xf32>
    %89 = vector.broadcast %88 : vector<1x128xf32> to vector<32x128xf32>
    %90 = arith.addf %86, %89 : vector<32x128xf32>
    %91 = arith.addf %72, %90 : vector<32x128xf32>
    %c0_41 = arith.constant 0 : index
    %c0_42 = arith.constant 0 : index
    %c0_43 = arith.constant 0 : index
    %92 = vector.load %arg11[%c0_41, %c0_42, %c0_43] : memref<1x1x128xf32, #tpu.memory_space<vmem>>, vector<1x1x128xf32>
    %93 = vector.shape_cast %92 : vector<1x1x128xf32> to vector<1x128xf32>
    %c0_44 = arith.constant 0 : index
    %c0_45 = arith.constant 0 : index
    %c0_46 = arith.constant 0 : index
    %94 = vector.load %arg12[%c0_44, %c0_45, %c0_46] : memref<1x1x128xf32, #tpu.memory_space<vmem>>, vector<1x1x128xf32>
    %95 = vector.shape_cast %94 : vector<1x1x128xf32> to vector<1x128xf32>
    %cst_47 = arith.constant dense<0.000000e+00> : vector<32xf32>
    %96 = vector.multi_reduction <add>, %91, %cst_47 [1] : vector<32x128xf32> to vector<32xf32>
    %97 = vector.shape_cast %96 : vector<32xf32> to vector<32x1xf32>
    %cst_48 = arith.constant 1.280000e+02 : f32
    %98 = vector.broadcast %cst_48 : f32 to vector<32x1xf32>
    %99 = arith.divf %97, %98 : vector<32x1xf32>
    %100 = vector.broadcast %99 : vector<32x1xf32> to vector<32x128xf32>
    %101 = arith.subf %91, %100 : vector<32x128xf32>
    %102 = arith.mulf %101, %101 : vector<32x128xf32>
    %cst_49 = arith.constant dense<0.000000e+00> : vector<32xf32>
    %103 = vector.multi_reduction <add>, %102, %cst_49 [1] : vector<32x128xf32> to vector<32xf32>
    %104 = vector.shape_cast %103 : vector<32xf32> to vector<32x1xf32>
    %cst_50 = arith.constant 1.280000e+02 : f32
    %105 = vector.broadcast %cst_50 : f32 to vector<32x1xf32>
    %106 = arith.divf %104, %105 : vector<32x1xf32>
    %107 = vector.broadcast %99 : vector<32x1xf32> to vector<32x128xf32>
    %108 = arith.subf %91, %107 : vector<32x128xf32>
    %cst_51 = arith.constant 9.99999974E-6 : f32
    %109 = vector.broadcast %cst_51 : f32 to vector<32x1xf32>
    %110 = arith.addf %106, %109 : vector<32x1xf32>
    %111 = math.rsqrt %110 : vector<32x1xf32>
    %112 = vector.broadcast %111 : vector<32x1xf32> to vector<32x128xf32>
    %113 = arith.mulf %108, %112 : vector<32x128xf32>
    %114 = vector.broadcast %93 : vector<1x128xf32> to vector<32x128xf32>
    %115 = arith.mulf %113, %114 : vector<32x128xf32>
    %116 = vector.broadcast %95 : vector<1x128xf32> to vector<32x128xf32>
    %117 = arith.addf %115, %116 : vector<32x128xf32>
    %118 = vector.shape_cast %117 : vector<32x128xf32> to vector<2x16x128xf32>
    %c0_52 = arith.constant 0 : index
    %c0_53 = arith.constant 0 : index
    %c0_54 = arith.constant 0 : index
    %119 = vector.load %arg13[%c0_52, %c0_53, %c0_54] : memref<2x16x128xf32, #tpu.memory_space<vmem>>, vector<2x16x128xf32>
    tpu.vector_store %arg13[%c0_52, %c0_53, %c0_54], %118 {strides = array<i32>} : memref<2x16x128xf32, #tpu.memory_space<vmem>>, vector<2x16x128xf32>,
    return
  }
  func.func @transform_0(%arg0: i32, %arg1: i32) -> (i32, i32, i32) {
    %c0_i32 = arith.constant 0 : i32
    %c0_i32_0 = arith.constant 0 : i32
    %c0_i32_1 = arith.constant 0 : i32
    return %arg0, %c0_i32, %c0_i32_0 : i32, i32, i32
  }
  func.func @transform_1(%arg0: i32, %arg1: i32) -> (i32, i32, i32) {
    %c0_i32 = arith.constant 0 : i32
    %c0_i32_0 = arith.constant 0 : i32
    %c0_i32_1 = arith.constant 0 : i32
    return %arg1, %c0_i32, %c0_i32_0 : i32, i32, i32
  }
  func.func @transform_2(%arg0: i32, %arg1: i32) -> (i32, i32, i32) {
    %c0_i32 = arith.constant 0 : i32
    %c0_i32_0 = arith.constant 0 : i32
    %c0_i32_1 = arith.constant 0 : i32
    return %arg1, %c0_i32, %c0_i32_0 : i32, i32, i32
  }
  func.func @transform_3(%arg0: i32, %arg1: i32) -> (i32, i32, i32) {
    %c0_i32 = arith.constant 0 : i32
    %c0_i32_0 = arith.constant 0 : i32
    %c0_i32_1 = arith.constant 0 : i32
    return %arg1, %c0_i32, %c0_i32_0 : i32, i32, i32
  }
  func.func @transform_4(%arg0: i32, %arg1: i32) -> (i32, i32, i32) {
    %c0_i32 = arith.constant 0 : i32
    %c0_i32_0 = arith.constant 0 : i32
    %c0_i32_1 = arith.constant 0 : i32
    return %arg1, %c0_i32, %c0_i32_0 : i32, i32, i32
  }
  func.func @transform_5(%arg0: i32, %arg1: i32) -> (i32, i32, i32) {
    %c0_i32 = arith.constant 0 : i32
    %c0_i32_0 = arith.constant 0 : i32
    %c0_i32_1 = arith.constant 0 : i32
    return %arg1, %c0_i32, %c0_i32_0 : i32, i32, i32
  }
  func.func @transform_6(%arg0: i32, %arg1: i32) -> (i32, i32, i32) {
    %c0_i32 = arith.constant 0 : i32
    %c0_i32_0 = arith.constant 0 : i32
    %c0_i32_1 = arith.constant 0 : i32
    return %arg1, %c0_i32, %c0_i32_0 : i32, i32, i32
  }
  func.func @transform_7(%arg0: i32, %arg1: i32) -> (i32, i32, i32) {
    %c0_i32 = arith.constant 0 : i32
    %c0_i32_0 = arith.constant 0 : i32
    %c0_i32_1 = arith.constant 0 : i32
    return %arg1, %c0_i32, %c0_i32_0 : i32, i32, i32
  }
  func.func @transform_8(%arg0: i32, %arg1: i32) -> (i32, i32, i32) {
    %c0_i32 = arith.constant 0 : i32
    %c0_i32_0 = arith.constant 0 : i32
    %c0_i32_1 = arith.constant 0 : i32
    return %arg1, %c0_i32, %c0_i32_0 : i32, i32, i32
  }
  func.func @transform_9(%arg0: i32, %arg1: i32) -> (i32, i32, i32) {
    %c0_i32 = arith.constant 0 : i32
    %c0_i32_0 = arith.constant 0 : i32
    %c0_i32_1 = arith.constant 0 : i32
    return %arg1, %c0_i32, %c0_i32_0 : i32, i32, i32
  }
  func.func @transform_10(%arg0: i32, %arg1: i32) -> (i32, i32, i32) {
    %c0_i32 = arith.constant 0 : i32
    %c0_i32_0 = arith.constant 0 : i32
    %c0_i32_1 = arith.constant 0 : i32
    return %arg1, %c0_i32, %c0_i32_0 : i32, i32, i32
  }
  func.func @transform_11(%arg0: i32, %arg1: i32) -> (i32, i32, i32) {
    %c0_i32 = arith.constant 0 : i32
    %c0_i32_0 = arith.constant 0 : i32
    %c0_i32_1 = arith.constant 0 : i32
    return %arg0, %c0_i32, %c0_i32_0 : i32, i32, i32
  }
}

</mosaic_0001>

<llo_original>
// kernel: tpu_custom_call.1
$region0: #{tpu_custom_call.1}
  #allocation0 [shape = 'u32[]', space=smem, size = 0x4, offset = 0x4, fixed_abs, tag = 'smem constant byte address 0x4 - core index']
  #allocation1 [shape = 'u32[72,128]{1,0:T(1,128)}', space=vmem, size = 0x9000, scoped, tag = 'internal scratch']
  %s0 = inlined_call_operand.hbm [shape: f32[2,16,128], index: 0, kind: input, shape index: {}]
  %s1 = inlined_call_operand.hbm [shape: bf16[2,128,384], index: 1, kind: input, shape index: {}]
  %s2 = inlined_call_operand.hbm [shape: bf16[2,128,128], index: 2, kind: input, shape index: {}]
  %s3 = inlined_call_operand.hbm [shape: f32[2,1,128], index: 3, kind: input, shape index: {}]
  %s4 = inlined_call_operand.hbm [shape: f32[2,1,128], index: 4, kind: input, shape index: {}]
  %s5 = inlined_call_operand.hbm [shape: bf16[2,128,256], index: 5, kind: input, shape index: {}]
  %s6 = inlined_call_operand.vmem [shape: f32[2,1,256], index: 6, kind: input, shape index: {}]
  %s7 = inlined_call_operand.hbm [shape: bf16[2,256,128], index: 7, kind: input, shape index: {}]
  %s8 = inlined_call_operand.vmem [shape: f32[2,1,128], index: 8, kind: input, shape index: {}]
  %s9 = inlined_call_operand.vmem [shape: f32[2,1,128], index: 9, kind: input, shape index: {}]
  %s10 = inlined_call_operand.hbm [shape: f32[2,1,128], index: 10, kind: input, shape index: {}]
  %s11 = inlined_call_operand.hbm [shape: f32[2,16,128], index: 11, kind: output, shape index: {}]
  %s12 = sld [smem:[#allocation0]]
  $region113: #{tpu_custom_call.1} parent=0
    _
  %s14 = ssub.s32 1, %s12
  %s15 = scalar_select 0, %s14, %s12
  $region1: #{tpu_custom_call.1} parent=0
    #allocation2 [shape = 'u8[16384]{0}', space=vmem, size = 0x4000, scoped, tag = 'input window, operand 0, single buffered']
    #allocation3 [shape = 's32[2]{0}', space=sflag, size = 0x8, scoped, tag = 'scoped memory for tpu_custom_call.1']
    #allocation4 [shape = 's32[2]{0}', space=sflag, size = 0x8, scoped, tag = 'scoped memory for tpu_custom_call.1']
    #allocation5 [shape = 'u8[196608]{0}', space=vmem, size = 0x30000, scoped, tag = 'input window, operand 1']
    #allocation6 [shape = 's32[2]{0}', space=sflag, size = 0x8, scoped, tag = 'scoped memory for tpu_custom_call.1']
    #allocation7 [shape = 'u8[65536]{0}', space=vmem, size = 0x10000, scoped, tag = 'input window, operand 2']
    #allocation8 [shape = 'u8[1024]{0}', space=vmem, size = 0x400, scoped, tag = 'input window, operand 3']
    #allocation9 [shape = 's32[2]{0}', space=sflag, size = 0x8, scoped, tag = 'scoped memory for tpu_custom_call.1']
    #allocation10 [shape = 'u8[1024]{0}', space=vmem, size = 0x400, scoped, tag = 'input window, operand 4']
    #allocation11 [shape = 'u8[131072]{0}', space=vmem, size = 0x20000, scoped, tag = 'input window, operand 5']
    #allocation12 [shape = 's32[2]{0}', space=sflag, size = 0x8, scoped, tag = 'scoped memory for tpu_custom_call.1']
    #allocation13 [shape = 'u8[131072]{0}', space=vmem, size = 0x20000, scoped, tag = 'input window, operand 7']
    #allocation14 [shape = 'u8[1024]{0}', space=vmem, size = 0x400, scoped, tag = 'input window, operand 10']
    #allocation15 [shape = 's32[2]{0}', space=sflag, size = 0x8, scoped, tag = 'scoped memory for tpu_custom_call.1']
    #allocation16 [shape = 'u8[16384]{0}', space=vmem, size = 0x4000, scoped, tag = 'output window, operand 0, single buffered']
    %16 = vsyncpa [#allocation3], 0
    %17 = vsyncpa [#allocation6], 0
    %s18 = scalar_lea.sflag [#allocation6], 1
    %19 = vsyncpa %s18, 0
    %20 = vsyncpa [#allocation9], 0
    %s21 = scalar_lea.sflag [#allocation9], 1
    %22 = vsyncpa %s21, 0
    %23 = vsyncpa [#allocation12], 0
    %s24 = scalar_lea.sflag [#allocation12], 1
    %25 = vsyncpa %s24, 0
    %26 = vsyncpa [#allocation15], 0
    %s27 = scalar_lea.sflag [#allocation15], 1
    %28 = vsyncpa %s27, 0
    %29 = vsyncpa [#allocation4], 0
    loop: start=0, step=1, limit=4
    $region2: #{tpu_custom_call.1} parent=1 // loop_pre_header
      _
    $region3: #{tpu_custom_call.1} parent=1 // loop_header
      %s31 = sphi 0, %s35
      %p32 = scmp.ge.s32.totalorder %s31, 4
      %s38 = sphi 0, %s50
      %s39 = sphi 0, %s46
      %s40 = sphi 0, %s38
      %s41 = sphi 0, %s39
      %s42 = sphi 0, %s40
      %s43 = sphi 0, %s41
      %s53 = sphi 0, %s55
      %s56 = sphi 0, %s53
      %s57 = sphi 0, %s56
      %s73 = sphi 0, %s57
      %s79 = sphi 0, %s81
      %s82 = sphi 0, %s79
      %s83 = sphi 0, %s82
      %s99 = sphi 0, %s83
      %s105 = sphi 0, %s107
      %s108 = sphi 0, %s105
      %s109 = sphi 0, %s108
      %s125 = sphi 0, %s109
      %s131 = sphi 0, %s133
      %s134 = sphi 0, %s131
      %s135 = sphi 0, %s134
      %s151 = sphi 0, %s135
      %s157 = sphi 0, %s159
      %s160 = sphi 0, %s157
      %s161 = sphi 0, %s160
      %s177 = sphi 0, %s161
      %s183 = sphi 0, %s185
      %s186 = sphi 0, %s183
      %s187 = sphi 0, %s186
      %s203 = sphi 0, %s187
      %s209 = sphi 0, %s211
      %s212 = sphi 0, %s209
      %s213 = sphi 0, %s212
      %s229 = sphi 0, %s213
      %s235 = sphi 0, %s237
      %s238 = sphi 0, %s235
      %s239 = sphi 0, %s238
      %s255 = sphi 0, %s239
      %s261 = sphi 0, %s263
      %s264 = sphi 0, %s261
      %s265 = sphi 0, %s264
      %s281 = sphi 0, %s265
      %s287 = sphi 0, %s289
      %s290 = sphi 0, %s287
      %s291 = sphi 0, %s290
      %s307 = sphi 0, %s291
      %s313 = sphi 0, %s315
      %s316 = sphi 0, %s313
      %s317 = sphi 0, %s316
      %s333 = sphi 0, %s317
      %s339 = sphi 0, %s341
      %s342 = sphi 0, %s339
      %s343 = sphi 0, %s342
      %s359 = sphi 0, %s343
    $region4: #{tpu_custom_call.1} parent=1 // loop_header_branch
      %34 = sbr.rel (%p32) target = $region8
    $region5: #{tpu_custom_call.1} parent=1 // loop_body
      %s36 = ssub.s32 %s31, 1
      %s37 = ssub.s32 %s31, 2
      %s44 = sadd.s32 1, %s39
      %p45 = scmp.ge.s32.totalorder %s44, 2
      %s46 = scalar_select %p45, 0, %s44
      %s47 = sadd.s32 1, %s38
      %s48 = scalar_select %p45, %s47, %s38
      %p49 = scmp.ge.s32.totalorder %s48, 1
      %s50 = scalar_select %p49, 0, %s48
      %s51 = ssub.s32 %s38, %s50
      %p52 = scmp.eq.s32.totalorder %s51, 0
      %s54 = sadd.s32 %s53, 1
      %s55 = scalar_select %p52, %s53, %s54
      %p58 = pneg %p52
      %p59 = scmp.eq.s32.totalorder %s31, 1
      %p60 = por %p58, %p59
      %p61 = scmp.ne.s32.totalorder %s53, %s56
      %p62 = scmp.eq.s32.totalorder %s31, 0
      %p63 = por %p61, %p62
      %p64 = scmp.ne.s32.totalorder %s53, %s56
      %p65 = scmp.eq.s32.totalorder %s36, 1
      %p66 = por %p64, %p65
      %p67 = scmp.ne.s32.totalorder %s56, %s57
      %p68 = scmp.eq.s32.totalorder %s36, 0
      %p69 = por %p67, %p68
      %p70 = scmp.ne.s32.totalorder %s56, %s57
      %p71 = scmp.eq.s32.totalorder %s37, 1
      %p72 = por %p70, %p71
      %p74 = scmp.ne.s32.totalorder %s57, %s73
      %p75 = scmp.eq.s32.totalorder %s37, 0
      %p76 = por %p74, %p75
      %s77 = ssub.s32 %s39, %s46
      %p78 = scmp.eq.s32.totalorder %s77, 0
      %s80 = sadd.s32 %s79, 1
      %s81 = scalar_select %p78, %s79, %s80
      %p84 = pneg %p78
      %p85 = scmp.eq.s32.totalorder %s31, 1
      %p86 = por %p84, %p85
      %p87 = scmp.ne.s32.totalorder %s79, %s82
      %p88 = scmp.eq.s32.totalorder %s31, 0
      %p89 = por %p87, %p88
      %p90 = scmp.ne.s32.totalorder %s79, %s82
      %p91 = scmp.eq.s32.totalorder %s36, 1
      %p92 = por %p90, %p91
      %p93 = scmp.ne.s32.totalorder %s82, %s83
      %p94 = scmp.eq.s32.totalorder %s36, 0
      %p95 = por %p93, %p94
      %p96 = scmp.ne.s32.totalorder %s82, %s83
      %p97 = scmp.eq.s32.totalorder %s37, 1
      %p98 = por %p96, %p97
      %p100 = scmp.ne.s32.totalorder %s83, %s99
      %p101 = scmp.eq.s32.totalorder %s37, 0
      %p102 = por %p100, %p101
      %s103 = ssub.s32 %s39, %s46
      %p104 = scmp.eq.s32.totalorder %s103, 0
      %s106 = sadd.s32 %s105, 1
      %s107 = scalar_select %p104, %s105, %s106
      %p110 = pneg %p104
      %p111 = scmp.eq.s32.totalorder %s31, 1
      %p112 = por %p110, %p111
      %p113 = scmp.ne.s32.totalorder %s105, %s108
      %p114 = scmp.eq.s32.totalorder %s31, 0
      %p115 = por %p113, %p114
      %p116 = scmp.ne.s32.totalorder %s105, %s108
      %p117 = scmp.eq.s32.totalorder %s36, 1
      %p118 = por %p116, %p117
      %p119 = scmp.ne.s32.totalorder %s108, %s109
      %p120 = scmp.eq.s32.totalorder %s36, 0
      %p121 = por %p119, %p120
      %p122 = scmp.ne.s32.totalorder %s108, %s109
      %p123 = scmp.eq.s32.totalorder %s37, 1
      %p124 = por %p122, %p123
      %p126 = scmp.ne.s32.totalorder %s109, %s125
      %p127 = scmp.eq.s32.totalorder %s37, 0
      %p128 = por %p126, %p127
      %s129 = ssub.s32 %s39, %s46
      %p130 = scmp.eq.s32.totalorder %s129, 0
      %s132 = sadd.s32 %s131, 1
      %s133 = scalar_select %p130, %s131, %s132
      %p136 = pneg %p130
      %p137 = scmp.eq.s32.totalorder %s31, 1
      %p138 = por %p136, %p137
      %p139 = scmp.ne.s32.totalorder %s131, %s134
      %p140 = scmp.eq.s32.totalorder %s31, 0
      %p141 = por %p139, %p140
      %p142 = scmp.ne.s32.totalorder %s131, %s134
      %p143 = scmp.eq.s32.totalorder %s36, 1
      %p144 = por %p142, %p143
      %p145 = scmp.ne.s32.totalorder %s134, %s135
      %p146 = scmp.eq.s32.totalorder %s36, 0
      %p147 = por %p145, %p146
      %p148 = scmp.ne.s32.totalorder %s134, %s135
      %p149 = scmp.eq.s32.totalorder %s37, 1
      %p150 = por %p148, %p149
      %p152 = scmp.ne.s32.totalorder %s135, %s151
      %p153 = scmp.eq.s32.totalorder %s37, 0
      %p154 = por %p152, %p153
      %s155 = ssub.s32 %s39, %s46
      %p156 = scmp.eq.s32.totalorder %s155, 0
      %s158 = sadd.s32 %s157, 1
      %s159 = scalar_select %p156, %s157, %s158
      %p162 = pneg %p156
      %p163 = scmp.eq.s32.totalorder %s31, 1
      %p164 = por %p162, %p163
      %p165 = scmp.ne.s32.totalorder %s157, %s160
      %p166 = scmp.eq.s32.totalorder %s31, 0
      %p167 = por %p165, %p166
      %p168 = scmp.ne.s32.totalorder %s157, %s160
      %p169 = scmp.eq.s32.totalorder %s36, 1
      %p170 = por %p168, %p169
      %p171 = scmp.ne.s32.totalorder %s160, %s161
      %p172 = scmp.eq.s32.totalorder %s36, 0
      %p173 = por %p171, %p172
      %p174 = scmp.ne.s32.totalorder %s160, %s161
      %p175 = scmp.eq.s32.totalorder %s37, 1
      %p176 = por %p174, %p175
      %p178 = scmp.ne.s32.totalorder %s161, %s177
      %p179 = scmp.eq.s32.totalorder %s37, 0
      %p180 = por %p178, %p179
      %s181 = ssub.s32 %s39, %s46
      %p182 = scmp.eq.s32.totalorder %s181, 0
      %s184 = sadd.s32 %s183, 1
      %s185 = scalar_select %p182, %s183, %s184
      %p188 = pneg %p182
      %p189 = scmp.eq.s32.totalorder %s31, 1
      %p190 = por %p188, %p189
      %p191 = scmp.ne.s32.totalorder %s183, %s186
      %p192 = scmp.eq.s32.totalorder %s31, 0
      %p193 = por %p191, %p192
      %p194 = scmp.ne.s32.totalorder %s183, %s186
      %p195 = scmp.eq.s32.totalorder %s36, 1
      %p196 = por %p194, %p195
      %p197 = scmp.ne.s32.totalorder %s186, %s187
      %p198 = scmp.eq.s32.totalorder %s36, 0
      %p199 = por %p197, %p198
      %p200 = scmp.ne.s32.totalorder %s186, %s187
      %p201 = scmp.eq.s32.totalorder %s37, 1
      %p202 = por %p200, %p201
      %p204 = scmp.ne.s32.totalorder %s187, %s203
      %p205 = scmp.eq.s32.totalorder %s37, 0
      %p206 = por %p204, %p205
      %s207 = ssub.s32 %s39, %s46
      %p208 = scmp.eq.s32.totalorder %s207, 0
      %s210 = sadd.s32 %s209, 1
      %s211 = scalar_select %p208, %s209, %s210
      %p214 = pneg %p208
      %p215 = scmp.eq.s32.totalorder %s31, 1
      %p216 = por %p214, %p215
      %p217 = scmp.ne.s32.totalorder %s209, %s212
      %p218 = scmp.eq.s32.totalorder %s31, 0
      %p219 = por %p217, %p218
      %p220 = scmp.ne.s32.totalorder %s209, %s212
      %p221 = scmp.eq.s32.totalorder %s36, 1
      %p222 = por %p220, %p221
      %p223 = scmp.ne.s32.totalorder %s212, %s213
      %p224 = scmp.eq.s32.totalorder %s36, 0
      %p225 = por %p223, %p224
      %p226 = scmp.ne.s32.totalorder %s212, %s213
      %p227 = scmp.eq.s32.totalorder %s37, 1
      %p228 = por %p226, %p227
      %p230 = scmp.ne.s32.totalorder %s213, %s229
      %p231 = scmp.eq.s32.totalorder %s37, 0
      %p232 = por %p230, %p231
      %s233 = ssub.s32 %s39, %s46
      %p234 = scmp.eq.s32.totalorder %s233, 0
      %s236 = sadd.s32 %s235, 1
      %s237 = scalar_select %p234, %s235, %s236
      %p240 = pneg %p234
      %p241 = scmp.eq.s32.totalorder %s31, 1
      %p242 = por %p240, %p241
      %p243 = scmp.ne.s32.totalorder %s235, %s238
      %p244 = scmp.eq.s32.totalorder %s31, 0
      %p245 = por %p243, %p244
      %p246 = scmp.ne.s32.totalorder %s235, %s238
      %p247 = scmp.eq.s32.totalorder %s36, 1
      %p248 = por %p246, %p247
      %p249 = scmp.ne.s32.totalorder %s238, %s239
      %p250 = scmp.eq.s32.totalorder %s36, 0
      %p251 = por %p249, %p250
      %p252 = scmp.ne.s32.totalorder %s238, %s239
      %p253 = scmp.eq.s32.totalorder %s37, 1
      %p254 = por %p252, %p253
      %p256 = scmp.ne.s32.totalorder %s239, %s255
      %p257 = scmp.eq.s32.totalorder %s37, 0
      %p258 = por %p256, %p257
      %s259 = ssub.s32 %s39, %s46
      %p260 = scmp.eq.s32.totalorder %s259, 0
      %s262 = sadd.s32 %s261, 1
      %s263 = scalar_select %p260, %s261, %s262
      %p266 = pneg %p260
      %p267 = scmp.eq.s32.totalorder %s31, 1
      %p268 = por %p266, %p267
      %p269 = scmp.ne.s32.totalorder %s261, %s264
      %p270 = scmp.eq.s32.totalorder %s31, 0
      %p271 = por %p269, %p270
      %p272 = scmp.ne.s32.totalorder %s261, %s264
      %p273 = scmp.eq.s32.totalorder %s36, 1
      %p274 = por %p272, %p273
      %p275 = scmp.ne.s32.totalorder %s264, %s265
      %p276 = scmp.eq.s32.totalorder %s36, 0
      %p277 = por %p275, %p276
      %p278 = scmp.ne.s32.totalorder %s264, %s265
      %p279 = scmp.eq.s32.totalorder %s37, 1
      %p280 = por %p278, %p279
      %p282 = scmp.ne.s32.totalorder %s265, %s281
      %p283 = scmp.eq.s32.totalorder %s37, 0
      %p284 = por %p282, %p283
      %s285 = ssub.s32 %s39, %s46
      %p286 = scmp.eq.s32.totalorder %s285, 0
      %s288 = sadd.s32 %s287, 1
      %s289 = scalar_select %p286, %s287, %s288
      %p292 = pneg %p286
      %p293 = scmp.eq.s32.totalorder %s31, 1
      %p294 = por %p292, %p293
      %p295 = scmp.ne.s32.totalorder %s287, %s290
      %p296 = scmp.eq.s32.totalorder %s31, 0
      %p297 = por %p295, %p296
      %p298 = scmp.ne.s32.totalorder %s287, %s290
      %p299 = scmp.eq.s32.totalorder %s36, 1
      %p300 = por %p298, %p299
      %p301 = scmp.ne.s32.totalorder %s290, %s291
      %p302 = scmp.eq.s32.totalorder %s36, 0
      %p303 = por %p301, %p302
      %p304 = scmp.ne.s32.totalorder %s290, %s291
      %p305 = scmp.eq.s32.totalorder %s37, 1
      %p306 = por %p304, %p305
      %p308 = scmp.ne.s32.totalorder %s291, %s307
      %p309 = scmp.eq.s32.totalorder %s37, 0
      %p310 = por %p308, %p309
      %s311 = ssub.s32 %s39, %s46
      %p312 = scmp.eq.s32.totalorder %s311, 0
      %s314 = sadd.s32 %s313, 1
      %s315 = scalar_select %p312, %s313, %s314
      %p318 = pneg %p312
      %p319 = scmp.eq.s32.totalorder %s31, 1
      %p320 = por %p318, %p319
      %p321 = scmp.ne.s32.totalorder %s313, %s316
      %p322 = scmp.eq.s32.totalorder %s31, 0
      %p323 = por %p321, %p322
      %p324 = scmp.ne.s32.totalorder %s313, %s316
      %p325 = scmp.eq.s32.totalorder %s36, 1
      %p326 = por %p324, %p325
      %p327 = scmp.ne.s32.totalorder %s316, %s317
      %p328 = scmp.eq.s32.totalorder %s36, 0
      %p329 = por %p327, %p328
      %p330 = scmp.ne.s32.totalorder %s316, %s317
      %p331 = scmp.eq.s32.totalorder %s37, 1
      %p332 = por %p330, %p331
      %p334 = scmp.ne.s32.totalorder %s317, %s333
      %p335 = scmp.eq.s32.totalorder %s37, 0
      %p336 = por %p334, %p335
      %s337 = ssub.s32 %s38, %s50
      %p338 = scmp.eq.s32.totalorder %s337, 0
      %s340 = sadd.s32 %s339, 1
      %s341 = scalar_select %p338, %s339, %s340
      %p344 = pneg %p338
      %p345 = scmp.eq.s32.totalorder %s31, 1
      %p346 = por %p344, %p345
      %p347 = scmp.ne.s32.totalorder %s339, %s342
      %p348 = scmp.eq.s32.totalorder %s31, 0
      %p349 = por %p347, %p348
      %p350 = scmp.ne.s32.totalorder %s339, %s342
      %p351 = scmp.eq.s32.totalorder %s36, 1
      %p352 = por %p350, %p351
      %p353 = scmp.ne.s32.totalorder %s342, %s343
      %p354 = scmp.eq.s32.totalorder %s36, 0
      %p355 = por %p353, %p354
      %p356 = scmp.ne.s32.totalorder %s342, %s343
      %p357 = scmp.eq.s32.totalorder %s37, 1
      %p358 = por %p356, %p357
      %p360 = scmp.ne.s32.totalorder %s343, %s359
      %p361 = scmp.eq.s32.totalorder %s37, 0
      %p362 = por %p360, %p361
      %p363 = scmp.le.s32.totalorder 1, %s31
      %p364 = scmp.lt.s32.totalorder %s31, 3
      %p365 = pnand %p363, %p364
      %p366 = pneg %p365
      // Predicated region
      $region9: #{tpu_custom_call.1} parent=5 // pred_check
        _
      $region10: #{tpu_custom_call.1} parent=5 // pred_check_branch
        %368 = sbr.rel (%p365) target = $region12
      $region11: #{tpu_custom_call.1} parent=5 // pred_region
        %s369 = ssub.s32 %s31, 1
        // Predicated region
        $region13: #{tpu_custom_call.1} parent=11 // pred_check
          %p370 = pneg %p69
        $region14: #{tpu_custom_call.1} parent=11 // pred_check_branch
          %372 = sbr.rel (%p370) target = $region16
        $region15: #{tpu_custom_call.1} parent=11 // pred_region
          %s373 = smul.u32 2, %s40
          %375 = vsyncadd [#allocation3], 0
          %s376 = smul.addr %s373, 2
          %s377 = smul.addr %s376, 8
          %s378 = scalar_lea.hbm %s0, %s377
          %s379 = sshll.u32 %s378, 4
          %s380 = int_to_ptr.hbm [resolvable:$true] %s379
          %s381 = sshll.u32 [#allocation2], 4
          %s382 = int_to_ptr.vmem [resolvable:$true] %s381
          %387 = dma.hbm_to_vmem [thread:$0]  %s380, 512, %s382, [#allocation3], 128, 128, 8
        $region16: #{tpu_custom_call.1} parent=11 // pred_fallthru
          _
      $region12: #{tpu_custom_call.1} parent=5 // pred_fallthru
        _
      %p388 = scmp.lt.s32.totalorder %s31, 2
      // Predicated region
      $region17: #{tpu_custom_call.1} parent=5 // pred_check
        %p389 = pneg %p388
      $region18: #{tpu_custom_call.1} parent=5 // pred_check_branch
        %391 = sbr.rel (%p389) target = $region20
      $region19: #{tpu_custom_call.1} parent=5 // pred_region
        // Predicated region
        $region21: #{tpu_custom_call.1} parent=19 // pred_check
          %p392 = pneg %p89
        $region22: #{tpu_custom_call.1} parent=19 // pred_check_branch
          %394 = sbr.rel (%p392) target = $region24
        $region23: #{tpu_custom_call.1} parent=19 // pred_region
          %s395 = sand.u32 %s31, 1
          %s396 = scalar_lea.sflag [#allocation6], %s395
          %s397 = sand.u32 %s79, 1
          %s398 = smul.addr %s397, 192
          %s399 = scalar_lea.vmem [#allocation5], %s398
          %401 = vsyncadd %s396, 0
          %s402 = smul.addr %s39, 48
          %s403 = smul.addr %s402, 4
          %s404 = scalar_lea.hbm %s1, %s403
          %s405 = sshll.u32 %s404, 4
          %s406 = int_to_ptr.hbm [resolvable:$true] %s405
          %s407 = sshll.u32 %s399, 4
          %s408 = int_to_ptr.vmem [resolvable:$true] %s407
          %413 = dma.hbm_to_vmem [thread:$0]  %s406, 3072, %s408, %s396, 192, 192, 12
        $region24: #{tpu_custom_call.1} parent=19 // pred_fallthru
          _
        // Predicated region
        $region25: #{tpu_custom_call.1} parent=19 // pred_check
          %p414 = pneg %p115
        $region26: #{tpu_custom_call.1} parent=19 // pred_check_branch
          %416 = sbr.rel (%p414) target = $region28
        $region27: #{tpu_custom_call.1} parent=19 // pred_region
          %s417 = sand.u32 %s31, 1
          %s418 = scalar_lea.sflag [#allocation6], %s417
          %s419 = sand.u32 %s105, 1
          %s420 = smul.addr %s419, 64
          %s421 = scalar_lea.vmem [#allocation7], %s420
          %423 = vsyncadd %s418, 0
          %s424 = smul.addr %s39, 16
          %s425 = smul.addr %s424, 4
          %s426 = scalar_lea.hbm %s2, %s425
          %s427 = sshll.u32 %s426, 4
          %s428 = int_to_ptr.hbm [resolvable:$true] %s427
          %s429 = sshll.u32 %s421, 4
          %s430 = int_to_ptr.vmem [resolvable:$true] %s429
          %435 = dma.hbm_to_vmem [thread:$0]  %s428, 1024, %s430, %s418, 64, 64, 4
        $region28: #{tpu_custom_call.1} parent=19 // pred_fallthru
          _
        // Predicated region
        $region29: #{tpu_custom_call.1} parent=19 // pred_check
          %p436 = pneg %p141
        $region30: #{tpu_custom_call.1} parent=19 // pred_check_branch
          %438 = sbr.rel (%p436) target = $region32
        $region31: #{tpu_custom_call.1} parent=19 // pred_region
          %s439 = sand.u32 %s31, 1
          %s440 = scalar_lea.sflag [#allocation9], %s439
          %s441 = sand.u32 %s131, 1
          %s442 = scalar_lea.vmem [#allocation8], %s441
          %444 = vsyncadd %s440, 0
          %s445 = scalar_lea.hbm %s3, %s39
          %s447 = sshll.u32 %s445, 4
          %s448 = int_to_ptr.hbm [resolvable:$true] %s447
          %s449 = sshll.u32 %s442, 4
          %s450 = int_to_ptr.vmem [resolvable:$true] %s449
          %452 = dma.hbm_to_vmem [thread:$0]  %s448, 16, %s450, %s440
        $region32: #{tpu_custom_call.1} parent=19 // pred_fallthru
          _
        // Predicated region
        $region33: #{tpu_custom_call.1} parent=19 // pred_check
          %p453 = pneg %p167
        $region34: #{tpu_custom_call.1} parent=19 // pred_check_branch
          %455 = sbr.rel (%p453) target = $region36
        $region35: #{tpu_custom_call.1} parent=19 // pred_region
          %s456 = sand.u32 %s31, 1
          %s457 = scalar_lea.sflag [#allocation9], %s456
          %s458 = sand.u32 %s157, 1
          %s459 = scalar_lea.vmem [#allocation10], %s458
          %461 = vsyncadd %s457, 0
          %s462 = scalar_lea.hbm %s4, %s39
          %s464 = sshll.u32 %s462, 4
          %s465 = int_to_ptr.hbm [resolvable:$true] %s464
          %s466 = sshll.u32 %s459, 4
          %s467 = int_to_ptr.vmem [resolvable:$true] %s466
          %469 = dma.hbm_to_vmem [thread:$0]  %s465, 16, %s467, %s457
        $region36: #{tpu_custom_call.1} parent=19 // pred_fallthru
          _
        // Predicated region
        $region37: #{tpu_custom_call.1} parent=19 // pred_check
          %p470 = pneg %p193
        $region38: #{tpu_custom_call.1} parent=19 // pred_check_branch
          %472 = sbr.rel (%p470) target = $region40
        $region39: #{tpu_custom_call.1} parent=19 // pred_region
          %s473 = sand.u32 %s31, 1
          %s474 = scalar_lea.sflag [#allocation12], %s473
          %s475 = sand.u32 %s183, 1
          %s476 = smul.addr %s475, 128
          %s477 = scalar_lea.vmem [#allocation11], %s476
          %479 = vsyncadd %s474, 0
          %s480 = smul.addr %s39, 32
          %s481 = smul.addr %s480, 4
          %s482 = scalar_lea.hbm %s5, %s481
          %s483 = sshll.u32 %s482, 4
          %s484 = int_to_ptr.hbm [resolvable:$true] %s483
          %s485 = sshll.u32 %s477, 4
          %s486 = int_to_ptr.vmem [resolvable:$true] %s485
          %491 = dma.hbm_to_vmem [thread:$0]  %s484, 2048, %s486, %s474, 128, 128, 8
        $region40: #{tpu_custom_call.1} parent=19 // pred_fallthru
          _
        // Predicated region
        $region41: #{tpu_custom_call.1} parent=19 // pred_check
          %p492 = pneg %p219
        $region42: #{tpu_custom_call.1} parent=19 // pred_check_branch
          %494 = sbr.rel (%p492) target = $region44
        $region43: #{tpu_custom_call.1} parent=19 // pred_region
          %p495 = scmp.lt.s32.totalorder %s39, 1
          %s496 = scalar_select %p495, %s39, 1
          %s497 = smul.addr %s496, 2
          %s498 = scalar_lea.vmem %s6, %s497
        $region44: #{tpu_custom_call.1} parent=19 // pred_fallthru
          _
        // Predicated region
        $region45: #{tpu_custom_call.1} parent=19 // pred_check
          %p499 = pneg %p245
        $region46: #{tpu_custom_call.1} parent=19 // pred_check_branch
          %501 = sbr.rel (%p499) target = $region48
        $region47: #{tpu_custom_call.1} parent=19 // pred_region
          %s502 = sand.u32 %s31, 1
          %s503 = scalar_lea.sflag [#allocation12], %s502
          %s504 = sand.u32 %s235, 1
          %s505 = smul.addr %s504, 128
          %s506 = scalar_lea.vmem [#allocation13], %s505
          %508 = vsyncadd %s503, 0
          %s509 = smul.addr %s39, 32
          %s510 = smul.addr %s509, 4
          %s511 = scalar_lea.hbm %s7, %s510
          %s512 = sshll.u32 %s511, 4
          %s513 = int_to_ptr.hbm [resolvable:$true] %s512
          %s514 = sshll.u32 %s506, 4
          %s515 = int_to_ptr.vmem [resolvable:$true] %s514
          %520 = dma.hbm_to_vmem [thread:$0]  %s513, 2048, %s515, %s503, 64, 64, 4
        $region48: #{tpu_custom_call.1} parent=19 // pred_fallthru
          _
        // Predicated region
        $region49: #{tpu_custom_call.1} parent=19 // pred_check
          %p521 = pneg %p271
        $region50: #{tpu_custom_call.1} parent=19 // pred_check_branch
          %523 = sbr.rel (%p521) target = $region52
        $region51: #{tpu_custom_call.1} parent=19 // pred_region
          %p524 = scmp.lt.s32.totalorder %s39, 1
          %s525 = scalar_select %p524, %s39, 1
          %s526 = scalar_lea.vmem %s8, %s525
        $region52: #{tpu_custom_call.1} parent=19 // pred_fallthru
          _
        // Predicated region
        $region53: #{tpu_custom_call.1} parent=19 // pred_check
          %p527 = pneg %p297
        $region54: #{tpu_custom_call.1} parent=19 // pred_check_branch
          %529 = sbr.rel (%p527) target = $region56
        $region55: #{tpu_custom_call.1} parent=19 // pred_region
          %p530 = scmp.lt.s32.totalorder %s39, 1
          %s531 = scalar_select %p530, %s39, 1
          %s532 = scalar_lea.vmem %s9, %s531
        $region56: #{tpu_custom_call.1} parent=19 // pred_fallthru
          _
        // Predicated region
        $region57: #{tpu_custom_call.1} parent=19 // pred_check
          %p533 = pneg %p323
        $region58: #{tpu_custom_call.1} parent=19 // pred_check_branch
          %535 = sbr.rel (%p533) target = $region60
        $region59: #{tpu_custom_call.1} parent=19 // pred_region
          %s536 = sand.u32 %s313, 1
          %s537 = scalar_lea.sflag [#allocation15], %s536
          %s538 = sand.u32 %s313, 1
          %s539 = scalar_lea.vmem [#allocation14], %s538
          %541 = vsyncadd %s537, 0
          %s542 = scalar_lea.hbm %s10, %s39
          %s544 = sshll.u32 %s542, 4
          %s545 = int_to_ptr.hbm [resolvable:$true] %s544
          %s546 = sshll.u32 %s539, 4
          %s547 = int_to_ptr.vmem [resolvable:$true] %s546
          %549 = dma.hbm_to_vmem [thread:$0]  %s545, 16, %s547, %s537
        $region60: #{tpu_custom_call.1} parent=19 // pred_fallthru
          _
      $region20: #{tpu_custom_call.1} parent=5 // pred_fallthru
        _
      %p550 = scmp.le.s32.totalorder 1, %s31
      %p551 = scmp.lt.s32.totalorder %s31, 3
      %p552 = pnand %p550, %p551
      %p553 = pneg %p552
      // Predicated region
      $region61: #{tpu_custom_call.1} parent=5 // pred_check
        _
      $region62: #{tpu_custom_call.1} parent=5 // pred_check_branch
        %555 = sbr.rel (%p552) target = $region64
      $region63: #{tpu_custom_call.1} parent=5 // pred_region
        %s556 = ssub.s32 %s31, 1
        // Predicated region
        $region65: #{tpu_custom_call.1} parent=63 // pred_check
          %p557 = pneg %p69
        $region66: #{tpu_custom_call.1} parent=63 // pred_check_branch
          %559 = sbr.rel (%p557) target = $region68
        $region67: #{tpu_custom_call.1} parent=63 // pred_region
          %561 = dma.done [#allocation3], 512
        $region68: #{tpu_custom_call.1} parent=63 // pred_fallthru
          _
        %s562 = sand.u32 %s36, 1
        %s563 = scalar_lea.sflag [#allocation6], %s562
        %s564 = sand.u32 %s82, 1
        %s565 = smul.addr %s564, 192
        %s566 = scalar_lea.vmem [#allocation5], %s565
        // Predicated region
        $region69: #{tpu_custom_call.1} parent=63 // pred_check
          %p567 = pneg %p95
        $region70: #{tpu_custom_call.1} parent=63 // pred_check_branch
          %569 = sbr.rel (%p567) target = $region72
        $region71: #{tpu_custom_call.1} parent=63 // pred_region
          %571 = dma.done %s563, 3072
        $region72: #{tpu_custom_call.1} parent=63 // pred_fallthru
          _
        %s572 = sand.u32 %s36, 1
        %s573 = scalar_lea.sflag [#allocation6], %s572
        %s574 = sand.u32 %s108, 1
        %s575 = smul.addr %s574, 64
        %s576 = scalar_lea.vmem [#allocation7], %s575
        // Predicated region
        $region73: #{tpu_custom_call.1} parent=63 // pred_check
          %p577 = pneg %p121
        $region74: #{tpu_custom_call.1} parent=63 // pred_check_branch
          %579 = sbr.rel (%p577) target = $region76
        $region75: #{tpu_custom_call.1} parent=63 // pred_region
          %581 = dma.done %s573, 1024
        $region76: #{tpu_custom_call.1} parent=63 // pred_fallthru
          _
        %s582 = sand.u32 %s36, 1
        %s583 = scalar_lea.sflag [#allocation9], %s582
        %s584 = sand.u32 %s134, 1
        %s585 = scalar_lea.vmem [#allocation8], %s584
        // Predicated region
        $region77: #{tpu_custom_call.1} parent=63 // pred_check
          %p586 = pneg %p147
        $region78: #{tpu_custom_call.1} parent=63 // pred_check_branch
          %588 = sbr.rel (%p586) target = $region80
        $region79: #{tpu_custom_call.1} parent=63 // pred_region
          %590 = dma.done %s583, 16
        $region80: #{tpu_custom_call.1} parent=63 // pred_fallthru
          _
        %s591 = sand.u32 %s36, 1
        %s592 = scalar_lea.sflag [#allocation9], %s591
        %s593 = sand.u32 %s160, 1
        %s594 = scalar_lea.vmem [#allocation10], %s593
        // Predicated region
        $region81: #{tpu_custom_call.1} parent=63 // pred_check
          %p595 = pneg %p173
        $region82: #{tpu_custom_call.1} parent=63 // pred_check_branch
          %597 = sbr.rel (%p595) target = $region84
        $region83: #{tpu_custom_call.1} parent=63 // pred_region
          %599 = dma.done %s592, 16
        $region84: #{tpu_custom_call.1} parent=63 // pred_fallthru
          _
        %s600 = sand.u32 %s36, 1
        %s601 = scalar_lea.sflag [#allocation12], %s600
        %s602 = sand.u32 %s186, 1
        %s603 = smul.addr %s602, 128
        %s604 = scalar_lea.vmem [#allocation11], %s603
        // Predicated region
        $region85: #{tpu_custom_call.1} parent=63 // pred_check
          %p605 = pneg %p199
        $region86: #{tpu_custom_call.1} parent=63 // pred_check_branch
          %607 = sbr.rel (%p605) target = $region88
        $region87: #{tpu_custom_call.1} parent=63 // pred_region
          %609 = dma.done %s601, 2048
        $region88: #{tpu_custom_call.1} parent=63 // pred_fallthru
          _
        %s610 = sand.u32 %s36, 1
        %s611 = scalar_lea.sflag [#allocation12], %s610
        %s612 = sand.u32 %s238, 1
        %s613 = smul.addr %s612, 128
        %s614 = scalar_lea.vmem [#allocation13], %s613
        // Predicated region
        $region89: #{tpu_custom_call.1} parent=63 // pred_check
          %p615 = pneg %p251
        $region90: #{tpu_custom_call.1} parent=63 // pred_check_branch
          %617 = sbr.rel (%p615) target = $region92
        $region91: #{tpu_custom_call.1} parent=63 // pred_region
          %619 = dma.done %s611, 2048
        $region92: #{tpu_custom_call.1} parent=63 // pred_fallthru
          _
        %s620 = sand.u32 %s316, 1
        %s621 = scalar_lea.sflag [#allocation15], %s620
        %s622 = sand.u32 %s316, 1
        %s623 = scalar_lea.vmem [#allocation14], %s622
        // Predicated region
        $region93: #{tpu_custom_call.1} parent=63 // pred_check
          %p624 = pneg %p329
        $region94: #{tpu_custom_call.1} parent=63 // pred_check_branch
          %626 = sbr.rel (%p624) target = $region96
        $region95: #{tpu_custom_call.1} parent=63 // pred_region
          %628 = dma.done %s621, 16
        $region96: #{tpu_custom_call.1} parent=63 // pred_fallthru
          _
        %p629 = pneg %p69
        %p630 = pneg %p66
        %s631 = sand.u32 %s36, 1
        %s632 = scalar_lea.sflag [#allocation6], %s631
        %s633 = sand.u32 %s82, 1
        %s634 = smul.addr %s633, 192
        %s635 = scalar_lea.vmem [#allocation5], %s634
        %p636 = pneg %p95
        %p637 = pneg %p92
        %s638 = sand.u32 %s36, 1
        %s639 = scalar_lea.sflag [#allocation6], %s638
        %s640 = sand.u32 %s108, 1
        %s641 = smul.addr %s640, 64
        %s642 = scalar_lea.vmem [#allocation7], %s641
        %p643 = pneg %p121
        %p644 = pneg %p118
        %s645 = sand.u32 %s36, 1
        %s646 = scalar_lea.sflag [#allocation9], %s645
        %s647 = sand.u32 %s134, 1
        %s648 = scalar_lea.vmem [#allocation8], %s647
        %p649 = pneg %p147
        %p650 = pneg %p144
        %s651 = sand.u32 %s36, 1
        %s652 = scalar_lea.sflag [#allocation9], %s651
        %s653 = sand.u32 %s160, 1
        %s654 = scalar_lea.vmem [#allocation10], %s653
        %p655 = pneg %p173
        %p656 = pneg %p170
        %s657 = sand.u32 %s36, 1
        %s658 = scalar_lea.sflag [#allocation12], %s657
        %s659 = sand.u32 %s186, 1
        %s660 = smul.addr %s659, 128
        %s661 = scalar_lea.vmem [#allocation11], %s660
        %p662 = pneg %p199
        %p663 = pneg %p196
        %p664 = scmp.lt.s32.totalorder %s41, 1
        %s665 = scalar_select %p664, %s41, 1
        %s666 = smul.addr %s665, 2
        %s667 = scalar_lea.vmem %s6, %s666
        %p668 = pneg %p225
        %p669 = pneg %p222
        %s670 = sand.u32 %s36, 1
        %s671 = scalar_lea.sflag [#allocation12], %s670
        %s672 = sand.u32 %s238, 1
        %s673 = smul.addr %s672, 128
        %s674 = scalar_lea.vmem [#allocation13], %s673
        %p675 = pneg %p251
        %p676 = pneg %p248
        %p677 = scmp.lt.s32.totalorder %s41, 1
        %s678 = scalar_select %p677, %s41, 1
        %s679 = scalar_lea.vmem %s8, %s678
        %p680 = pneg %p277
        %p681 = pneg %p274
        %p682 = scmp.lt.s32.totalorder %s41, 1
        %s683 = scalar_select %p682, %s41, 1
        %s684 = scalar_lea.vmem %s9, %s683
        %p685 = pneg %p303
        %p686 = pneg %p300
        %s687 = sand.u32 %s316, 1
        %s688 = scalar_lea.sflag [#allocation15], %s687
        %s689 = sand.u32 %s316, 1
        %s690 = scalar_lea.vmem [#allocation14], %s689
        %p691 = pneg %p329
        %p692 = pneg %p326
        %p693 = pneg %p355
        %p694 = pneg %p352
        %s695 = smul.u32 2, %s40
        %p696 = scmp.lt.s32.totalorder %s41, 1
        %s697 = scalar_select %p696, %s41, 1
        %s698 = smul.addr %s697, 2
        %s699 = scalar_lea.vmem %s6, %s698
        %p700 = scmp.lt.s32.totalorder %s41, 1
        %s701 = scalar_select %p700, %s41, 1
        %s702 = scalar_lea.vmem %s8, %s701
        %p703 = scmp.lt.s32.totalorder %s41, 1
        %s704 = scalar_select %p703, %s41, 1
        %s705 = scalar_lea.vmem %s9, %s704
        %s706 = smul.u32 2, %s40
        %p708 = scmp.eq.s32.totalorder %s41, 0
        // Predicated region
        $region97: #{tpu_custom_call.1} parent=63 // pred_check
          %p709 = pneg %p708
        $region98: #{tpu_custom_call.1} parent=63 // pred_check_branch
          %711 = sbr.rel (%p709) target = $region100
        $region99: #{tpu_custom_call.1} parent=63 // pred_region
          %v712 = vld [vmem:[#allocation2] sm:$0xff]
          %v713 = vld [vmem:[#allocation2 + $0x8] sm:$0xff]
          %v714 = vld [vmem:[#allocation2 + $0x10] sm:$0xff]
          %v715 = vld [vmem:[#allocation2 + $0x18] sm:$0xff]
          %716 = vst [vmem:[#allocation16] sm:$0xff] %v712
          %717 = vst [vmem:[#allocation16 + $0x8] sm:$0xff] %v713
          %718 = vst [vmem:[#allocation16 + $0x10] sm:$0xff] %v714
          %719 = vst [vmem:[#allocation16 + $0x18] sm:$0xff] %v715
        $region100: #{tpu_custom_call.1} parent=63 // pred_fallthru
          _
        %v720 = vld [vmem:[#allocation16] sm:$0xff]
        %v721 = vld [vmem:[#allocation16 + $0x8] sm:$0xff]
        %v722 = vld [vmem:[#allocation16 + $0x10] sm:$0xff]
        %v723 = vld [vmem:[#allocation16 + $0x18] sm:$0xff]
        %v724 = vpack.c.bf16 %v721, %v720
        %v725 = vpack.c.bf16 %v723, %v722
        %v726 = vld [vmem:[%s566] sm:$0xff]
        %v727 = vld [vmem:[%s566 + $0x8] sm:$0xf]
        %v728 = vld [vmem:[%s566 + $0xc] sm:$0xff]
        %v729 = vld [vmem:[%s566 + $0x14] sm:$0xf]
        %v730 = vld [vmem:[%s566 + $0x18] sm:$0xff]
        %v731 = vld [vmem:[%s566 + $0x20] sm:$0xf]
        %v732 = vld [vmem:[%s566 + $0x24] sm:$0xff]
        %v733 = vld [vmem:[%s566 + $0x2c] sm:$0xf]
        %v734 = vld [vmem:[%s566 + $0x30] sm:$0xff]
        %v735 = vld [vmem:[%s566 + $0x38] sm:$0xf]
        %v736 = vld [vmem:[%s566 + $0x3c] sm:$0xff]
        %v737 = vld [vmem:[%s566 + $0x44] sm:$0xf]
        %v738 = vld [vmem:[%s566 + $0x48] sm:$0xff]
        %v739 = vld [vmem:[%s566 + $0x50] sm:$0xf]
        %v740 = vld [vmem:[%s566 + $0x54] sm:$0xff]
        %v741 = vld [vmem:[%s566 + $0x5c] sm:$0xf]
        %v742 = vld [vmem:[%s566 + $0x60] sm:$0xff]
        %v743 = vld [vmem:[%s566 + $0x68] sm:$0xf]
        %v744 = vld [vmem:[%s566 + $0x6c] sm:$0xff]
        %v745 = vld [vmem:[%s566 + $0x74] sm:$0xf]
        %v746 = vld [vmem:[%s566 + $0x78] sm:$0xff]
        %v747 = vld [vmem:[%s566 + $0x80] sm:$0xf]
        %v748 = vld [vmem:[%s566 + $0x84] sm:$0xff]
        %v749 = vld [vmem:[%s566 + $0x8c] sm:$0xf]
        %v750 = vld [vmem:[%s566 + $0x90] sm:$0xff]
        %v751 = vld [vmem:[%s566 + $0x98] sm:$0xf]
        %v752 = vld [vmem:[%s566 + $0x9c] sm:$0xff]
        %v753 = vld [vmem:[%s566 + $0xa4] sm:$0xf]
        %v754 = vld [vmem:[%s566 + $0xa8] sm:$0xff]
        %v755 = vld [vmem:[%s566 + $0xb0] sm:$0xf]
        %v756 = vld [vmem:[%s566 + $0xb4] sm:$0xff]
        %v757 = vld [vmem:[%s566 + $0xbc] sm:$0xf]
        %v790 = vunpack.c.l.b16 %v726
        %v791 = vunpack.c.h.b16 %v726
        %v792 = vunpack.c.l.b16 %v727
        %v793 = vunpack.c.l.b16 %v728
        %v794 = vunpack.c.h.b16 %v728
        %v795 = vunpack.c.l.b16 %v729
        %v796 = vunpack.c.l.b16 %v730
        %v797 = vunpack.c.h.b16 %v730
        %v798 = vunpack.c.l.b16 %v731
        %v799 = vunpack.c.l.b16 %v732
        %v800 = vunpack.c.h.b16 %v732
        %v801 = vunpack.c.l.b16 %v733
        %v802 = vunpack.c.l.b16 %v734
        %v803 = vunpack.c.h.b16 %v734
        %v804 = vunpack.c.l.b16 %v735
        %v805 = vunpack.c.l.b16 %v736
        %v806 = vunpack.c.h.b16 %v736
        %v807 = vunpack.c.l.b16 %v737
        %v808 = vunpack.c.l.b16 %v738
        %v809 = vunpack.c.h.b16 %v738
        %v810 = vunpack.c.l.b16 %v739
        %v811 = vunpack.c.l.b16 %v740
        %v812 = vunpack.c.h.b16 %v740
        %v813 = vunpack.c.l.b16 %v741
        %v814 = vunpack.c.l.b16 %v742
        %v815 = vunpack.c.h.b16 %v742
        %v816 = vunpack.c.l.b16 %v743
        %v817 = vunpack.c.l.b16 %v744
        %v818 = vunpack.c.h.b16 %v744
        %v819 = vunpack.c.l.b16 %v745
        %v820 = vunpack.c.l.b16 %v746
        %v821 = vunpack.c.h.b16 %v746
        %v822 = vunpack.c.l.b16 %v747
        %v823 = vunpack.c.l.b16 %v748
        %v824 = vunpack.c.h.b16 %v748
        %v825 = vunpack.c.l.b16 %v749
        %v826 = vunpack.c.l.b16 %v750
        %v827 = vunpack.c.h.b16 %v750
        %v828 = vunpack.c.l.b16 %v751
        %v829 = vunpack.c.l.b16 %v752
        %v830 = vunpack.c.h.b16 %v752
        %v831 = vunpack.c.l.b16 %v753
        %v832 = vunpack.c.l.b16 %v754
        %v833 = vunpack.c.h.b16 %v754
        %v834 = vunpack.c.l.b16 %v755
        %v835 = vunpack.c.l.b16 %v756
        %v836 = vunpack.c.h.b16 %v756
        %v837 = vunpack.c.l.b16 %v757
        %v838 = vpack.c.b16 %v793, %v790
        %v839 = vpack.c.b16 %v794, %v791
        %v840 = vpack.c.b16 %v795, %v792
        %v841 = vpack.c.b16 %v799, %v796
        %v842 = vpack.c.b16 %v800, %v797
        %v843 = vpack.c.b16 %v801, %v798
        %v844 = vpack.c.b16 %v805, %v802
        %v845 = vpack.c.b16 %v806, %v803
        %v846 = vpack.c.b16 %v807, %v804
        %v847 = vpack.c.b16 %v811, %v808
        %v848 = vpack.c.b16 %v812, %v809
        %v849 = vpack.c.b16 %v813, %v810
        %v850 = vpack.c.b16 %v817, %v814
        %v851 = vpack.c.b16 %v818, %v815
        %v852 = vpack.c.b16 %v819, %v816
        %v853 = vpack.c.b16 %v823, %v820
        %v854 = vpack.c.b16 %v824, %v821
        %v855 = vpack.c.b16 %v825, %v822
        %v856 = vpack.c.b16 %v829, %v826
        %v857 = vpack.c.b16 %v830, %v827
        %v858 = vpack.c.b16 %v831, %v828
        %v859 = vpack.c.b16 %v835, %v832
        %v860 = vpack.c.b16 %v836, %v833
        %v861 = vpack.c.b16 %v837, %v834
        %886 = vmatpush.bf16.msra.mxu0 %v859
        %887 = vmatpush.bf16.msra.mxu0 %v856
        %888 = vmatpush.bf16.msra.mxu0 %v853
        %889 = vmatpush.bf16.msra.mxu0 %v850
        %890 = vmatpush.bf16.msra.mxu0 %v847
        %891 = vmatpush.bf16.msra.mxu0 %v844
        %892 = vmatpush.bf16.msra.mxu0 %v841
        %893 = vmatpush.bf16.msra.mxu0 %v838
        %894 = vmatmul.bf16.gmra.mxu0 %v724
        %v895 = vpop.f32.mrf.mxu0
        %v896 = vadd.f32 0.0, %v895
        %v897 = vpop.f32.mrf.mxu0
        %v898 = vadd.f32 0.0, %v897
        %899 = vmatmul.bf16.gmra.mxu0 %v725
        %v900 = vpop.f32.mrf.mxu0
        %v901 = vadd.f32 0.0, %v900
        %v902 = vpop.f32.mrf.mxu0
        %v903 = vadd.f32 0.0, %v902
        %904 = vdwg.mxu0
        %905 = vmatpush.bf16.msra.mxu0 %v860
        %906 = vmatpush.bf16.msra.mxu0 %v857
        %907 = vmatpush.bf16.msra.mxu0 %v854
        %908 = vmatpush.bf16.msra.mxu0 %v851
        %909 = vmatpush.bf16.msra.mxu0 %v848
        %910 = vmatpush.bf16.msra.mxu0 %v845
        %911 = vmatpush.bf16.msra.mxu0 %v842
        %912 = vmatpush.bf16.msra.mxu0 %v839
        %913 = vmatmul.bf16.gmra.mxu0 %v724
        %v914 = vpop.f32.mrf.mxu0
        %v915 = vadd.f32 0.0, %v914
        %v916 = vpop.f32.mrf.mxu0
        %v917 = vadd.f32 0.0, %v916
        %918 = vmatmul.bf16.gmra.mxu0 %v725
        %v919 = vpop.f32.mrf.mxu0
        %v920 = vadd.f32 0.0, %v919
        %v921 = vpop.f32.mrf.mxu0
        %v922 = vadd.f32 0.0, %v921
        %923 = vdwg.mxu0
        %924 = vmatpush.bf16.msra.mxu0 %v861
        %925 = vmatpush.bf16.msra.mxu0 %v858
        %926 = vmatpush.bf16.msra.mxu0 %v855
        %927 = vmatpush.bf16.msra.mxu0 %v852
        %928 = vmatpush.bf16.msra.mxu0 %v849
        %929 = vmatpush.bf16.msra.mxu0 %v846
        %930 = vmatpush.bf16.msra.mxu0 %v843
        %931 = vmatpush.bf16.msra.mxu0 %v840
        %932 = vmatmul.bf16.gmra.mxu0 %v724
        %v933 = vpop.f32.mrf.mxu0
        %v934 = vadd.f32 0.0, %v933
        %v935 = vpop.f32.mrf.mxu0
        %v936 = vadd.f32 0.0, %v935
        %937 = vmatmul.bf16.gmra.mxu0 %v725
        %v938 = vpop.f32.mrf.mxu0
        %v939 = vadd.f32 0.0, %v938
        %v940 = vpop.f32.mrf.mxu0
        %v941 = vadd.f32 0.0, %v940
        %942 = vdwg.mxu0
        %v943 = vmul.f32 %v896, 0.17677669
        %v944 = vmul.f32 %v898, 0.17677669
        %v945 = vmul.f32 %v901, 0.17677669
        %v946 = vmul.f32 %v903, 0.17677669
        %951 = vrot.lane.b32.xlu0 %v943, 96
        %v952 = vpop.permute.xlu0 %951
        %953 = vrot.lane.b32.xlu0 %v944, 96
        %v954 = vpop.permute.xlu0 %953
        %955 = vrot.lane.b32.xlu0 %v945, 96
        %v956 = vpop.permute.xlu0 %955
        %957 = vrot.lane.b32.xlu0 %v946, 96
        %v958 = vpop.permute.xlu0 %957
        %963 = vrot.lane.b32.xlu0 %v943, 64
        %v964 = vpop.permute.xlu0 %963
        %965 = vrot.lane.b32.xlu0 %v944, 64
        %v966 = vpop.permute.xlu0 %965
        %967 = vrot.lane.b32.xlu0 %v945, 64
        %v968 = vpop.permute.xlu0 %967
        %969 = vrot.lane.b32.xlu0 %v946, 64
        %v970 = vpop.permute.xlu0 %969
        %975 = vrot.lane.b32.xlu0 %v943, 32
        %v976 = vpop.permute.xlu0 %975
        %977 = vrot.lane.b32.xlu0 %v944, 32
        %v978 = vpop.permute.xlu0 %977
        %979 = vrot.lane.b32.xlu0 %v945, 32
        %v980 = vpop.permute.xlu0 %979
        %981 = vrot.lane.b32.xlu0 %v946, 32
        %v982 = vpop.permute.xlu0 %981
        %v987 = vrot.slane %v964, 4
        %vm988 = vcmask 1047556
        %v989 = vsel %vm988, %v987, %v943
        %v990 = vrot.slane %v943, 4
        %v991 = vsel %vm988, %v964, %v990
        %v993 = vunpack.c.l.s4 1983009808
        %v994 = vunpack.c.0.s8 %v993
        %v995 = vperm.slane %v989, %v994
        %v997 = vunpack.c.l.s4 1983009808
        %v998 = vunpack.c.0.s8 %v997
        %v999 = vperm.slane %v991, %v998
        %v1000 = vrot.slane %v976, 4
        %v1001 = vsel %vm988, %v1000, %v952
        %v1002 = vrot.slane %v952, 4
        %v1003 = vsel %vm988, %v976, %v1002
        %v1005 = vunpack.c.l.s4 1983009808
        %v1006 = vunpack.c.0.s8 %v1005
        %v1007 = vperm.slane %v1001, %v1006
        %v1009 = vunpack.c.l.s4 1983009808
        %v1010 = vunpack.c.0.s8 %v1009
        %v1011 = vperm.slane %v1003, %v1010
        %v1012 = vrot.slane %v1007, 4
        %v1013 = vsel %vm988, %v1012, %v995
        %v1014 = vrot.slane %v995, 4
        %v1015 = vsel %vm988, %v1007, %v1014
        %v1017 = vunpack.c.l.s4 1934713408
        %v1018 = vunpack.c.0.s8 %v1017
        %v1019 = vperm.slane %v1013, %v1018
        %v1021 = vunpack.c.l.s4 1934713408
        %v1022 = vunpack.c.0.s8 %v1021
        %v1023 = vperm.slane %v1015, %v1022
        %v1024 = vrot.slane %v1011, 4
        %v1025 = vsel %vm988, %v1024, %v999
        %v1026 = vrot.slane %v999, 4
        %v1027 = vsel %vm988, %v1011, %v1026
        %v1029 = vunpack.c.l.s4 1934713408
        %v1030 = vunpack.c.0.s8 %v1029
        %v1031 = vperm.slane %v1025, %v1030
        %v1033 = vunpack.c.l.s4 1934713408
        %v1034 = vunpack.c.0.s8 %v1033
        %v1035 = vperm.slane %v1027, %v1034
        %v1036 = vrot.slane %v1019, 4
        %v1037 = vsel %vm988, 0.0, %v1036
        %v1038 = vrot.slane %v1023, 4
        %v1039 = vsel %vm988, 0.0, %v1038
        %v1040 = vrot.slane %v1031, 4
        %v1041 = vsel %vm988, 0.0, %v1040
        %v1042 = vrot.slane %v1035, 4
        %v1043 = vsel %vm988, 0.0, %v1042
        %v1044 = vrot.slane %v966, 4
        %v1045 = vsel %vm988, %v1044, %v944
        %v1046 = vrot.slane %v944, 4
        %v1047 = vsel %vm988, %v966, %v1046
        %v1049 = vunpack.c.l.s4 1983009808
        %v1050 = vunpack.c.0.s8 %v1049
        %v1051 = vperm.slane %v1045, %v1050
        %v1053 = vunpack.c.l.s4 1983009808
        %v1054 = vunpack.c.0.s8 %v1053
        %v1055 = vperm.slane %v1047, %v1054
        %v1056 = vrot.slane %v978, 4
        %v1057 = vsel %vm988, %v1056, %v954
        %v1058 = vrot.slane %v954, 4
        %v1059 = vsel %vm988, %v978, %v1058
        %v1061 = vunpack.c.l.s4 1983009808
        %v1062 = vunpack.c.0.s8 %v1061
        %v1063 = vperm.slane %v1057, %v1062
        %v1065 = vunpack.c.l.s4 1983009808
        %v1066 = vunpack.c.0.s8 %v1065
        %v1067 = vperm.slane %v1059, %v1066
        %v1068 = vrot.slane %v1063, 4
        %v1069 = vsel %vm988, %v1068, %v1051
        %v1070 = vrot.slane %v1051, 4
        %v1071 = vsel %vm988, %v1063, %v1070
        %v1073 = vunpack.c.l.s4 1934713408
        %v1074 = vunpack.c.0.s8 %v1073
        %v1075 = vperm.slane %v1069, %v1074
        %v1077 = vunpack.c.l.s4 1934713408
        %v1078 = vunpack.c.0.s8 %v1077
        %v1079 = vperm.slane %v1071, %v1078
        %v1080 = vrot.slane %v1067, 4
        %v1081 = vsel %vm988, %v1080, %v1055
        %v1082 = vrot.slane %v1055, 4
        %v1083 = vsel %vm988, %v1067, %v1082
        %v1085 = vunpack.c.l.s4 1934713408
        %v1086 = vunpack.c.0.s8 %v1085
        %v1087 = vperm.slane %v1081, %v1086
        %v1089 = vunpack.c.l.s4 1934713408
        %v1090 = vunpack.c.0.s8 %v1089
        %v1091 = vperm.slane %v1083, %v1090
        %v1092 = vrot.slane %v1075, 4
        %v1093 = vsel %vm988, 0.0, %v1092
        %v1094 = vrot.slane %v1079, 4
        %v1095 = vsel %vm988, 0.0, %v1094
        %v1096 = vrot.slane %v1087, 4
        %v1097 = vsel %vm988, 0.0, %v1096
        %v1098 = vrot.slane %v1091, 4
        %v1099 = vsel %vm988, 0.0, %v1098
        %v1100 = vrot.slane %v968, 4
        %v1101 = vsel %vm988, %v1100, %v945
        %v1102 = vrot.slane %v945, 4
        %v1103 = vsel %vm988, %v968, %v1102
        %v1105 = vunpack.c.l.s4 1983009808
        %v1106 = vunpack.c.0.s8 %v1105
        %v1107 = vperm.slane %v1101, %v1106
        %v1109 = vunpack.c.l.s4 1983009808
        %v1110 = vunpack.c.0.s8 %v1109
        %v1111 = vperm.slane %v1103, %v1110
        %v1112 = vrot.slane %v980, 4
        %v1113 = vsel %vm988, %v1112, %v956
        %v1114 = vrot.slane %v956, 4
        %v1115 = vsel %vm988, %v980, %v1114
        %v1117 = vunpack.c.l.s4 1983009808
        %v1118 = vunpack.c.0.s8 %v1117
        %v1119 = vperm.slane %v1113, %v1118
        %v1121 = vunpack.c.l.s4 1983009808
        %v1122 = vunpack.c.0.s8 %v1121
        %v1123 = vperm.slane %v1115, %v1122
        %v1124 = vrot.slane %v1119, 4
        %v1125 = vsel %vm988, %v1124, %v1107
        %v1126 = vrot.slane %v1107, 4
        %v1127 = vsel %vm988, %v1119, %v1126
        %v1129 = vunpack.c.l.s4 1934713408
        %v1130 = vunpack.c.0.s8 %v1129
        %v1131 = vperm.slane %v1125, %v1130
        %v1133 = vunpack.c.l.s4 1934713408
        %v1134 = vunpack.c.0.s8 %v1133
        %v1135 = vperm.slane %v1127, %v1134
        %v1136 = vrot.slane %v1123, 4
        %v1137 = vsel %vm988, %v1136, %v1111
        %v1138 = vrot.slane %v1111, 4
        %v1139 = vsel %vm988, %v1123, %v1138
        %v1141 = vunpack.c.l.s4 1934713408
        %v1142 = vunpack.c.0.s8 %v1141
        %v1143 = vperm.slane %v1137, %v1142
        %v1145 = vunpack.c.l.s4 1934713408
        %v1146 = vunpack.c.0.s8 %v1145
        %v1147 = vperm.slane %v1139, %v1146
        %v1148 = vrot.slane %v1131, 4
        %v1149 = vsel %vm988, 0.0, %v1148
        %v1150 = vrot.slane %v1135, 4
        %v1151 = vsel %vm988, 0.0, %v1150
        %v1152 = vrot.slane %v1143, 4
        %v1153 = vsel %vm988, 0.0, %v1152
        %v1154 = vrot.slane %v1147, 4
        %v1155 = vsel %vm988, 0.0, %v1154
        %v1156 = vrot.slane %v970, 4
        %v1157 = vsel %vm988, %v1156, %v946
        %v1158 = vrot.slane %v946, 4
        %v1159 = vsel %vm988, %v970, %v1158
        %v1161 = vunpack.c.l.s4 1983009808
        %v1162 = vunpack.c.0.s8 %v1161
        %v1163 = vperm.slane %v1157, %v1162
        %v1165 = vunpack.c.l.s4 1983009808
        %v1166 = vunpack.c.0.s8 %v1165
        %v1167 = vperm.slane %v1159, %v1166
        %v1168 = vrot.slane %v982, 4
        %v1169 = vsel %vm988, %v1168, %v958
        %v1170 = vrot.slane %v958, 4
        %v1171 = vsel %vm988, %v982, %v1170
        %v1173 = vunpack.c.l.s4 1983009808
        %v1174 = vunpack.c.0.s8 %v1173
        %v1175 = vperm.slane %v1169, %v1174
        %v1177 = vunpack.c.l.s4 1983009808
        %v1178 = vunpack.c.0.s8 %v1177
        %v1179 = vperm.slane %v1171, %v1178
        %v1180 = vrot.slane %v1175, 4
        %v1181 = vsel %vm988, %v1180, %v1163
        %v1182 = vrot.slane %v1163, 4
        %v1183 = vsel %vm988, %v1175, %v1182
        %v1185 = vunpack.c.l.s4 1934713408
        %v1186 = vunpack.c.0.s8 %v1185
        %v1187 = vperm.slane %v1181, %v1186
        %v1189 = vunpack.c.l.s4 1934713408
        %v1190 = vunpack.c.0.s8 %v1189
        %v1191 = vperm.slane %v1183, %v1190
        %v1192 = vrot.slane %v1179, 4
        %v1193 = vsel %vm988, %v1192, %v1167
        %v1194 = vrot.slane %v1167, 4
        %v1195 = vsel %vm988, %v1179, %v1194
        %v1197 = vunpack.c.l.s4 1934713408
        %v1198 = vunpack.c.0.s8 %v1197
        %v1199 = vperm.slane %v1193, %v1198
        %v1201 = vunpack.c.l.s4 1934713408
        %v1202 = vunpack.c.0.s8 %v1201
        %v1203 = vperm.slane %v1195, %v1202
        %v1204 = vrot.slane %v1187, 4
        %v1205 = vsel %vm988, 0.0, %v1204
        %v1206 = vrot.slane %v1191, 4
        %v1207 = vsel %vm988, 0.0, %v1206
        %v1208 = vrot.slane %v1199, 4
        %v1209 = vsel %vm988, 0.0, %v1208
        %v1210 = vrot.slane %v1203, 4
        %v1211 = vsel %vm988, 0.0, %v1210
        %v1212 = vsel %vm988, %v1038, %v1019
        %v1214 = vunpack.c.l.s4 1983009808
        %v1215 = vunpack.c.0.s8 %v1214
        %v1216 = vperm.slane %v1212, %v1215
        %v1217 = vrot.slane %v1039, 4
        %v1218 = vsel %vm988, %v1217, %v1037
        %v1220 = vunpack.c.l.s4 1983009808
        %v1221 = vunpack.c.0.s8 %v1220
        %v1222 = vperm.slane %v1218, %v1221
        %v1223 = vsel %vm988, %v1042, %v1031
        %v1225 = vunpack.c.l.s4 1983009808
        %v1226 = vunpack.c.0.s8 %v1225
        %v1227 = vperm.slane %v1223, %v1226
        %v1228 = vrot.slane %v1043, 4
        %v1229 = vsel %vm988, %v1228, %v1041
        %v1231 = vunpack.c.l.s4 1983009808
        %v1232 = vunpack.c.0.s8 %v1231
        %v1233 = vperm.slane %v1229, %v1232
        %v1234 = vrot.slane %v1222, 4
        %v1235 = vsel %vm988, %v1234, %v1216
        %v1236 = vrot.slane %v1216, 4
        %v1237 = vsel %vm988, %v1222, %v1236
        %v1239 = vunpack.c.l.s4 1934713408
        %v1240 = vunpack.c.0.s8 %v1239
        %v1241 = vperm.slane %v1235, %v1240
        %v1243 = vunpack.c.l.s4 1934713408
        %v1244 = vunpack.c.0.s8 %v1243
        %v1245 = vperm.slane %v1237, %v1244
        %v1246 = vrot.slane %v1233, 4
        %v1247 = vsel %vm988, %v1246, %v1227
        %v1248 = vrot.slane %v1227, 4
        %v1249 = vsel %vm988, %v1233, %v1248
        %v1251 = vunpack.c.l.s4 1934713408
        %v1252 = vunpack.c.0.s8 %v1251
        %v1253 = vperm.slane %v1247, %v1252
        %v1255 = vunpack.c.l.s4 1934713408
        %v1256 = vunpack.c.0.s8 %v1255
        %v1257 = vperm.slane %v1249, %v1256
        %v1258 = vrot.slane %v1253, 4
        %v1259 = vsel %vm988, %v1258, %v1241
        %v1260 = vrot.slane %v1241, 4
        %v1261 = vsel %vm988, %v1253, %v1260
        %v1262 = vrot.slane %v1257, 4
        %v1263 = vsel %vm988, %v1262, %v1245
        %v1264 = vrot.slane %v1245, 4
        %v1265 = vsel %vm988, %v1257, %v1264
        %v1266 = vsel %vm988, %v1094, %v1075
        %v1268 = vunpack.c.l.s4 1983009808
        %v1269 = vunpack.c.0.s8 %v1268
        %v1270 = vperm.slane %v1266, %v1269
        %v1271 = vrot.slane %v1095, 4
        %v1272 = vsel %vm988, %v1271, %v1093
        %v1274 = vunpack.c.l.s4 1983009808
        %v1275 = vunpack.c.0.s8 %v1274
        %v1276 = vperm.slane %v1272, %v1275
        %v1277 = vsel %vm988, %v1098, %v1087
        %v1279 = vunpack.c.l.s4 1983009808
        %v1280 = vunpack.c.0.s8 %v1279
        %v1281 = vperm.slane %v1277, %v1280
        %v1282 = vrot.slane %v1099, 4
        %v1283 = vsel %vm988, %v1282, %v1097
        %v1285 = vunpack.c.l.s4 1983009808
        %v1286 = vunpack.c.0.s8 %v1285
        %v1287 = vperm.slane %v1283, %v1286
        %v1288 = vrot.slane %v1276, 4
        %v1289 = vsel %vm988, %v1288, %v1270
        %v1290 = vrot.slane %v1270, 4
        %v1291 = vsel %vm988, %v1276, %v1290
        %v1293 = vunpack.c.l.s4 1934713408
        %v1294 = vunpack.c.0.s8 %v1293
        %v1295 = vperm.slane %v1289, %v1294
        %v1297 = vunpack.c.l.s4 1934713408
        %v1298 = vunpack.c.0.s8 %v1297
        %v1299 = vperm.slane %v1291, %v1298
        %v1300 = vrot.slane %v1287, 4
        %v1301 = vsel %vm988, %v1300, %v1281
        %v1302 = vrot.slane %v1281, 4
        %v1303 = vsel %vm988, %v1287, %v1302
        %v1305 = vunpack.c.l.s4 1934713408
        %v1306 = vunpack.c.0.s8 %v1305
        %v1307 = vperm.slane %v1301, %v1306
        %v1309 = vunpack.c.l.s4 1934713408
        %v1310 = vunpack.c.0.s8 %v1309
        %v1311 = vperm.slane %v1303, %v1310
        %v1312 = vrot.slane %v1307, 4
        %v1313 = vsel %vm988, %v1312, %v1295
        %v1314 = vrot.slane %v1295, 4
        %v1315 = vsel %vm988, %v1307, %v1314
        %v1316 = vrot.slane %v1311, 4
        %v1317 = vsel %vm988, %v1316, %v1299
        %v1318 = vrot.slane %v1299, 4
        %v1319 = vsel %vm988, %v1311, %v1318
        %v1320 = vsel %vm988, %v1150, %v1131
        %v1322 = vunpack.c.l.s4 1983009808
        %v1323 = vunpack.c.0.s8 %v1322
        %v1324 = vperm.slane %v1320, %v1323
        %v1325 = vrot.slane %v1151, 4
        %v1326 = vsel %vm988, %v1325, %v1149
        %v1328 = vunpack.c.l.s4 1983009808
        %v1329 = vunpack.c.0.s8 %v1328
        %v1330 = vperm.slane %v1326, %v1329
        %v1331 = vsel %vm988, %v1154, %v1143
        %v1333 = vunpack.c.l.s4 1983009808
        %v1334 = vunpack.c.0.s8 %v1333
        %v1335 = vperm.slane %v1331, %v1334
        %v1336 = vrot.slane %v1155, 4
        %v1337 = vsel %vm988, %v1336, %v1153
        %v1339 = vunpack.c.l.s4 1983009808
        %v1340 = vunpack.c.0.s8 %v1339
        %v1341 = vperm.slane %v1337, %v1340
        %v1342 = vrot.slane %v1330, 4
        %v1343 = vsel %vm988, %v1342, %v1324
        %v1344 = vrot.slane %v1324, 4
        %v1345 = vsel %vm988, %v1330, %v1344
        %v1347 = vunpack.c.l.s4 1934713408
        %v1348 = vunpack.c.0.s8 %v1347
        %v1349 = vperm.slane %v1343, %v1348
        %v1351 = vunpack.c.l.s4 1934713408
        %v1352 = vunpack.c.0.s8 %v1351
        %v1353 = vperm.slane %v1345, %v1352
        %v1354 = vrot.slane %v1341, 4
        %v1355 = vsel %vm988, %v1354, %v1335
        %v1356 = vrot.slane %v1335, 4
        %v1357 = vsel %vm988, %v1341, %v1356
        %v1359 = vunpack.c.l.s4 1934713408
        %v1360 = vunpack.c.0.s8 %v1359
        %v1361 = vperm.slane %v1355, %v1360
        %v1363 = vunpack.c.l.s4 1934713408
        %v1364 = vunpack.c.0.s8 %v1363
        %v1365 = vperm.slane %v1357, %v1364
        %v1366 = vrot.slane %v1361, 4
        %v1367 = vsel %vm988, %v1366, %v1349
        %v1368 = vrot.slane %v1349, 4
        %v1369 = vsel %vm988, %v1361, %v1368
        %v1370 = vrot.slane %v1365, 4
        %v1371 = vsel %vm988, %v1370, %v1353
        %v1372 = vrot.slane %v1353, 4
        %v1373 = vsel %vm988, %v1365, %v1372
        %v1374 = vsel %vm988, %v1206, %v1187
        %v1376 = vunpack.c.l.s4 1983009808
        %v1377 = vunpack.c.0.s8 %v1376
        %v1378 = vperm.slane %v1374, %v1377
        %v1379 = vrot.slane %v1207, 4
        %v1380 = vsel %vm988, %v1379, %v1205
        %v1382 = vunpack.c.l.s4 1983009808
        %v1383 = vunpack.c.0.s8 %v1382
        %v1384 = vperm.slane %v1380, %v1383
        %v1385 = vsel %vm988, %v1210, %v1199
        %v1387 = vunpack.c.l.s4 1983009808
        %v1388 = vunpack.c.0.s8 %v1387
        %v1389 = vperm.slane %v1385, %v1388
        %v1390 = vrot.slane %v1211, 4
        %v1391 = vsel %vm988, %v1390, %v1209
        %v1393 = vunpack.c.l.s4 1983009808
        %v1394 = vunpack.c.0.s8 %v1393
        %v1395 = vperm.slane %v1391, %v1394
        %v1396 = vrot.slane %v1384, 4
        %v1397 = vsel %vm988, %v1396, %v1378
        %v1398 = vrot.slane %v1378, 4
        %v1399 = vsel %vm988, %v1384, %v1398
        %v1401 = vunpack.c.l.s4 1934713408
        %v1402 = vunpack.c.0.s8 %v1401
        %v1403 = vperm.slane %v1397, %v1402
        %v1405 = vunpack.c.l.s4 1934713408
        %v1406 = vunpack.c.0.s8 %v1405
        %v1407 = vperm.slane %v1399, %v1406
        %v1408 = vrot.slane %v1395, 4
        %v1409 = vsel %vm988, %v1408, %v1389
        %v1410 = vrot.slane %v1389, 4
        %v1411 = vsel %vm988, %v1395, %v1410
        %v1413 = vunpack.c.l.s4 1934713408
        %v1414 = vunpack.c.0.s8 %v1413
        %v1415 = vperm.slane %v1409, %v1414
        %v1417 = vunpack.c.l.s4 1934713408
        %v1418 = vunpack.c.0.s8 %v1417
        %v1419 = vperm.slane %v1411, %v1418
        %v1420 = vrot.slane %v1415, 4
        %v1421 = vsel %vm988, %v1420, %v1403
        %v1422 = vrot.slane %v1403, 4
        %v1423 = vsel %vm988, %v1415, %v1422
        %v1424 = vrot.slane %v1419, 4
        %v1425 = vsel %vm988, %v1424, %v1407
        %v1426 = vrot.slane %v1407, 4
        %v1427 = vsel %vm988, %v1419, %v1426
        %1432 = vrot.lane.b32.xlu0 %v915, 96
        %v1433 = vpop.permute.xlu0 %1432
        %1434 = vrot.lane.b32.xlu0 %v917, 96
        %v1435 = vpop.permute.xlu0 %1434
        %1436 = vrot.lane.b32.xlu0 %v920, 96
        %v1437 = vpop.permute.xlu0 %1436
        %1438 = vrot.lane.b32.xlu0 %v922, 96
        %v1439 = vpop.permute.xlu0 %1438
        %1444 = vrot.lane.b32.xlu0 %v915, 64
        %v1445 = vpop.permute.xlu0 %1444
        %1446 = vrot.lane.b32.xlu0 %v917, 64
        %v1447 = vpop.permute.xlu0 %1446
        %1448 = vrot.lane.b32.xlu0 %v920, 64
        %v1449 = vpop.permute.xlu0 %1448
        %1450 = vrot.lane.b32.xlu0 %v922, 64
        %v1451 = vpop.permute.xlu0 %1450
        %1456 = vrot.lane.b32.xlu0 %v915, 32
        %v1457 = vpop.permute.xlu0 %1456
        %1458 = vrot.lane.b32.xlu0 %v917, 32
        %v1459 = vpop.permute.xlu0 %1458
        %1460 = vrot.lane.b32.xlu0 %v920, 32
        %v1461 = vpop.permute.xlu0 %1460
        %1462 = vrot.lane.b32.xlu0 %v922, 32
        %v1463 = vpop.permute.xlu0 %1462
        %v1468 = vrot.slane %v1445, 4
        %v1469 = vsel %vm988, %v1468, %v915
        %v1470 = vrot.slane %v915, 4
        %v1471 = vsel %vm988, %v1445, %v1470
        %v1473 = vunpack.c.l.s4 1983009808
        %v1474 = vunpack.c.0.s8 %v1473
        %v1475 = vperm.slane %v1469, %v1474
        %v1477 = vunpack.c.l.s4 1983009808
        %v1478 = vunpack.c.0.s8 %v1477
        %v1479 = vperm.slane %v1471, %v1478
        %v1480 = vrot.slane %v1457, 4
        %v1481 = vsel %vm988, %v1480, %v1433
        %v1482 = vrot.slane %v1433, 4
        %v1483 = vsel %vm988, %v1457, %v1482
        %v1485 = vunpack.c.l.s4 1983009808
        %v1486 = vunpack.c.0.s8 %v1485
        %v1487 = vperm.slane %v1481, %v1486
        %v1489 = vunpack.c.l.s4 1983009808
        %v1490 = vunpack.c.0.s8 %v1489
        %v1491 = vperm.slane %v1483, %v1490
        %v1492 = vrot.slane %v1487, 4
        %v1493 = vsel %vm988, %v1492, %v1475
        %v1494 = vrot.slane %v1475, 4
        %v1495 = vsel %vm988, %v1487, %v1494
        %v1497 = vunpack.c.l.s4 1934713408
        %v1498 = vunpack.c.0.s8 %v1497
        %v1499 = vperm.slane %v1493, %v1498
        %v1501 = vunpack.c.l.s4 1934713408
        %v1502 = vunpack.c.0.s8 %v1501
        %v1503 = vperm.slane %v1495, %v1502
        %v1504 = vrot.slane %v1491, 4
        %v1505 = vsel %vm988, %v1504, %v1479
        %v1506 = vrot.slane %v1479, 4
        %v1507 = vsel %vm988, %v1491, %v1506
        %v1509 = vunpack.c.l.s4 1934713408
        %v1510 = vunpack.c.0.s8 %v1509
        %v1511 = vperm.slane %v1505, %v1510
        %v1513 = vunpack.c.l.s4 1934713408
        %v1514 = vunpack.c.0.s8 %v1513
        %v1515 = vperm.slane %v1507, %v1514
        %v1516 = vrot.slane %v1499, 4
        %v1517 = vsel %vm988, 0.0, %v1516
        %v1518 = vrot.slane %v1503, 4
        %v1519 = vsel %vm988, 0.0, %v1518
        %v1520 = vrot.slane %v1511, 4
        %v1521 = vsel %vm988, 0.0, %v1520
        %v1522 = vrot.slane %v1515, 4
        %v1523 = vsel %vm988, 0.0, %v1522
        %v1524 = vrot.slane %v1447, 4
        %v1525 = vsel %vm988, %v1524, %v917
        %v1526 = vrot.slane %v917, 4
        %v1527 = vsel %vm988, %v1447, %v1526
        %v1529 = vunpack.c.l.s4 1983009808
        %v1530 = vunpack.c.0.s8 %v1529
        %v1531 = vperm.slane %v1525, %v1530
        %v1533 = vunpack.c.l.s4 1983009808
        %v1534 = vunpack.c.0.s8 %v1533
        %v1535 = vperm.slane %v1527, %v1534
        %v1536 = vrot.slane %v1459, 4
        %v1537 = vsel %vm988, %v1536, %v1435
        %v1538 = vrot.slane %v1435, 4
        %v1539 = vsel %vm988, %v1459, %v1538
        %v1541 = vunpack.c.l.s4 1983009808
        %v1542 = vunpack.c.0.s8 %v1541
        %v1543 = vperm.slane %v1537, %v1542
        %v1545 = vunpack.c.l.s4 1983009808
        %v1546 = vunpack.c.0.s8 %v1545
        %v1547 = vperm.slane %v1539, %v1546
        %v1548 = vrot.slane %v1543, 4
        %v1549 = vsel %vm988, %v1548, %v1531
        %v1550 = vrot.slane %v1531, 4
        %v1551 = vsel %vm988, %v1543, %v1550
        %v1553 = vunpack.c.l.s4 1934713408
        %v1554 = vunpack.c.0.s8 %v1553
        %v1555 = vperm.slane %v1549, %v1554
        %v1557 = vunpack.c.l.s4 1934713408
        %v1558 = vunpack.c.0.s8 %v1557
        %v1559 = vperm.slane %v1551, %v1558
        %v1560 = vrot.slane %v1547, 4
        %v1561 = vsel %vm988, %v1560, %v1535
        %v1562 = vrot.slane %v1535, 4
        %v1563 = vsel %vm988, %v1547, %v1562
        %v1565 = vunpack.c.l.s4 1934713408
        %v1566 = vunpack.c.0.s8 %v1565
        %v1567 = vperm.slane %v1561, %v1566
        %v1569 = vunpack.c.l.s4 1934713408
        %v1570 = vunpack.c.0.s8 %v1569
        %v1571 = vperm.slane %v1563, %v1570
        %v1572 = vrot.slane %v1555, 4
        %v1573 = vsel %vm988, 0.0, %v1572
        %v1574 = vrot.slane %v1559, 4
        %v1575 = vsel %vm988, 0.0, %v1574
        %v1576 = vrot.slane %v1567, 4
        %v1577 = vsel %vm988, 0.0, %v1576
        %v1578 = vrot.slane %v1571, 4
        %v1579 = vsel %vm988, 0.0, %v1578
        %v1580 = vrot.slane %v1449, 4
        %v1581 = vsel %vm988, %v1580, %v920
        %v1582 = vrot.slane %v920, 4
        %v1583 = vsel %vm988, %v1449, %v1582
        %v1585 = vunpack.c.l.s4 1983009808
        %v1586 = vunpack.c.0.s8 %v1585
        %v1587 = vperm.slane %v1581, %v1586
        %v1589 = vunpack.c.l.s4 1983009808
        %v1590 = vunpack.c.0.s8 %v1589
        %v1591 = vperm.slane %v1583, %v1590
        %v1592 = vrot.slane %v1461, 4
        %v1593 = vsel %vm988, %v1592, %v1437
        %v1594 = vrot.slane %v1437, 4
        %v1595 = vsel %vm988, %v1461, %v1594
        %v1597 = vunpack.c.l.s4 1983009808
        %v1598 = vunpack.c.0.s8 %v1597
        %v1599 = vperm.slane %v1593, %v1598
        %v1601 = vunpack.c.l.s4 1983009808
        %v1602 = vunpack.c.0.s8 %v1601
        %v1603 = vperm.slane %v1595, %v1602
        %v1604 = vrot.slane %v1599, 4
        %v1605 = vsel %vm988, %v1604, %v1587
        %v1606 = vrot.slane %v1587, 4
        %v1607 = vsel %vm988, %v1599, %v1606
        %v1609 = vunpack.c.l.s4 1934713408
        %v1610 = vunpack.c.0.s8 %v1609
        %v1611 = vperm.slane %v1605, %v1610
        %v1613 = vunpack.c.l.s4 1934713408
        %v1614 = vunpack.c.0.s8 %v1613
        %v1615 = vperm.slane %v1607, %v1614
        %v1616 = vrot.slane %v1603, 4
        %v1617 = vsel %vm988, %v1616, %v1591
        %v1618 = vrot.slane %v1591, 4
        %v1619 = vsel %vm988, %v1603, %v1618
        %v1621 = vunpack.c.l.s4 1934713408
        %v1622 = vunpack.c.0.s8 %v1621
        %v1623 = vperm.slane %v1617, %v1622
        %v1625 = vunpack.c.l.s4 1934713408
        %v1626 = vunpack.c.0.s8 %v1625
        %v1627 = vperm.slane %v1619, %v1626
        %v1628 = vrot.slane %v1611, 4
        %v1629 = vsel %vm988, 0.0, %v1628
        %v1630 = vrot.slane %v1615, 4
        %v1631 = vsel %vm988, 0.0, %v1630
        %v1632 = vrot.slane %v1623, 4
        %v1633 = vsel %vm988, 0.0, %v1632
        %v1634 = vrot.slane %v1627, 4
        %v1635 = vsel %vm988, 0.0, %v1634
        %v1636 = vrot.slane %v1451, 4
        %v1637 = vsel %vm988, %v1636, %v922
        %v1638 = vrot.slane %v922, 4
        %v1639 = vsel %vm988, %v1451, %v1638
        %v1641 = vunpack.c.l.s4 1983009808
        %v1642 = vunpack.c.0.s8 %v1641
        %v1643 = vperm.slane %v1637, %v1642
        %v1645 = vunpack.c.l.s4 1983009808
        %v1646 = vunpack.c.0.s8 %v1645
        %v1647 = vperm.slane %v1639, %v1646
        %v1648 = vrot.slane %v1463, 4
        %v1649 = vsel %vm988, %v1648, %v1439
        %v1650 = vrot.slane %v1439, 4
        %v1651 = vsel %vm988, %v1463, %v1650
        %v1653 = vunpack.c.l.s4 1983009808
        %v1654 = vunpack.c.0.s8 %v1653
        %v1655 = vperm.slane %v1649, %v1654
        %v1657 = vunpack.c.l.s4 1983009808
        %v1658 = vunpack.c.0.s8 %v1657
        %v1659 = vperm.slane %v1651, %v1658
        %v1660 = vrot.slane %v1655, 4
        %v1661 = vsel %vm988, %v1660, %v1643
        %v1662 = vrot.slane %v1643, 4
        %v1663 = vsel %vm988, %v1655, %v1662
        %v1665 = vunpack.c.l.s4 1934713408
        %v1666 = vunpack.c.0.s8 %v1665
        %v1667 = vperm.slane %v1661, %v1666
        %v1669 = vunpack.c.l.s4 1934713408
        %v1670 = vunpack.c.0.s8 %v1669
        %v1671 = vperm.slane %v1663, %v1670
        %v1672 = vrot.slane %v1659, 4
        %v1673 = vsel %vm988, %v1672, %v1647
        %v1674 = vrot.slane %v1647, 4
        %v1675 = vsel %vm988, %v1659, %v1674
        %v1677 = vunpack.c.l.s4 1934713408
        %v1678 = vunpack.c.0.s8 %v1677
        %v1679 = vperm.slane %v1673, %v1678
        %v1681 = vunpack.c.l.s4 1934713408
        %v1682 = vunpack.c.0.s8 %v1681
        %v1683 = vperm.slane %v1675, %v1682
        %v1684 = vrot.slane %v1667, 4
        %v1685 = vsel %vm988, 0.0, %v1684
        %v1686 = vrot.slane %v1671, 4
        %v1687 = vsel %vm988, 0.0, %v1686
        %v1688 = vrot.slane %v1679, 4
        %v1689 = vsel %vm988, 0.0, %v1688
        %v1690 = vrot.slane %v1683, 4
        %v1691 = vsel %vm988, 0.0, %v1690
        %v1692 = vsel %vm988, %v1518, %v1499
        %v1694 = vunpack.c.l.s4 1983009808
        %v1695 = vunpack.c.0.s8 %v1694
        %v1696 = vperm.slane %v1692, %v1695
        %v1697 = vrot.slane %v1519, 4
        %v1698 = vsel %vm988, %v1697, %v1517
        %v1700 = vunpack.c.l.s4 1983009808
        %v1701 = vunpack.c.0.s8 %v1700
        %v1702 = vperm.slane %v1698, %v1701
        %v1703 = vsel %vm988, %v1522, %v1511
        %v1705 = vunpack.c.l.s4 1983009808
        %v1706 = vunpack.c.0.s8 %v1705
        %v1707 = vperm.slane %v1703, %v1706
        %v1708 = vrot.slane %v1523, 4
        %v1709 = vsel %vm988, %v1708, %v1521
        %v1711 = vunpack.c.l.s4 1983009808
        %v1712 = vunpack.c.0.s8 %v1711
        %v1713 = vperm.slane %v1709, %v1712
        %v1714 = vrot.slane %v1702, 4
        %v1715 = vsel %vm988, %v1714, %v1696
        %v1716 = vrot.slane %v1696, 4
        %v1717 = vsel %vm988, %v1702, %v1716
        %v1719 = vunpack.c.l.s4 1934713408
        %v1720 = vunpack.c.0.s8 %v1719
        %v1721 = vperm.slane %v1715, %v1720
        %v1723 = vunpack.c.l.s4 1934713408
        %v1724 = vunpack.c.0.s8 %v1723
        %v1725 = vperm.slane %v1717, %v1724
        %v1726 = vrot.slane %v1713, 4
        %v1727 = vsel %vm988, %v1726, %v1707
        %v1728 = vrot.slane %v1707, 4
        %v1729 = vsel %vm988, %v1713, %v1728
        %v1731 = vunpack.c.l.s4 1934713408
        %v1732 = vunpack.c.0.s8 %v1731
        %v1733 = vperm.slane %v1727, %v1732
        %v1735 = vunpack.c.l.s4 1934713408
        %v1736 = vunpack.c.0.s8 %v1735
        %v1737 = vperm.slane %v1729, %v1736
        %v1738 = vrot.slane %v1733, 4
        %v1739 = vsel %vm988, %v1738, %v1721
        %v1740 = vrot.slane %v1721, 4
        %v1741 = vsel %vm988, %v1733, %v1740
        %v1742 = vrot.slane %v1737, 4
        %v1743 = vsel %vm988, %v1742, %v1725
        %v1744 = vrot.slane %v1725, 4
        %v1745 = vsel %vm988, %v1737, %v1744
        %v1746 = vsel %vm988, %v1574, %v1555
        %v1748 = vunpack.c.l.s4 1983009808
        %v1749 = vunpack.c.0.s8 %v1748
        %v1750 = vperm.slane %v1746, %v1749
        %v1751 = vrot.slane %v1575, 4
        %v1752 = vsel %vm988, %v1751, %v1573
        %v1754 = vunpack.c.l.s4 1983009808
        %v1755 = vunpack.c.0.s8 %v1754
        %v1756 = vperm.slane %v1752, %v1755
        %v1757 = vsel %vm988, %v1578, %v1567
        %v1759 = vunpack.c.l.s4 1983009808
        %v1760 = vunpack.c.0.s8 %v1759
        %v1761 = vperm.slane %v1757, %v1760
        %v1762 = vrot.slane %v1579, 4
        %v1763 = vsel %vm988, %v1762, %v1577
        %v1765 = vunpack.c.l.s4 1983009808
        %v1766 = vunpack.c.0.s8 %v1765
        %v1767 = vperm.slane %v1763, %v1766
        %v1768 = vrot.slane %v1756, 4
        %v1769 = vsel %vm988, %v1768, %v1750
        %v1770 = vrot.slane %v1750, 4
        %v1771 = vsel %vm988, %v1756, %v1770
        %v1773 = vunpack.c.l.s4 1934713408
        %v1774 = vunpack.c.0.s8 %v1773
        %v1775 = vperm.slane %v1769, %v1774
        %v1777 = vunpack.c.l.s4 1934713408
        %v1778 = vunpack.c.0.s8 %v1777
        %v1779 = vperm.slane %v1771, %v1778
        %v1780 = vrot.slane %v1767, 4
        %v1781 = vsel %vm988, %v1780, %v1761
        %v1782 = vrot.slane %v1761, 4
        %v1783 = vsel %vm988, %v1767, %v1782
        %v1785 = vunpack.c.l.s4 1934713408
        %v1786 = vunpack.c.0.s8 %v1785
        %v1787 = vperm.slane %v1781, %v1786
        %v1789 = vunpack.c.l.s4 1934713408
        %v1790 = vunpack.c.0.s8 %v1789
        %v1791 = vperm.slane %v1783, %v1790
        %v1792 = vrot.slane %v1787, 4
        %v1793 = vsel %vm988, %v1792, %v1775
        %v1794 = vrot.slane %v1775, 4
        %v1795 = vsel %vm988, %v1787, %v1794
        %v1796 = vrot.slane %v1791, 4
        %v1797 = vsel %vm988, %v1796, %v1779
        %v1798 = vrot.slane %v1779, 4
        %v1799 = vsel %vm988, %v1791, %v1798
        %v1800 = vsel %vm988, %v1630, %v1611
        %v1802 = vunpack.c.l.s4 1983009808
        %v1803 = vunpack.c.0.s8 %v1802
        %v1804 = vperm.slane %v1800, %v1803
        %v1805 = vrot.slane %v1631, 4
        %v1806 = vsel %vm988, %v1805, %v1629
        %v1808 = vunpack.c.l.s4 1983009808
        %v1809 = vunpack.c.0.s8 %v1808
        %v1810 = vperm.slane %v1806, %v1809
        %v1811 = vsel %vm988, %v1634, %v1623
        %v1813 = vunpack.c.l.s4 1983009808
        %v1814 = vunpack.c.0.s8 %v1813
        %v1815 = vperm.slane %v1811, %v1814
        %v1816 = vrot.slane %v1635, 4
        %v1817 = vsel %vm988, %v1816, %v1633
        %v1819 = vunpack.c.l.s4 1983009808
        %v1820 = vunpack.c.0.s8 %v1819
        %v1821 = vperm.slane %v1817, %v1820
        %v1822 = vrot.slane %v1810, 4
        %v1823 = vsel %vm988, %v1822, %v1804
        %v1824 = vrot.slane %v1804, 4
        %v1825 = vsel %vm988, %v1810, %v1824
        %v1827 = vunpack.c.l.s4 1934713408
        %v1828 = vunpack.c.0.s8 %v1827
        %v1829 = vperm.slane %v1823, %v1828
        %v1831 = vunpack.c.l.s4 1934713408
        %v1832 = vunpack.c.0.s8 %v1831
        %v1833 = vperm.slane %v1825, %v1832
        %v1834 = vrot.slane %v1821, 4
        %v1835 = vsel %vm988, %v1834, %v1815
        %v1836 = vrot.slane %v1815, 4
        %v1837 = vsel %vm988, %v1821, %v1836
        %v1839 = vunpack.c.l.s4 1934713408
        %v1840 = vunpack.c.0.s8 %v1839
        %v1841 = vperm.slane %v1835, %v1840
        %v1843 = vunpack.c.l.s4 1934713408
        %v1844 = vunpack.c.0.s8 %v1843
        %v1845 = vperm.slane %v1837, %v1844
        %v1846 = vrot.slane %v1841, 4
        %v1847 = vsel %vm988, %v1846, %v1829
        %v1848 = vrot.slane %v1829, 4
        %v1849 = vsel %vm988, %v1841, %v1848
        %v1850 = vrot.slane %v1845, 4
        %v1851 = vsel %vm988, %v1850, %v1833
        %v1852 = vrot.slane %v1833, 4
        %v1853 = vsel %vm988, %v1845, %v1852
        %v1854 = vsel %vm988, %v1686, %v1667
        %v1856 = vunpack.c.l.s4 1983009808
        %v1857 = vunpack.c.0.s8 %v1856
        %v1858 = vperm.slane %v1854, %v1857
        %v1859 = vrot.slane %v1687, 4
        %v1860 = vsel %vm988, %v1859, %v1685
        %v1862 = vunpack.c.l.s4 1983009808
        %v1863 = vunpack.c.0.s8 %v1862
        %v1864 = vperm.slane %v1860, %v1863
        %v1865 = vsel %vm988, %v1690, %v1679
        %v1867 = vunpack.c.l.s4 1983009808
        %v1868 = vunpack.c.0.s8 %v1867
        %v1869 = vperm.slane %v1865, %v1868
        %v1870 = vrot.slane %v1691, 4
        %v1871 = vsel %vm988, %v1870, %v1689
        %v1873 = vunpack.c.l.s4 1983009808
        %v1874 = vunpack.c.0.s8 %v1873
        %v1875 = vperm.slane %v1871, %v1874
        %v1876 = vrot.slane %v1864, 4
        %v1877 = vsel %vm988, %v1876, %v1858
        %v1878 = vrot.slane %v1858, 4
        %v1879 = vsel %vm988, %v1864, %v1878
        %v1881 = vunpack.c.l.s4 1934713408
        %v1882 = vunpack.c.0.s8 %v1881
        %v1883 = vperm.slane %v1877, %v1882
        %v1885 = vunpack.c.l.s4 1934713408
        %v1886 = vunpack.c.0.s8 %v1885
        %v1887 = vperm.slane %v1879, %v1886
        %v1888 = vrot.slane %v1875, 4
        %v1889 = vsel %vm988, %v1888, %v1869
        %v1890 = vrot.slane %v1869, 4
        %v1891 = vsel %vm988, %v1875, %v1890
        %v1893 = vunpack.c.l.s4 1934713408
        %v1894 = vunpack.c.0.s8 %v1893
        %v1895 = vperm.slane %v1889, %v1894
        %v1897 = vunpack.c.l.s4 1934713408
        %v1898 = vunpack.c.0.s8 %v1897
        %v1899 = vperm.slane %v1891, %v1898
        %v1900 = vrot.slane %v1895, 4
        %v1901 = vsel %vm988, %v1900, %v1883
        %v1902 = vrot.slane %v1883, 4
        %v1903 = vsel %vm988, %v1895, %v1902
        %v1904 = vrot.slane %v1899, 4
        %v1905 = vsel %vm988, %v1904, %v1887
        %v1906 = vrot.slane %v1887, 4
        %v1907 = vsel %vm988, %v1899, %v1906
        %1912 = vrot.lane.b32.xlu0 %v934, 96
        %v1913 = vpop.permute.xlu0 %1912
        %1914 = vrot.lane.b32.xlu0 %v936, 96
        %v1915 = vpop.permute.xlu0 %1914
        %1916 = vrot.lane.b32.xlu0 %v939, 96
        %v1917 = vpop.permute.xlu0 %1916
        %1918 = vrot.lane.b32.xlu0 %v941, 96
        %v1919 = vpop.permute.xlu0 %1918
        %1924 = vrot.lane.b32.xlu0 %v934, 64
        %v1925 = vpop.permute.xlu0 %1924
        %1926 = vrot.lane.b32.xlu0 %v936, 64
        %v1927 = vpop.permute.xlu0 %1926
        %1928 = vrot.lane.b32.xlu0 %v939, 64
        %v1929 = vpop.permute.xlu0 %1928
        %1930 = vrot.lane.b32.xlu0 %v941, 64
        %v1931 = vpop.permute.xlu0 %1930
        %1936 = vrot.lane.b32.xlu0 %v934, 32
        %v1937 = vpop.permute.xlu0 %1936
        %1938 = vrot.lane.b32.xlu0 %v936, 32
        %v1939 = vpop.permute.xlu0 %1938
        %1940 = vrot.lane.b32.xlu0 %v939, 32
        %v1941 = vpop.permute.xlu0 %1940
        %1942 = vrot.lane.b32.xlu0 %v941, 32
        %v1943 = vpop.permute.xlu0 %1942
        %v1948 = vrot.slane %v1925, 4
        %v1949 = vsel %vm988, %v1948, %v934
        %v1950 = vrot.slane %v934, 4
        %v1951 = vsel %vm988, %v1925, %v1950
        %v1953 = vunpack.c.l.s4 1983009808
        %v1954 = vunpack.c.0.s8 %v1953
        %v1955 = vperm.slane %v1949, %v1954
        %v1957 = vunpack.c.l.s4 1983009808
        %v1958 = vunpack.c.0.s8 %v1957
        %v1959 = vperm.slane %v1951, %v1958
        %v1960 = vrot.slane %v1937, 4
        %v1961 = vsel %vm988, %v1960, %v1913
        %v1962 = vrot.slane %v1913, 4
        %v1963 = vsel %vm988, %v1937, %v1962
        %v1965 = vunpack.c.l.s4 1983009808
        %v1966 = vunpack.c.0.s8 %v1965
        %v1967 = vperm.slane %v1961, %v1966
        %v1969 = vunpack.c.l.s4 1983009808
        %v1970 = vunpack.c.0.s8 %v1969
        %v1971 = vperm.slane %v1963, %v1970
        %v1972 = vrot.slane %v1967, 4
        %v1973 = vsel %vm988, %v1972, %v1955
        %v1974 = vrot.slane %v1955, 4
        %v1975 = vsel %vm988, %v1967, %v1974
        %v1977 = vunpack.c.l.s4 1934713408
        %v1978 = vunpack.c.0.s8 %v1977
        %v1979 = vperm.slane %v1973, %v1978
        %v1981 = vunpack.c.l.s4 1934713408
        %v1982 = vunpack.c.0.s8 %v1981
        %v1983 = vperm.slane %v1975, %v1982
        %v1984 = vrot.slane %v1971, 4
        %v1985 = vsel %vm988, %v1984, %v1959
        %v1986 = vrot.slane %v1959, 4
        %v1987 = vsel %vm988, %v1971, %v1986
        %v1989 = vunpack.c.l.s4 1934713408
        %v1990 = vunpack.c.0.s8 %v1989
        %v1991 = vperm.slane %v1985, %v1990
        %v1993 = vunpack.c.l.s4 1934713408
        %v1994 = vunpack.c.0.s8 %v1993
        %v1995 = vperm.slane %v1987, %v1994
        %v1996 = vrot.slane %v1979, 4
        %v1997 = vsel %vm988, 0.0, %v1996
        %v1998 = vrot.slane %v1983, 4
        %v1999 = vsel %vm988, 0.0, %v1998
        %v2000 = vrot.slane %v1991, 4
        %v2001 = vsel %vm988, 0.0, %v2000
        %v2002 = vrot.slane %v1995, 4
        %v2003 = vsel %vm988, 0.0, %v2002
        %v2004 = vrot.slane %v1927, 4
        %v2005 = vsel %vm988, %v2004, %v936
        %v2006 = vrot.slane %v936, 4
        %v2007 = vsel %vm988, %v1927, %v2006
        %v2009 = vunpack.c.l.s4 1983009808
        %v2010 = vunpack.c.0.s8 %v2009
        %v2011 = vperm.slane %v2005, %v2010
        %v2013 = vunpack.c.l.s4 1983009808
        %v2014 = vunpack.c.0.s8 %v2013
        %v2015 = vperm.slane %v2007, %v2014
        %v2016 = vrot.slane %v1939, 4
        %v2017 = vsel %vm988, %v2016, %v1915
        %v2018 = vrot.slane %v1915, 4
        %v2019 = vsel %vm988, %v1939, %v2018
        %v2021 = vunpack.c.l.s4 1983009808
        %v2022 = vunpack.c.0.s8 %v2021
        %v2023 = vperm.slane %v2017, %v2022
        %v2025 = vunpack.c.l.s4 1983009808
        %v2026 = vunpack.c.0.s8 %v2025
        %v2027 = vperm.slane %v2019, %v2026
        %v2028 = vrot.slane %v2023, 4
        %v2029 = vsel %vm988, %v2028, %v2011
        %v2030 = vrot.slane %v2011, 4
        %v2031 = vsel %vm988, %v2023, %v2030
        %v2033 = vunpack.c.l.s4 1934713408
        %v2034 = vunpack.c.0.s8 %v2033
        %v2035 = vperm.slane %v2029, %v2034
        %v2037 = vunpack.c.l.s4 1934713408
        %v2038 = vunpack.c.0.s8 %v2037
        %v2039 = vperm.slane %v2031, %v2038
        %v2040 = vrot.slane %v2027, 4
        %v2041 = vsel %vm988, %v2040, %v2015
        %v2042 = vrot.slane %v2015, 4
        %v2043 = vsel %vm988, %v2027, %v2042
        %v2045 = vunpack.c.l.s4 1934713408
        %v2046 = vunpack.c.0.s8 %v2045
        %v2047 = vperm.slane %v2041, %v2046
        %v2049 = vunpack.c.l.s4 1934713408
        %v2050 = vunpack.c.0.s8 %v2049
        %v2051 = vperm.slane %v2043, %v2050
        %v2052 = vrot.slane %v2035, 4
        %v2053 = vsel %vm988, 0.0, %v2052
        %v2054 = vrot.slane %v2039, 4
        %v2055 = vsel %vm988, 0.0, %v2054
        %v2056 = vrot.slane %v2047, 4
        %v2057 = vsel %vm988, 0.0, %v2056
        %v2058 = vrot.slane %v2051, 4
        %v2059 = vsel %vm988, 0.0, %v2058
        %v2060 = vrot.slane %v1929, 4
        %v2061 = vsel %vm988, %v2060, %v939
        %v2062 = vrot.slane %v939, 4
        %v2063 = vsel %vm988, %v1929, %v2062
        %v2065 = vunpack.c.l.s4 1983009808
        %v2066 = vunpack.c.0.s8 %v2065
        %v2067 = vperm.slane %v2061, %v2066
        %v2069 = vunpack.c.l.s4 1983009808
        %v2070 = vunpack.c.0.s8 %v2069
        %v2071 = vperm.slane %v2063, %v2070
        %v2072 = vrot.slane %v1941, 4
        %v2073 = vsel %vm988, %v2072, %v1917
        %v2074 = vrot.slane %v1917, 4
        %v2075 = vsel %vm988, %v1941, %v2074
        %v2077 = vunpack.c.l.s4 1983009808
        %v2078 = vunpack.c.0.s8 %v2077
        %v2079 = vperm.slane %v2073, %v2078
        %v2081 = vunpack.c.l.s4 1983009808
        %v2082 = vunpack.c.0.s8 %v2081
        %v2083 = vperm.slane %v2075, %v2082
        %v2084 = vrot.slane %v2079, 4
        %v2085 = vsel %vm988, %v2084, %v2067
        %v2086 = vrot.slane %v2067, 4
        %v2087 = vsel %vm988, %v2079, %v2086
        %v2089 = vunpack.c.l.s4 1934713408
        %v2090 = vunpack.c.0.s8 %v2089
        %v2091 = vperm.slane %v2085, %v2090
        %v2093 = vunpack.c.l.s4 1934713408
        %v2094 = vunpack.c.0.s8 %v2093
        %v2095 = vperm.slane %v2087, %v2094
        %v2096 = vrot.slane %v2083, 4
        %v2097 = vsel %vm988, %v2096, %v2071
        %v2098 = vrot.slane %v2071, 4
        %v2099 = vsel %vm988, %v2083, %v2098
        %v2101 = vunpack.c.l.s4 1934713408
        %v2102 = vunpack.c.0.s8 %v2101
        %v2103 = vperm.slane %v2097, %v2102
        %v2105 = vunpack.c.l.s4 1934713408
        %v2106 = vunpack.c.0.s8 %v2105
        %v2107 = vperm.slane %v2099, %v2106
        %v2108 = vrot.slane %v2091, 4
        %v2109 = vsel %vm988, 0.0, %v2108
        %v2110 = vrot.slane %v2095, 4
        %v2111 = vsel %vm988, 0.0, %v2110
        %v2112 = vrot.slane %v2103, 4
        %v2113 = vsel %vm988, 0.0, %v2112
        %v2114 = vrot.slane %v2107, 4
        %v2115 = vsel %vm988, 0.0, %v2114
        %v2116 = vrot.slane %v1931, 4
        %v2117 = vsel %vm988, %v2116, %v941
        %v2118 = vrot.slane %v941, 4
        %v2119 = vsel %vm988, %v1931, %v2118
        %v2121 = vunpack.c.l.s4 1983009808
        %v2122 = vunpack.c.0.s8 %v2121
        %v2123 = vperm.slane %v2117, %v2122
        %v2125 = vunpack.c.l.s4 1983009808
        %v2126 = vunpack.c.0.s8 %v2125
        %v2127 = vperm.slane %v2119, %v2126
        %v2128 = vrot.slane %v1943, 4
        %v2129 = vsel %vm988, %v2128, %v1919
        %v2130 = vrot.slane %v1919, 4
        %v2131 = vsel %vm988, %v1943, %v2130
        %v2133 = vunpack.c.l.s4 1983009808
        %v2134 = vunpack.c.0.s8 %v2133
        %v2135 = vperm.slane %v2129, %v2134
        %v2137 = vunpack.c.l.s4 1983009808
        %v2138 = vunpack.c.0.s8 %v2137
        %v2139 = vperm.slane %v2131, %v2138
        %v2140 = vrot.slane %v2135, 4
        %v2141 = vsel %vm988, %v2140, %v2123
        %v2142 = vrot.slane %v2123, 4
        %v2143 = vsel %vm988, %v2135, %v2142
        %v2145 = vunpack.c.l.s4 1934713408
        %v2146 = vunpack.c.0.s8 %v2145
        %v2147 = vperm.slane %v2141, %v2146
        %v2149 = vunpack.c.l.s4 1934713408
        %v2150 = vunpack.c.0.s8 %v2149
        %v2151 = vperm.slane %v2143, %v2150
        %v2152 = vrot.slane %v2139, 4
        %v2153 = vsel %vm988, %v2152, %v2127
        %v2154 = vrot.slane %v2127, 4
        %v2155 = vsel %vm988, %v2139, %v2154
        %v2157 = vunpack.c.l.s4 1934713408
        %v2158 = vunpack.c.0.s8 %v2157
        %v2159 = vperm.slane %v2153, %v2158
        %v2161 = vunpack.c.l.s4 1934713408
        %v2162 = vunpack.c.0.s8 %v2161
        %v2163 = vperm.slane %v2155, %v2162
        %v2164 = vrot.slane %v2147, 4
        %v2165 = vsel %vm988, 0.0, %v2164
        %v2166 = vrot.slane %v2151, 4
        %v2167 = vsel %vm988, 0.0, %v2166
        %v2168 = vrot.slane %v2159, 4
        %v2169 = vsel %vm988, 0.0, %v2168
        %v2170 = vrot.slane %v2163, 4
        %v2171 = vsel %vm988, 0.0, %v2170
        %v2172 = vsel %vm988, %v1998, %v1979
        %v2174 = vunpack.c.l.s4 1983009808
        %v2175 = vunpack.c.0.s8 %v2174
        %v2176 = vperm.slane %v2172, %v2175
        %v2177 = vrot.slane %v1999, 4
        %v2178 = vsel %vm988, %v2177, %v1997
        %v2180 = vunpack.c.l.s4 1983009808
        %v2181 = vunpack.c.0.s8 %v2180
        %v2182 = vperm.slane %v2178, %v2181
        %v2183 = vsel %vm988, %v2002, %v1991
        %v2185 = vunpack.c.l.s4 1983009808
        %v2186 = vunpack.c.0.s8 %v2185
        %v2187 = vperm.slane %v2183, %v2186
        %v2188 = vrot.slane %v2003, 4
        %v2189 = vsel %vm988, %v2188, %v2001
        %v2191 = vunpack.c.l.s4 1983009808
        %v2192 = vunpack.c.0.s8 %v2191
        %v2193 = vperm.slane %v2189, %v2192
        %v2194 = vrot.slane %v2182, 4
        %v2195 = vsel %vm988, %v2194, %v2176
        %v2196 = vrot.slane %v2176, 4
        %v2197 = vsel %vm988, %v2182, %v2196
        %v2199 = vunpack.c.l.s4 1934713408
        %v2200 = vunpack.c.0.s8 %v2199
        %v2201 = vperm.slane %v2195, %v2200
        %v2203 = vunpack.c.l.s4 1934713408
        %v2204 = vunpack.c.0.s8 %v2203
        %v2205 = vperm.slane %v2197, %v2204
        %v2206 = vrot.slane %v2193, 4
        %v2207 = vsel %vm988, %v2206, %v2187
        %v2208 = vrot.slane %v2187, 4
        %v2209 = vsel %vm988, %v2193, %v2208
        %v2211 = vunpack.c.l.s4 1934713408
        %v2212 = vunpack.c.0.s8 %v2211
        %v2213 = vperm.slane %v2207, %v2212
        %v2215 = vunpack.c.l.s4 1934713408
        %v2216 = vunpack.c.0.s8 %v2215
        %v2217 = vperm.slane %v2209, %v2216
        %v2218 = vrot.slane %v2213, 4
        %v2219 = vsel %vm988, %v2218, %v2201
        %v2220 = vrot.slane %v2201, 4
        %v2221 = vsel %vm988, %v2213, %v2220
        %v2222 = vrot.slane %v2217, 4
        %v2223 = vsel %vm988, %v2222, %v2205
        %v2224 = vrot.slane %v2205, 4
        %v2225 = vsel %vm988, %v2217, %v2224
        %v2226 = vsel %vm988, %v2054, %v2035
        %v2228 = vunpack.c.l.s4 1983009808
        %v2229 = vunpack.c.0.s8 %v2228
        %v2230 = vperm.slane %v2226, %v2229
        %v2231 = vrot.slane %v2055, 4
        %v2232 = vsel %vm988, %v2231, %v2053
        %v2234 = vunpack.c.l.s4 1983009808
        %v2235 = vunpack.c.0.s8 %v2234
        %v2236 = vperm.slane %v2232, %v2235
        %v2237 = vsel %vm988, %v2058, %v2047
        %v2239 = vunpack.c.l.s4 1983009808
        %v2240 = vunpack.c.0.s8 %v2239
        %v2241 = vperm.slane %v2237, %v2240
        %v2242 = vrot.slane %v2059, 4
        %v2243 = vsel %vm988, %v2242, %v2057
        %v2245 = vunpack.c.l.s4 1983009808
        %v2246 = vunpack.c.0.s8 %v2245
        %v2247 = vperm.slane %v2243, %v2246
        %v2248 = vrot.slane %v2236, 4
        %v2249 = vsel %vm988, %v2248, %v2230
        %v2250 = vrot.slane %v2230, 4
        %v2251 = vsel %vm988, %v2236, %v2250
        %v2253 = vunpack.c.l.s4 1934713408
        %v2254 = vunpack.c.0.s8 %v2253
        %v2255 = vperm.slane %v2249, %v2254
        %v2257 = vunpack.c.l.s4 1934713408
        %v2258 = vunpack.c.0.s8 %v2257
        %v2259 = vperm.slane %v2251, %v2258
        %v2260 = vrot.slane %v2247, 4
        %v2261 = vsel %vm988, %v2260, %v2241
        %v2262 = vrot.slane %v2241, 4
        %v2263 = vsel %vm988, %v2247, %v2262
        %v2265 = vunpack.c.l.s4 1934713408
        %v2266 = vunpack.c.0.s8 %v2265
        %v2267 = vperm.slane %v2261, %v2266
        %v2269 = vunpack.c.l.s4 1934713408
        %v2270 = vunpack.c.0.s8 %v2269
        %v2271 = vperm.slane %v2263, %v2270
        %v2272 = vrot.slane %v2267, 4
        %v2273 = vsel %vm988, %v2272, %v2255
        %v2274 = vrot.slane %v2255, 4
        %v2275 = vsel %vm988, %v2267, %v2274
        %v2276 = vrot.slane %v2271, 4
        %v2277 = vsel %vm988, %v2276, %v2259
        %v2278 = vrot.slane %v2259, 4
        %v2279 = vsel %vm988, %v2271, %v2278
        %v2280 = vsel %vm988, %v2110, %v2091
        %v2282 = vunpack.c.l.s4 1983009808
        %v2283 = vunpack.c.0.s8 %v2282
        %v2284 = vperm.slane %v2280, %v2283
        %v2285 = vrot.slane %v2111, 4
        %v2286 = vsel %vm988, %v2285, %v2109
        %v2288 = vunpack.c.l.s4 1983009808
        %v2289 = vunpack.c.0.s8 %v2288
        %v2290 = vperm.slane %v2286, %v2289
        %v2291 = vsel %vm988, %v2114, %v2103
        %v2293 = vunpack.c.l.s4 1983009808
        %v2294 = vunpack.c.0.s8 %v2293
        %v2295 = vperm.slane %v2291, %v2294
        %v2296 = vrot.slane %v2115, 4
        %v2297 = vsel %vm988, %v2296, %v2113
        %v2299 = vunpack.c.l.s4 1983009808
        %v2300 = vunpack.c.0.s8 %v2299
        %v2301 = vperm.slane %v2297, %v2300
        %v2302 = vrot.slane %v2290, 4
        %v2303 = vsel %vm988, %v2302, %v2284
        %v2304 = vrot.slane %v2284, 4
        %v2305 = vsel %vm988, %v2290, %v2304
        %v2307 = vunpack.c.l.s4 1934713408
        %v2308 = vunpack.c.0.s8 %v2307
        %v2309 = vperm.slane %v2303, %v2308
        %v2311 = vunpack.c.l.s4 1934713408
        %v2312 = vunpack.c.0.s8 %v2311
        %v2313 = vperm.slane %v2305, %v2312
        %v2314 = vrot.slane %v2301, 4
        %v2315 = vsel %vm988, %v2314, %v2295
        %v2316 = vrot.slane %v2295, 4
        %v2317 = vsel %vm988, %v2301, %v2316
        %v2319 = vunpack.c.l.s4 1934713408
        %v2320 = vunpack.c.0.s8 %v2319
        %v2321 = vperm.slane %v2315, %v2320
        %v2323 = vunpack.c.l.s4 1934713408
        %v2324 = vunpack.c.0.s8 %v2323
        %v2325 = vperm.slane %v2317, %v2324
        %v2326 = vrot.slane %v2321, 4
        %v2327 = vsel %vm988, %v2326, %v2309
        %v2328 = vrot.slane %v2309, 4
        %v2329 = vsel %vm988, %v2321, %v2328
        %v2330 = vrot.slane %v2325, 4
        %v2331 = vsel %vm988, %v2330, %v2313
        %v2332 = vrot.slane %v2313, 4
        %v2333 = vsel %vm988, %v2325, %v2332
        %v2334 = vsel %vm988, %v2166, %v2147
        %v2336 = vunpack.c.l.s4 1983009808
        %v2337 = vunpack.c.0.s8 %v2336
        %v2338 = vperm.slane %v2334, %v2337
        %v2339 = vrot.slane %v2167, 4
        %v2340 = vsel %vm988, %v2339, %v2165
        %v2342 = vunpack.c.l.s4 1983009808
        %v2343 = vunpack.c.0.s8 %v2342
        %v2344 = vperm.slane %v2340, %v2343
        %v2345 = vsel %vm988, %v2170, %v2159
        %v2347 = vunpack.c.l.s4 1983009808
        %v2348 = vunpack.c.0.s8 %v2347
        %v2349 = vperm.slane %v2345, %v2348
        %v2350 = vrot.slane %v2171, 4
        %v2351 = vsel %vm988, %v2350, %v2169
        %v2353 = vunpack.c.l.s4 1983009808
        %v2354 = vunpack.c.0.s8 %v2353
        %v2355 = vperm.slane %v2351, %v2354
        %v2356 = vrot.slane %v2344, 4
        %v2357 = vsel %vm988, %v2356, %v2338
        %v2358 = vrot.slane %v2338, 4
        %v2359 = vsel %vm988, %v2344, %v2358
        %v2361 = vunpack.c.l.s4 1934713408
        %v2362 = vunpack.c.0.s8 %v2361
        %v2363 = vperm.slane %v2357, %v2362
        %v2365 = vunpack.c.l.s4 1934713408
        %v2366 = vunpack.c.0.s8 %v2365
        %v2367 = vperm.slane %v2359, %v2366
        %v2368 = vrot.slane %v2355, 4
        %v2369 = vsel %vm988, %v2368, %v2349
        %v2370 = vrot.slane %v2349, 4
        %v2371 = vsel %vm988, %v2355, %v2370
        %v2373 = vunpack.c.l.s4 1934713408
        %v2374 = vunpack.c.0.s8 %v2373
        %v2375 = vperm.slane %v2369, %v2374
        %v2377 = vunpack.c.l.s4 1934713408
        %v2378 = vunpack.c.0.s8 %v2377
        %v2379 = vperm.slane %v2371, %v2378
        %v2380 = vrot.slane %v2375, 4
        %v2381 = vsel %vm988, %v2380, %v2363
        %v2382 = vrot.slane %v2363, 4
        %v2383 = vsel %vm988, %v2375, %v2382
        %v2384 = vrot.slane %v2379, 4
        %v2385 = vsel %vm988, %v2384, %v2367
        %v2386 = vrot.slane %v2367, 4
        %v2387 = vsel %vm988, %v2379, %v2386
        %v2388 = vpack.c.bf16 %v1259, %v1259
        %v2389 = vpack.c.bf16 %v1313, %v1313
        %v2390 = vpack.c.bf16 %v1261, %v1261
        %v2391 = vpack.c.bf16 %v1315, %v1315
        %v2392 = vpack.c.bf16 %v1263, %v1263
        %v2393 = vpack.c.bf16 %v1317, %v1317
        %v2394 = vpack.c.bf16 %v1265, %v1265
        %v2395 = vpack.c.bf16 %v1319, %v1319
        %v2396 = vpack.c.bf16 %v1367, %v1367
        %v2397 = vpack.c.bf16 %v1421, %v1421
        %v2398 = vpack.c.bf16 %v1369, %v1369
        %v2399 = vpack.c.bf16 %v1423, %v1423
        %v2400 = vpack.c.bf16 %v1371, %v1371
        %v2401 = vpack.c.bf16 %v1425, %v1425
        %v2402 = vpack.c.bf16 %v1373, %v1373
        %v2403 = vpack.c.bf16 %v1427, %v1427
        %v2404 = vpack.c.bf16 %v1739, %v1739
        %v2405 = vpack.c.bf16 %v1793, %v1793
        %v2406 = vpack.c.bf16 %v1741, %v1741
        %v2407 = vpack.c.bf16 %v1795, %v1795
        %v2408 = vpack.c.bf16 %v1743, %v1743
        %v2409 = vpack.c.bf16 %v1797, %v1797
        %v2410 = vpack.c.bf16 %v1745, %v1745
        %v2411 = vpack.c.bf16 %v1799, %v1799
        %v2412 = vpack.c.bf16 %v1847, %v1847
        %v2413 = vpack.c.bf16 %v1901, %v1901
        %v2414 = vpack.c.bf16 %v1849, %v1849
        %v2415 = vpack.c.bf16 %v1903, %v1903
        %v2416 = vpack.c.bf16 %v1851, %v1851
        %v2417 = vpack.c.bf16 %v1905, %v1905
        %v2418 = vpack.c.bf16 %v1853, %v1853
        %v2419 = vpack.c.bf16 %v1907, %v1907
        %v2420 = vpack.c.bf16 %v2219, %v2219
        %v2421 = vpack.c.bf16 %v2273, %v2273
        %v2422 = vpack.c.bf16 %v2221, %v2221
        %v2423 = vpack.c.bf16 %v2275, %v2275
        %v2424 = vpack.c.bf16 %v2223, %v2223
        %v2425 = vpack.c.bf16 %v2277, %v2277
        %v2426 = vpack.c.bf16 %v2225, %v2225
        %v2427 = vpack.c.bf16 %v2279, %v2279
        %v2428 = vpack.c.bf16 %v2327, %v2327
        %v2429 = vpack.c.bf16 %v2381, %v2381
        %v2430 = vpack.c.bf16 %v2329, %v2329
        %v2431 = vpack.c.bf16 %v2383, %v2383
        %v2432 = vpack.c.bf16 %v2331, %v2331
        %v2433 = vpack.c.bf16 %v2385, %v2385
        %v2434 = vpack.c.bf16 %v2333, %v2333
        %v2435 = vpack.c.bf16 %v2387, %v2387
        %v2438 = vunpack.c.l.b16 %v2388
        %v2439 = vunpack.c.l.b16 %v2389
        %v2440 = vpack.c.b16 %v2439, %v2438
        %v2443 = vunpack.c.l.b16 %v2404
        %v2444 = vunpack.c.l.b16 %v2405
        %v2445 = vpack.c.b16 %v2444, %v2443
        %vm2446 = vcmask 261120
        %v2448 = vsel %vm2446, %v2440, 0
        %v2451 = vsel %vm2446, %v2445, 0
        %2453 = vmatpush.bf16.xpose.msra.mxu0 0
        %2454 = vmatpush.bf16.xpose.msra.mxu0 0
        %2455 = vmatpush.bf16.xpose.msra.mxu0 0
        %2456 = vmatpush.bf16.xpose.msra.mxu0 0
        %2457 = vmatpush.bf16.xpose.msra.mxu0 0
        %2458 = vmatpush.bf16.xpose.msra.mxu0 0
        %2459 = vmatpush.bf16.xpose.msra.mxu0 0
        %2460 = vmatpush.bf16.xpose.msra.mxu0 %v2451
        %2461 = vmatmul.bf16.gmra.mxu0 %v2448
        %v2462 = vpop.f32.mrf.mxu0
        %v2463 = vadd.f32 0.0, %v2462
        %v2464 = vpop.f32.mrf.mxu0
        %v2465 = vadd.f32 0.0, %v2464
        %2466 = vdwg.mxu0
        %v2469 = vunpack.c.l.b16 %v2390
        %v2470 = vunpack.c.l.b16 %v2391
        %v2471 = vpack.c.b16 %v2470, %v2469
        %v2474 = vunpack.c.l.b16 %v2406
        %v2475 = vunpack.c.l.b16 %v2407
        %v2476 = vpack.c.b16 %v2475, %v2474
        %v2478 = vsel %vm2446, %v2471, 0
        %v2481 = vsel %vm2446, %v2476, 0
        %2483 = vmatpush.bf16.xpose.msra.mxu0 0
        %2484 = vmatpush.bf16.xpose.msra.mxu0 0
        %2485 = vmatpush.bf16.xpose.msra.mxu0 0
        %2486 = vmatpush.bf16.xpose.msra.mxu0 0
        %2487 = vmatpush.bf16.xpose.msra.mxu0 0
        %2488 = vmatpush.bf16.xpose.msra.mxu0 0
        %2489 = vmatpush.bf16.xpose.msra.mxu0 0
        %2490 = vmatpush.bf16.xpose.msra.mxu0 %v2481
        %2491 = vmatmul.bf16.gmra.mxu0 %v2478
        %v2492 = vpop.f32.mrf.mxu0
        %v2493 = vadd.f32 0.0, %v2492
        %v2494 = vpop.f32.mrf.mxu0
        %v2495 = vadd.f32 0.0, %v2494
        %2496 = vdwg.mxu0
        %v2499 = vunpack.c.l.b16 %v2392
        %v2500 = vunpack.c.l.b16 %v2393
        %v2501 = vpack.c.b16 %v2500, %v2499
        %v2504 = vunpack.c.l.b16 %v2408
        %v2505 = vunpack.c.l.b16 %v2409
        %v2506 = vpack.c.b16 %v2505, %v2504
        %v2508 = vsel %vm2446, %v2501, 0
        %v2511 = vsel %vm2446, %v2506, 0
        %2513 = vmatpush.bf16.xpose.msra.mxu0 0
        %2514 = vmatpush.bf16.xpose.msra.mxu0 0
        %2515 = vmatpush.bf16.xpose.msra.mxu0 0
        %2516 = vmatpush.bf16.xpose.msra.mxu0 0
        %2517 = vmatpush.bf16.xpose.msra.mxu0 0
        %2518 = vmatpush.bf16.xpose.msra.mxu0 0
        %2519 = vmatpush.bf16.xpose.msra.mxu0 0
        %2520 = vmatpush.bf16.xpose.msra.mxu0 %v2511
        %2521 = vmatmul.bf16.gmra.mxu0 %v2508
        %v2522 = vpop.f32.mrf.mxu0
        %v2523 = vadd.f32 0.0, %v2522
        %v2524 = vpop.f32.mrf.mxu0
        %v2525 = vadd.f32 0.0, %v2524
        %2526 = vdwg.mxu0
        %v2529 = vunpack.c.l.b16 %v2394
        %v2530 = vunpack.c.l.b16 %v2395
        %v2531 = vpack.c.b16 %v2530, %v2529
        %v2534 = vunpack.c.l.b16 %v2410
        %v2535 = vunpack.c.l.b16 %v2411
        %v2536 = vpack.c.b16 %v2535, %v2534
        %v2538 = vsel %vm2446, %v2531, 0
        %v2541 = vsel %vm2446, %v2536, 0
        %2543 = vmatpush.bf16.xpose.msra.mxu0 0
        %2544 = vmatpush.bf16.xpose.msra.mxu0 0
        %2545 = vmatpush.bf16.xpose.msra.mxu0 0
        %2546 = vmatpush.bf16.xpose.msra.mxu0 0
        %2547 = vmatpush.bf16.xpose.msra.mxu0 0
        %2548 = vmatpush.bf16.xpose.msra.mxu0 0
        %2549 = vmatpush.bf16.xpose.msra.mxu0 0
        %2550 = vmatpush.bf16.xpose.msra.mxu0 %v2541
        %2551 = vmatmul.bf16.gmra.mxu0 %v2538
        %v2552 = vpop.f32.mrf.mxu0
        %v2553 = vadd.f32 0.0, %v2552
        %v2554 = vpop.f32.mrf.mxu0
        %v2555 = vadd.f32 0.0, %v2554
        %2556 = vdwg.mxu0
        %v2559 = vunpack.c.l.b16 %v2396
        %v2560 = vunpack.c.l.b16 %v2397
        %v2561 = vpack.c.b16 %v2560, %v2559
        %v2564 = vunpack.c.l.b16 %v2412
        %v2565 = vunpack.c.l.b16 %v2413
        %v2566 = vpack.c.b16 %v2565, %v2564
        %v2568 = vsel %vm2446, %v2561, 0
        %v2571 = vsel %vm2446, %v2566, 0
        %2573 = vmatpush.bf16.xpose.msra.mxu0 0
        %2574 = vmatpush.bf16.xpose.msra.mxu0 0
        %2575 = vmatpush.bf16.xpose.msra.mxu0 0
        %2576 = vmatpush.bf16.xpose.msra.mxu0 0
        %2577 = vmatpush.bf16.xpose.msra.mxu0 0
        %2578 = vmatpush.bf16.xpose.msra.mxu0 0
        %2579 = vmatpush.bf16.xpose.msra.mxu0 0
        %2580 = vmatpush.bf16.xpose.msra.mxu0 %v2571
        %2581 = vmatmul.bf16.gmra.mxu0 %v2568
        %v2582 = vpop.f32.mrf.mxu0
        %v2583 = vadd.f32 0.0, %v2582
        %v2584 = vpop.f32.mrf.mxu0
        %v2585 = vadd.f32 0.0, %v2584
        %2586 = vdwg.mxu0
        %v2589 = vunpack.c.l.b16 %v2398
        %v2590 = vunpack.c.l.b16 %v2399
        %v2591 = vpack.c.b16 %v2590, %v2589
        %v2594 = vunpack.c.l.b16 %v2414
        %v2595 = vunpack.c.l.b16 %v2415
        %v2596 = vpack.c.b16 %v2595, %v2594
        %v2598 = vsel %vm2446, %v2591, 0
        %v2601 = vsel %vm2446, %v2596, 0
        %2603 = vmatpush.bf16.xpose.msra.mxu0 0
        %2604 = vmatpush.bf16.xpose.msra.mxu0 0
        %2605 = vmatpush.bf16.xpose.msra.mxu0 0
        %2606 = vmatpush.bf16.xpose.msra.mxu0 0
        %2607 = vmatpush.bf16.xpose.msra.mxu0 0
        %2608 = vmatpush.bf16.xpose.msra.mxu0 0
        %2609 = vmatpush.bf16.xpose.msra.mxu0 0
        %2610 = vmatpush.bf16.xpose.msra.mxu0 %v2601
        %2611 = vmatmul.bf16.gmra.mxu0 %v2598
        %v2612 = vpop.f32.mrf.mxu0
        %v2613 = vadd.f32 0.0, %v2612
        %v2614 = vpop.f32.mrf.mxu0
        %v2615 = vadd.f32 0.0, %v2614
        %2616 = vdwg.mxu0
        %v2619 = vunpack.c.l.b16 %v2400
        %v2620 = vunpack.c.l.b16 %v2401
        %v2621 = vpack.c.b16 %v2620, %v2619
        %v2624 = vunpack.c.l.b16 %v2416
        %v2625 = vunpack.c.l.b16 %v2417
        %v2626 = vpack.c.b16 %v2625, %v2624
        %v2628 = vsel %vm2446, %v2621, 0
        %v2631 = vsel %vm2446, %v2626, 0
        %2633 = vmatpush.bf16.xpose.msra.mxu0 0
        %2634 = vmatpush.bf16.xpose.msra.mxu0 0
        %2635 = vmatpush.bf16.xpose.msra.mxu0 0
        %2636 = vmatpush.bf16.xpose.msra.mxu0 0
        %2637 = vmatpush.bf16.xpose.msra.mxu0 0
        %2638 = vmatpush.bf16.xpose.msra.mxu0 0
        %2639 = vmatpush.bf16.xpose.msra.mxu0 0
        %2640 = vmatpush.bf16.xpose.msra.mxu0 %v2631
        %2641 = vmatmul.bf16.gmra.mxu0 %v2628
        %v2642 = vpop.f32.mrf.mxu0
        %v2643 = vadd.f32 0.0, %v2642
        %v2644 = vpop.f32.mrf.mxu0
        %v2645 = vadd.f32 0.0, %v2644
        %2646 = vdwg.mxu0
        %v2649 = vunpack.c.l.b16 %v2402
        %v2650 = vunpack.c.l.b16 %v2403
        %v2651 = vpack.c.b16 %v2650, %v2649
        %v2654 = vunpack.c.l.b16 %v2418
        %v2655 = vunpack.c.l.b16 %v2419
        %v2656 = vpack.c.b16 %v2655, %v2654
        %v2658 = vsel %vm2446, %v2651, 0
        %v2661 = vsel %vm2446, %v2656, 0
        %2663 = vmatpush.bf16.xpose.msra.mxu0 0
        %2664 = vmatpush.bf16.xpose.msra.mxu0 0
        %2665 = vmatpush.bf16.xpose.msra.mxu0 0
        %2666 = vmatpush.bf16.xpose.msra.mxu0 0
        %2667 = vmatpush.bf16.xpose.msra.mxu0 0
        %2668 = vmatpush.bf16.xpose.msra.mxu0 0
        %2669 = vmatpush.bf16.xpose.msra.mxu0 0
        %2670 = vmatpush.bf16.xpose.msra.mxu0 %v2661
        %2671 = vmatmul.bf16.gmra.mxu0 %v2658
        %v2672 = vpop.f32.mrf.mxu0
        %v2673 = vadd.f32 0.0, %v2672
        %v2674 = vpop.f32.mrf.mxu0
        %v2675 = vadd.f32 0.0, %v2674
        %2676 = vdwg.mxu0
        %vm2677 = vcmask 130048
        %v2678 = vsel %vm2677, %v2463, -inf
        %2679 = vmax.xlane.f32.xlu0 %v2678
        %v2680 = vpop.xlane.xlu0 %2679
        %v2681 = vsel %vm2677, %v2465, -inf
        %2682 = vmax.xlane.f32.xlu0 %v2681
        %v2683 = vpop.xlane.xlu0 %2682
        %v2684 = vsel %vm2677, %v2493, -inf
        %2685 = vmax.xlane.f32.xlu0 %v2684
        %v2686 = vpop.xlane.xlu0 %2685
        %v2687 = vsel %vm2677, %v2495, -inf
        %2688 = vmax.xlane.f32.xlu0 %v2687
        %v2689 = vpop.xlane.xlu0 %2688
        %v2690 = vsel %vm2677, %v2523, -inf
        %2691 = vmax.xlane.f32.xlu0 %v2690
        %v2692 = vpop.xlane.xlu0 %2691
        %v2693 = vsel %vm2677, %v2525, -inf
        %2694 = vmax.xlane.f32.xlu0 %v2693
        %v2695 = vpop.xlane.xlu0 %2694
        %v2696 = vsel %vm2677, %v2553, -inf
        %2697 = vmax.xlane.f32.xlu0 %v2696
        %v2698 = vpop.xlane.xlu0 %2697
        %v2699 = vsel %vm2677, %v2555, -inf
        %2700 = vmax.xlane.f32.xlu0 %v2699
        %v2701 = vpop.xlane.xlu0 %2700
        %v2702 = vsel %vm2677, %v2583, -inf
        %2703 = vmax.xlane.f32.xlu0 %v2702
        %v2704 = vpop.xlane.xlu0 %2703
        %v2705 = vsel %vm2677, %v2585, -inf
        %2706 = vmax.xlane.f32.xlu0 %v2705
        %v2707 = vpop.xlane.xlu0 %2706
        %v2708 = vsel %vm2677, %v2613, -inf
        %2709 = vmax.xlane.f32.xlu0 %v2708
        %v2710 = vpop.xlane.xlu0 %2709
        %v2711 = vsel %vm2677, %v2615, -inf
        %2712 = vmax.xlane.f32.xlu0 %v2711
        %v2713 = vpop.xlane.xlu0 %2712
        %v2714 = vsel %vm2677, %v2643, -inf
        %2715 = vmax.xlane.f32.xlu0 %v2714
        %v2716 = vpop.xlane.xlu0 %2715
        %v2717 = vsel %vm2677, %v2645, -inf
        %2718 = vmax.xlane.f32.xlu0 %v2717
        %v2719 = vpop.xlane.xlu0 %2718
        %v2720 = vsel %vm2677, %v2673, -inf
        %2721 = vmax.xlane.f32.xlu0 %v2720
        %v2722 = vpop.xlane.xlu0 %2721
        %v2723 = vsel %vm2677, %v2675, -inf
        %2724 = vmax.xlane.f32.xlu0 %v2723
        %v2725 = vpop.xlane.xlu0 %2724
        %v2726 = vsub.f32 %v2463, %v2680
        %v2727 = vsub.f32 %v2465, %v2683
        %v2728 = vsub.f32 %v2493, %v2686
        %v2729 = vsub.f32 %v2495, %v2689
        %v2730 = vsub.f32 %v2523, %v2692
        %v2731 = vsub.f32 %v2525, %v2695
        %v2732 = vsub.f32 %v2553, %v2698
        %v2733 = vsub.f32 %v2555, %v2701
        %v2734 = vsub.f32 %v2583, %v2704
        %v2735 = vsub.f32 %v2585, %v2707
        %v2736 = vsub.f32 %v2613, %v2710
        %v2737 = vsub.f32 %v2615, %v2713
        %v2738 = vsub.f32 %v2643, %v2716
        %v2739 = vsub.f32 %v2645, %v2719
        %v2740 = vsub.f32 %v2673, %v2722
        %v2741 = vsub.f32 %v2675, %v2725
        %v2742 = vmul.f32 %v2726, 1.442695
        %v2743 = vpow.pop %v2742
        %v2744 = vmul.f32 %v2727, 1.442695
        %v2745 = vpow.pop %v2744
        %v2746 = vmul.f32 %v2728, 1.442695
        %v2747 = vpow.pop %v2746
        %v2748 = vmul.f32 %v2729, 1.442695
        %v2749 = vpow.pop %v2748
        %v2750 = vmul.f32 %v2730, 1.442695
        %v2751 = vpow.pop %v2750
        %v2752 = vmul.f32 %v2731, 1.442695
        %v2753 = vpow.pop %v2752
        %v2754 = vmul.f32 %v2732, 1.442695
        %v2755 = vpow.pop %v2754
        %v2756 = vmul.f32 %v2733, 1.442695
        %v2757 = vpow.pop %v2756
        %v2758 = vmul.f32 %v2734, 1.442695
        %v2759 = vpow.pop %v2758
        %v2760 = vmul.f32 %v2735, 1.442695
        %v2761 = vpow.pop %v2760
        %v2762 = vmul.f32 %v2736, 1.442695
        %v2763 = vpow.pop %v2762
        %v2764 = vmul.f32 %v2737, 1.442695
        %v2765 = vpow.pop %v2764
        %v2766 = vmul.f32 %v2738, 1.442695
        %v2767 = vpow.pop %v2766
        %v2768 = vmul.f32 %v2739, 1.442695
        %v2769 = vpow.pop %v2768
        %v2770 = vmul.f32 %v2740, 1.442695
        %v2771 = vpow.pop %v2770
        %v2772 = vmul.f32 %v2741, 1.442695
        %v2773 = vpow.pop %v2772
        %v2774 = vsel %vm2677, %v2743, 0.0
        %2775 = vadd.xlane.f32.xlu0 %v2774
        %v2776 = vpop.xlane.xlu0 %2775
        %v2777 = vsel %vm2677, %v2745, 0.0
        %2778 = vadd.xlane.f32.xlu0 %v2777
        %v2779 = vpop.xlane.xlu0 %2778
        %v2780 = vsel %vm2677, %v2747, 0.0
        %2781 = vadd.xlane.f32.xlu0 %v2780
        %v2782 = vpop.xlane.xlu0 %2781
        %v2783 = vsel %vm2677, %v2749, 0.0
        %2784 = vadd.xlane.f32.xlu0 %v2783
        %v2785 = vpop.xlane.xlu0 %2784
        %v2786 = vsel %vm2677, %v2751, 0.0
        %2787 = vadd.xlane.f32.xlu0 %v2786
        %v2788 = vpop.xlane.xlu0 %2787
        %v2789 = vsel %vm2677, %v2753, 0.0
        %2790 = vadd.xlane.f32.xlu0 %v2789
        %v2791 = vpop.xlane.xlu0 %2790
        %v2792 = vsel %vm2677, %v2755, 0.0
        %2793 = vadd.xlane.f32.xlu0 %v2792
        %v2794 = vpop.xlane.xlu0 %2793
        %v2795 = vsel %vm2677, %v2757, 0.0
        %2796 = vadd.xlane.f32.xlu0 %v2795
        %v2797 = vpop.xlane.xlu0 %2796
        %v2798 = vsel %vm2677, %v2759, 0.0
        %2799 = vadd.xlane.f32.xlu0 %v2798
        %v2800 = vpop.xlane.xlu0 %2799
        %v2801 = vsel %vm2677, %v2761, 0.0
        %2802 = vadd.xlane.f32.xlu0 %v2801
        %v2803 = vpop.xlane.xlu0 %2802
        %v2804 = vsel %vm2677, %v2763, 0.0
        %2805 = vadd.xlane.f32.xlu0 %v2804
        %v2806 = vpop.xlane.xlu0 %2805
        %v2807 = vsel %vm2677, %v2765, 0.0
        %2808 = vadd.xlane.f32.xlu0 %v2807
        %v2809 = vpop.xlane.xlu0 %2808
        %v2810 = vsel %vm2677, %v2767, 0.0
        %2811 = vadd.xlane.f32.xlu0 %v2810
        %v2812 = vpop.xlane.xlu0 %2811
        %v2813 = vsel %vm2677, %v2769, 0.0
        %2814 = vadd.xlane.f32.xlu0 %v2813
        %v2815 = vpop.xlane.xlu0 %2814
        %v2816 = vsel %vm2677, %v2771, 0.0
        %2817 = vadd.xlane.f32.xlu0 %v2816
        %v2818 = vpop.xlane.xlu0 %2817
        %v2819 = vsel %vm2677, %v2773, 0.0
        %2820 = vadd.xlane.f32.xlu0 %v2819
        %v2821 = vpop.xlane.xlu0 %2820
        %v2822 = vrcp.pop %v2776
        %v2823 = vrcp.pop %v2779
        %v2824 = vrcp.pop %v2782
        %v2825 = vrcp.pop %v2785
        %v2826 = vrcp.pop %v2788
        %v2827 = vrcp.pop %v2791
        %v2828 = vrcp.pop %v2794
        %v2829 = vrcp.pop %v2797
        %v2830 = vrcp.pop %v2800
        %v2831 = vrcp.pop %v2803
        %v2832 = vrcp.pop %v2806
        %v2833 = vrcp.pop %v2809
        %v2834 = vrcp.pop %v2812
        %v2835 = vrcp.pop %v2815
        %v2836 = vrcp.pop %v2818
        %v2837 = vrcp.pop %v2821
        %v2838 = vmul.f32 %v2743, %v2822
        %v2839 = vmul.f32 %v2745, %v2823
        %v2840 = vmul.f32 %v2747, %v2824
        %v2841 = vmul.f32 %v2749, %v2825
        %v2842 = vmul.f32 %v2751, %v2826
        %v2843 = vmul.f32 %v2753, %v2827
        %v2844 = vmul.f32 %v2755, %v2828
        %v2845 = vmul.f32 %v2757, %v2829
        %v2846 = vmul.f32 %v2759, %v2830
        %v2847 = vmul.f32 %v2761, %v2831
        %v2848 = vmul.f32 %v2763, %v2832
        %v2849 = vmul.f32 %v2765, %v2833
        %v2850 = vmul.f32 %v2767, %v2834
        %v2851 = vmul.f32 %v2769, %v2835
        %v2852 = vmul.f32 %v2771, %v2836
        %v2853 = vmul.f32 %v2773, %v2837
        %v2854 = vpack.c.bf16 %v2838, %v2838
        %v2855 = vpack.c.bf16 %v2839, %v2839
        %v2856 = vpack.c.bf16 %v2840, %v2840
        %v2857 = vpack.c.bf16 %v2841, %v2841
        %v2858 = vpack.c.bf16 %v2842, %v2842
        %v2859 = vpack.c.bf16 %v2843, %v2843
        %v2860 = vpack.c.bf16 %v2844, %v2844
        %v2861 = vpack.c.bf16 %v2845, %v2845
        %v2862 = vpack.c.bf16 %v2846, %v2846
        %v2863 = vpack.c.bf16 %v2847, %v2847
        %v2864 = vpack.c.bf16 %v2848, %v2848
        %v2865 = vpack.c.bf16 %v2849, %v2849
        %v2866 = vpack.c.bf16 %v2850, %v2850
        %v2867 = vpack.c.bf16 %v2851, %v2851
        %v2868 = vpack.c.bf16 %v2852, %v2852
        %v2869 = vpack.c.bf16 %v2853, %v2853
        %v2872 = vunpack.c.l.b16 %v2854
        %v2873 = vunpack.c.l.b16 %v2855
        %v2874 = vpack.c.b16 %v2873, %v2872
        %v2877 = vunpack.c.l.b16 %v2420
        %v2878 = vunpack.c.l.b16 %v2421
        %v2879 = vpack.c.b16 %v2878, %v2877
        %v2882 = vsel %vm2677, %v2874, 0
        %2884 = vmatpush.bf16.msra.mxu0 0
        %2885 = vmatpush.bf16.msra.mxu0 0
        %2886 = vmatpush.bf16.msra.mxu0 0
        %2887 = vmatpush.bf16.msra.mxu0 0
        %2888 = vmatpush.bf16.msra.mxu0 0
        %2889 = vmatpush.bf16.msra.mxu0 0
        %2890 = vmatpush.bf16.msra.mxu0 0
        %2891 = vmatpush.bf16.msra.mxu0 %v2879
        %2892 = vmatmul.bf16.gmra.mxu0 %v2882
        %v2893 = vpop.f32.mrf.mxu0
        %v2894 = vadd.f32 0.0, %v2893
        %v2895 = vpop.f32.mrf.mxu0
        %v2896 = vadd.f32 0.0, %v2895
        %2897 = vdwg.mxu0
        %v2900 = vunpack.c.l.b16 %v2856
        %v2901 = vunpack.c.l.b16 %v2857
        %v2902 = vpack.c.b16 %v2901, %v2900
        %v2905 = vunpack.c.l.b16 %v2422
        %v2906 = vunpack.c.l.b16 %v2423
        %v2907 = vpack.c.b16 %v2906, %v2905
        %v2910 = vsel %vm2677, %v2902, 0
        %2912 = vmatpush.bf16.msra.mxu0 0
        %2913 = vmatpush.bf16.msra.mxu0 0
        %2914 = vmatpush.bf16.msra.mxu0 0
        %2915 = vmatpush.bf16.msra.mxu0 0
        %2916 = vmatpush.bf16.msra.mxu0 0
        %2917 = vmatpush.bf16.msra.mxu0 0
        %2918 = vmatpush.bf16.msra.mxu0 0
        %2919 = vmatpush.bf16.msra.mxu0 %v2907
        %2920 = vmatmul.bf16.gmra.mxu0 %v2910
        %v2921 = vpop.f32.mrf.mxu0
        %v2922 = vadd.f32 0.0, %v2921
        %v2923 = vpop.f32.mrf.mxu0
        %v2924 = vadd.f32 0.0, %v2923
        %2925 = vdwg.mxu0
        %v2928 = vunpack.c.l.b16 %v2858
        %v2929 = vunpack.c.l.b16 %v2859
        %v2930 = vpack.c.b16 %v2929, %v2928
        %v2933 = vunpack.c.l.b16 %v2424
        %v2934 = vunpack.c.l.b16 %v2425
        %v2935 = vpack.c.b16 %v2934, %v2933
        %v2938 = vsel %vm2677, %v2930, 0
        %2940 = vmatpush.bf16.msra.mxu0 0
        %2941 = vmatpush.bf16.msra.mxu0 0
        %2942 = vmatpush.bf16.msra.mxu0 0
        %2943 = vmatpush.bf16.msra.mxu0 0
        %2944 = vmatpush.bf16.msra.mxu0 0
        %2945 = vmatpush.bf16.msra.mxu0 0
        %2946 = vmatpush.bf16.msra.mxu0 0
        %2947 = vmatpush.bf16.msra.mxu0 %v2935
        %2948 = vmatmul.bf16.gmra.mxu0 %v2938
        %v2949 = vpop.f32.mrf.mxu0
        %v2950 = vadd.f32 0.0, %v2949
        %v2951 = vpop.f32.mrf.mxu0
        %v2952 = vadd.f32 0.0, %v2951
        %2953 = vdwg.mxu0
        %v2956 = vunpack.c.l.b16 %v2860
        %v2957 = vunpack.c.l.b16 %v2861
        %v2958 = vpack.c.b16 %v2957, %v2956
        %v2961 = vunpack.c.l.b16 %v2426
        %v2962 = vunpack.c.l.b16 %v2427
        %v2963 = vpack.c.b16 %v2962, %v2961
        %v2966 = vsel %vm2677, %v2958, 0
        %2968 = vmatpush.bf16.msra.mxu0 0
        %2969 = vmatpush.bf16.msra.mxu0 0
        %2970 = vmatpush.bf16.msra.mxu0 0
        %2971 = vmatpush.bf16.msra.mxu0 0
        %2972 = vmatpush.bf16.msra.mxu0 0
        %2973 = vmatpush.bf16.msra.mxu0 0
        %2974 = vmatpush.bf16.msra.mxu0 0
        %2975 = vmatpush.bf16.msra.mxu0 %v2963
        %2976 = vmatmul.bf16.gmra.mxu0 %v2966
        %v2977 = vpop.f32.mrf.mxu0
        %v2978 = vadd.f32 0.0, %v2977
        %v2979 = vpop.f32.mrf.mxu0
        %v2980 = vadd.f32 0.0, %v2979
        %2981 = vdwg.mxu0
        %v2984 = vunpack.c.l.b16 %v2862
        %v2985 = vunpack.c.l.b16 %v2863
        %v2986 = vpack.c.b16 %v2985, %v2984
        %v2989 = vunpack.c.l.b16 %v2428
        %v2990 = vunpack.c.l.b16 %v2429
        %v2991 = vpack.c.b16 %v2990, %v2989
        %v2994 = vsel %vm2677, %v2986, 0
        %2996 = vmatpush.bf16.msra.mxu0 0
        %2997 = vmatpush.bf16.msra.mxu0 0
        %2998 = vmatpush.bf16.msra.mxu0 0
        %2999 = vmatpush.bf16.msra.mxu0 0
        %3000 = vmatpush.bf16.msra.mxu0 0
        %3001 = vmatpush.bf16.msra.mxu0 0
        %3002 = vmatpush.bf16.msra.mxu0 0
        %3003 = vmatpush.bf16.msra.mxu0 %v2991
        %3004 = vmatmul.bf16.gmra.mxu0 %v2994
        %v3005 = vpop.f32.mrf.mxu0
        %v3006 = vadd.f32 0.0, %v3005
        %v3007 = vpop.f32.mrf.mxu0
        %v3008 = vadd.f32 0.0, %v3007
        %3009 = vdwg.mxu0
        %v3012 = vunpack.c.l.b16 %v2864
        %v3013 = vunpack.c.l.b16 %v2865
        %v3014 = vpack.c.b16 %v3013, %v3012
        %v3017 = vunpack.c.l.b16 %v2430
        %v3018 = vunpack.c.l.b16 %v2431
        %v3019 = vpack.c.b16 %v3018, %v3017
        %v3022 = vsel %vm2677, %v3014, 0
        %3024 = vmatpush.bf16.msra.mxu0 0
        %3025 = vmatpush.bf16.msra.mxu0 0
        %3026 = vmatpush.bf16.msra.mxu0 0
        %3027 = vmatpush.bf16.msra.mxu0 0
        %3028 = vmatpush.bf16.msra.mxu0 0
        %3029 = vmatpush.bf16.msra.mxu0 0
        %3030 = vmatpush.bf16.msra.mxu0 0
        %3031 = vmatpush.bf16.msra.mxu0 %v3019
        %3032 = vmatmul.bf16.gmra.mxu0 %v3022
        %v3033 = vpop.f32.mrf.mxu0
        %v3034 = vadd.f32 0.0, %v3033
        %v3035 = vpop.f32.mrf.mxu0
        %v3036 = vadd.f32 0.0, %v3035
        %3037 = vdwg.mxu0
        %v3040 = vunpack.c.l.b16 %v2866
        %v3041 = vunpack.c.l.b16 %v2867
        %v3042 = vpack.c.b16 %v3041, %v3040
        %v3045 = vunpack.c.l.b16 %v2432
        %v3046 = vunpack.c.l.b16 %v2433
        %v3047 = vpack.c.b16 %v3046, %v3045
        %v3050 = vsel %vm2677, %v3042, 0
        %3052 = vmatpush.bf16.msra.mxu0 0
        %3053 = vmatpush.bf16.msra.mxu0 0
        %3054 = vmatpush.bf16.msra.mxu0 0
        %3055 = vmatpush.bf16.msra.mxu0 0
        %3056 = vmatpush.bf16.msra.mxu0 0
        %3057 = vmatpush.bf16.msra.mxu0 0
        %3058 = vmatpush.bf16.msra.mxu0 0
        %3059 = vmatpush.bf16.msra.mxu0 %v3047
        %3060 = vmatmul.bf16.gmra.mxu0 %v3050
        %v3061 = vpop.f32.mrf.mxu0
        %v3062 = vadd.f32 0.0, %v3061
        %v3063 = vpop.f32.mrf.mxu0
        %v3064 = vadd.f32 0.0, %v3063
        %3065 = vdwg.mxu0
        %v3068 = vunpack.c.l.b16 %v2868
        %v3069 = vunpack.c.l.b16 %v2869
        %v3070 = vpack.c.b16 %v3069, %v3068
        %v3073 = vunpack.c.l.b16 %v2434
        %v3074 = vunpack.c.l.b16 %v2435
        %v3075 = vpack.c.b16 %v3074, %v3073
        %v3078 = vsel %vm2677, %v3070, 0
        %3080 = vmatpush.bf16.msra.mxu0 0
        %3081 = vmatpush.bf16.msra.mxu0 0
        %3082 = vmatpush.bf16.msra.mxu0 0
        %3083 = vmatpush.bf16.msra.mxu0 0
        %3084 = vmatpush.bf16.msra.mxu0 0
        %3085 = vmatpush.bf16.msra.mxu0 0
        %3086 = vmatpush.bf16.msra.mxu0 0
        %3087 = vmatpush.bf16.msra.mxu0 %v3075
        %3088 = vmatmul.bf16.gmra.mxu0 %v3078
        %v3089 = vpop.f32.mrf.mxu0
        %v3090 = vadd.f32 0.0, %v3089
        %v3091 = vpop.f32.mrf.mxu0
        %v3092 = vadd.f32 0.0, %v3091
        %3093 = vdwg.mxu0
        %v3094 = vrot.slane %v2950, 4
        %v3095 = vsel %vm988, %v3094, %v2894
        %v3096 = vrot.slane %v2894, 4
        %v3097 = vsel %vm988, %v2950, %v3096
        %v3099 = vunpack.c.l.s4 1983009808
        %v3100 = vunpack.c.0.s8 %v3099
        %v3101 = vperm.slane %v3095, %v3100
        %v3103 = vunpack.c.l.s4 1983009808
        %v3104 = vunpack.c.0.s8 %v3103
        %v3105 = vperm.slane %v3097, %v3104
        %v3106 = vrot.slane %v2978, 4
        %v3107 = vsel %vm988, %v3106, %v2922
        %v3108 = vrot.slane %v2922, 4
        %v3109 = vsel %vm988, %v2978, %v3108
        %v3111 = vunpack.c.l.s4 1983009808
        %v3112 = vunpack.c.0.s8 %v3111
        %v3113 = vperm.slane %v3107, %v3112
        %v3115 = vunpack.c.l.s4 1983009808
        %v3116 = vunpack.c.0.s8 %v3115
        %v3117 = vperm.slane %v3109, %v3116
        %v3118 = vrot.slane %v3113, 4
        %v3119 = vsel %vm988, %v3118, %v3101
        %v3120 = vrot.slane %v3101, 4
        %v3121 = vsel %vm988, %v3113, %v3120
        %v3123 = vunpack.c.l.s4 1934713408
        %v3124 = vunpack.c.0.s8 %v3123
        %v3125 = vperm.slane %v3119, %v3124
        %v3127 = vunpack.c.l.s4 1934713408
        %v3128 = vunpack.c.0.s8 %v3127
        %v3129 = vperm.slane %v3121, %v3128
        %v3130 = vrot.slane %v3117, 4
        %v3131 = vsel %vm988, %v3130, %v3105
        %v3132 = vrot.slane %v3105, 4
        %v3133 = vsel %vm988, %v3117, %v3132
        %v3135 = vunpack.c.l.s4 1934713408
        %v3136 = vunpack.c.0.s8 %v3135
        %v3137 = vperm.slane %v3131, %v3136
        %v3139 = vunpack.c.l.s4 1934713408
        %v3140 = vunpack.c.0.s8 %v3139
        %v3141 = vperm.slane %v3133, %v3140
        %v3142 = vrot.slane %v3125, 4
        %v3143 = vsel %vm988, 0.0, %v3142
        %v3144 = vrot.slane %v3129, 4
        %v3145 = vsel %vm988, 0.0, %v3144
        %v3146 = vrot.slane %v3137, 4
        %v3147 = vsel %vm988, 0.0, %v3146
        %v3148 = vrot.slane %v3141, 4
        %v3149 = vsel %vm988, 0.0, %v3148
        %v3150 = vrot.slane %v2952, 4
        %v3151 = vsel %vm988, %v3150, %v2896
        %v3152 = vrot.slane %v2896, 4
        %v3153 = vsel %vm988, %v2952, %v3152
        %v3155 = vunpack.c.l.s4 1983009808
        %v3156 = vunpack.c.0.s8 %v3155
        %v3157 = vperm.slane %v3151, %v3156
        %v3159 = vunpack.c.l.s4 1983009808
        %v3160 = vunpack.c.0.s8 %v3159
        %v3161 = vperm.slane %v3153, %v3160
        %v3162 = vrot.slane %v2980, 4
        %v3163 = vsel %vm988, %v3162, %v2924
        %v3164 = vrot.slane %v2924, 4
        %v3165 = vsel %vm988, %v2980, %v3164
        %v3167 = vunpack.c.l.s4 1983009808
        %v3168 = vunpack.c.0.s8 %v3167
        %v3169 = vperm.slane %v3163, %v3168
        %v3171 = vunpack.c.l.s4 1983009808
        %v3172 = vunpack.c.0.s8 %v3171
        %v3173 = vperm.slane %v3165, %v3172
        %v3174 = vrot.slane %v3169, 4
        %v3175 = vsel %vm988, %v3174, %v3157
        %v3176 = vrot.slane %v3157, 4
        %v3177 = vsel %vm988, %v3169, %v3176
        %v3179 = vunpack.c.l.s4 1934713408
        %v3180 = vunpack.c.0.s8 %v3179
        %v3181 = vperm.slane %v3175, %v3180
        %v3183 = vunpack.c.l.s4 1934713408
        %v3184 = vunpack.c.0.s8 %v3183
        %v3185 = vperm.slane %v3177, %v3184
        %v3186 = vrot.slane %v3173, 4
        %v3187 = vsel %vm988, %v3186, %v3161
        %v3188 = vrot.slane %v3161, 4
        %v3189 = vsel %vm988, %v3173, %v3188
        %v3191 = vunpack.c.l.s4 1934713408
        %v3192 = vunpack.c.0.s8 %v3191
        %v3193 = vperm.slane %v3187, %v3192
        %v3195 = vunpack.c.l.s4 1934713408
        %v3196 = vunpack.c.0.s8 %v3195
        %v3197 = vperm.slane %v3189, %v3196
        %v3198 = vrot.slane %v3181, 4
        %v3199 = vsel %vm988, 0.0, %v3198
        %v3200 = vrot.slane %v3185, 4
        %v3201 = vsel %vm988, 0.0, %v3200
        %v3202 = vrot.slane %v3193, 4
        %v3203 = vsel %vm988, 0.0, %v3202
        %v3204 = vrot.slane %v3197, 4
        %v3205 = vsel %vm988, 0.0, %v3204
        %v3206 = vrot.slane %v3062, 4
        %v3207 = vsel %vm988, %v3206, %v3006
        %v3208 = vrot.slane %v3006, 4
        %v3209 = vsel %vm988, %v3062, %v3208
        %v3211 = vunpack.c.l.s4 1983009808
        %v3212 = vunpack.c.0.s8 %v3211
        %v3213 = vperm.slane %v3207, %v3212
        %v3215 = vunpack.c.l.s4 1983009808
        %v3216 = vunpack.c.0.s8 %v3215
        %v3217 = vperm.slane %v3209, %v3216
        %v3218 = vrot.slane %v3090, 4
        %v3219 = vsel %vm988, %v3218, %v3034
        %v3220 = vrot.slane %v3034, 4
        %v3221 = vsel %vm988, %v3090, %v3220
        %v3223 = vunpack.c.l.s4 1983009808
        %v3224 = vunpack.c.0.s8 %v3223
        %v3225 = vperm.slane %v3219, %v3224
        %v3227 = vunpack.c.l.s4 1983009808
        %v3228 = vunpack.c.0.s8 %v3227
        %v3229 = vperm.slane %v3221, %v3228
        %v3230 = vrot.slane %v3225, 4
        %v3231 = vsel %vm988, %v3230, %v3213
        %v3232 = vrot.slane %v3213, 4
        %v3233 = vsel %vm988, %v3225, %v3232
        %v3235 = vunpack.c.l.s4 1934713408
        %v3236 = vunpack.c.0.s8 %v3235
        %v3237 = vperm.slane %v3231, %v3236
        %v3239 = vunpack.c.l.s4 1934713408
        %v3240 = vunpack.c.0.s8 %v3239
        %v3241 = vperm.slane %v3233, %v3240
        %v3242 = vrot.slane %v3229, 4
        %v3243 = vsel %vm988, %v3242, %v3217
        %v3244 = vrot.slane %v3217, 4
        %v3245 = vsel %vm988, %v3229, %v3244
        %v3247 = vunpack.c.l.s4 1934713408
        %v3248 = vunpack.c.0.s8 %v3247
        %v3249 = vperm.slane %v3243, %v3248
        %v3251 = vunpack.c.l.s4 1934713408
        %v3252 = vunpack.c.0.s8 %v3251
        %v3253 = vperm.slane %v3245, %v3252
        %v3254 = vrot.slane %v3237, 4
        %v3255 = vsel %vm988, 0.0, %v3254
        %v3256 = vrot.slane %v3241, 4
        %v3257 = vsel %vm988, 0.0, %v3256
        %v3258 = vrot.slane %v3249, 4
        %v3259 = vsel %vm988, 0.0, %v3258
        %v3260 = vrot.slane %v3253, 4
        %v3261 = vsel %vm988, 0.0, %v3260
        %v3262 = vrot.slane %v3064, 4
        %v3263 = vsel %vm988, %v3262, %v3008
        %v3264 = vrot.slane %v3008, 4
        %v3265 = vsel %vm988, %v3064, %v3264
        %v3267 = vunpack.c.l.s4 1983009808
        %v3268 = vunpack.c.0.s8 %v3267
        %v3269 = vperm.slane %v3263, %v3268
        %v3271 = vunpack.c.l.s4 1983009808
        %v3272 = vunpack.c.0.s8 %v3271
        %v3273 = vperm.slane %v3265, %v3272
        %v3274 = vrot.slane %v3092, 4
        %v3275 = vsel %vm988, %v3274, %v3036
        %v3276 = vrot.slane %v3036, 4
        %v3277 = vsel %vm988, %v3092, %v3276
        %v3279 = vunpack.c.l.s4 1983009808
        %v3280 = vunpack.c.0.s8 %v3279
        %v3281 = vperm.slane %v3275, %v3280
        %v3283 = vunpack.c.l.s4 1983009808
        %v3284 = vunpack.c.0.s8 %v3283
        %v3285 = vperm.slane %v3277, %v3284
        %v3286 = vrot.slane %v3281, 4
        %v3287 = vsel %vm988, %v3286, %v3269
        %v3288 = vrot.slane %v3269, 4
        %v3289 = vsel %vm988, %v3281, %v3288
        %v3291 = vunpack.c.l.s4 1934713408
        %v3292 = vunpack.c.0.s8 %v3291
        %v3293 = vperm.slane %v3287, %v3292
        %v3295 = vunpack.c.l.s4 1934713408
        %v3296 = vunpack.c.0.s8 %v3295
        %v3297 = vperm.slane %v3289, %v3296
        %v3298 = vrot.slane %v3285, 4
        %v3299 = vsel %vm988, %v3298, %v3273
        %v3300 = vrot.slane %v3273, 4
        %v3301 = vsel %vm988, %v3285, %v3300
        %v3303 = vunpack.c.l.s4 1934713408
        %v3304 = vunpack.c.0.s8 %v3303
        %v3305 = vperm.slane %v3299, %v3304
        %v3307 = vunpack.c.l.s4 1934713408
        %v3308 = vunpack.c.0.s8 %v3307
        %v3309 = vperm.slane %v3301, %v3308
        %v3310 = vrot.slane %v3293, 4
        %v3311 = vsel %vm988, 0.0, %v3310
        %v3312 = vrot.slane %v3297, 4
        %v3313 = vsel %vm988, 0.0, %v3312
        %v3314 = vrot.slane %v3305, 4
        %v3315 = vsel %vm988, 0.0, %v3314
        %v3316 = vrot.slane %v3309, 4
        %v3317 = vsel %vm988, 0.0, %v3316
        %v3318 = vsel %vm988, %v3144, %v3125
        %v3320 = vunpack.c.l.s4 1983009808
        %v3321 = vunpack.c.0.s8 %v3320
        %v3322 = vperm.slane %v3318, %v3321
        %v3323 = vrot.slane %v3145, 4
        %v3324 = vsel %vm988, %v3323, %v3143
        %v3326 = vunpack.c.l.s4 1983009808
        %v3327 = vunpack.c.0.s8 %v3326
        %v3328 = vperm.slane %v3324, %v3327
        %v3329 = vsel %vm988, %v3148, %v3137
        %v3331 = vunpack.c.l.s4 1983009808
        %v3332 = vunpack.c.0.s8 %v3331
        %v3333 = vperm.slane %v3329, %v3332
        %v3334 = vrot.slane %v3149, 4
        %v3335 = vsel %vm988, %v3334, %v3147
        %v3337 = vunpack.c.l.s4 1983009808
        %v3338 = vunpack.c.0.s8 %v3337
        %v3339 = vperm.slane %v3335, %v3338
        %v3340 = vrot.slane %v3328, 4
        %v3341 = vsel %vm988, %v3340, %v3322
        %v3342 = vrot.slane %v3322, 4
        %v3343 = vsel %vm988, %v3328, %v3342
        %v3345 = vunpack.c.l.s4 1934713408
        %v3346 = vunpack.c.0.s8 %v3345
        %v3347 = vperm.slane %v3341, %v3346
        %v3349 = vunpack.c.l.s4 1934713408
        %v3350 = vunpack.c.0.s8 %v3349
        %v3351 = vperm.slane %v3343, %v3350
        %v3352 = vrot.slane %v3339, 4
        %v3353 = vsel %vm988, %v3352, %v3333
        %v3354 = vrot.slane %v3333, 4
        %v3355 = vsel %vm988, %v3339, %v3354
        %v3357 = vunpack.c.l.s4 1934713408
        %v3358 = vunpack.c.0.s8 %v3357
        %v3359 = vperm.slane %v3353, %v3358
        %v3361 = vunpack.c.l.s4 1934713408
        %v3362 = vunpack.c.0.s8 %v3361
        %v3363 = vperm.slane %v3355, %v3362
        %v3364 = vrot.slane %v3359, 4
        %v3365 = vsel %vm988, %v3364, %v3347
        %v3366 = vrot.slane %v3347, 4
        %v3367 = vsel %vm988, %v3359, %v3366
        %v3368 = vrot.slane %v3363, 4
        %v3369 = vsel %vm988, %v3368, %v3351
        %v3370 = vrot.slane %v3351, 4
        %v3371 = vsel %vm988, %v3363, %v3370
        %v3372 = vsel %vm988, %v3200, %v3181
        %v3374 = vunpack.c.l.s4 1983009808
        %v3375 = vunpack.c.0.s8 %v3374
        %v3376 = vperm.slane %v3372, %v3375
        %v3377 = vrot.slane %v3201, 4
        %v3378 = vsel %vm988, %v3377, %v3199
        %v3380 = vunpack.c.l.s4 1983009808
        %v3381 = vunpack.c.0.s8 %v3380
        %v3382 = vperm.slane %v3378, %v3381
        %v3383 = vsel %vm988, %v3204, %v3193
        %v3385 = vunpack.c.l.s4 1983009808
        %v3386 = vunpack.c.0.s8 %v3385
        %v3387 = vperm.slane %v3383, %v3386
        %v3388 = vrot.slane %v3205, 4
        %v3389 = vsel %vm988, %v3388, %v3203
        %v3391 = vunpack.c.l.s4 1983009808
        %v3392 = vunpack.c.0.s8 %v3391
        %v3393 = vperm.slane %v3389, %v3392
        %v3394 = vrot.slane %v3382, 4
        %v3395 = vsel %vm988, %v3394, %v3376
        %v3396 = vrot.slane %v3376, 4
        %v3397 = vsel %vm988, %v3382, %v3396
        %v3399 = vunpack.c.l.s4 1934713408
        %v3400 = vunpack.c.0.s8 %v3399
        %v3401 = vperm.slane %v3395, %v3400
        %v3403 = vunpack.c.l.s4 1934713408
        %v3404 = vunpack.c.0.s8 %v3403
        %v3405 = vperm.slane %v3397, %v3404
        %v3406 = vrot.slane %v3393, 4
        %v3407 = vsel %vm988, %v3406, %v3387
        %v3408 = vrot.slane %v3387, 4
        %v3409 = vsel %vm988, %v3393, %v3408
        %v3411 = vunpack.c.l.s4 1934713408
        %v3412 = vunpack.c.0.s8 %v3411
        %v3413 = vperm.slane %v3407, %v3412
        %v3415 = vunpack.c.l.s4 1934713408
        %v3416 = vunpack.c.0.s8 %v3415
        %v3417 = vperm.slane %v3409, %v3416
        %v3418 = vrot.slane %v3413, 4
        %v3419 = vsel %vm988, %v3418, %v3401
        %v3420 = vrot.slane %v3401, 4
        %v3421 = vsel %vm988, %v3413, %v3420
        %v3422 = vrot.slane %v3417, 4
        %v3423 = vsel %vm988, %v3422, %v3405
        %v3424 = vrot.slane %v3405, 4
        %v3425 = vsel %vm988, %v3417, %v3424
        %v3426 = vsel %vm988, %v3256, %v3237
        %v3428 = vunpack.c.l.s4 1983009808
        %v3429 = vunpack.c.0.s8 %v3428
        %v3430 = vperm.slane %v3426, %v3429
        %v3431 = vrot.slane %v3257, 4
        %v3432 = vsel %vm988, %v3431, %v3255
        %v3434 = vunpack.c.l.s4 1983009808
        %v3435 = vunpack.c.0.s8 %v3434
        %v3436 = vperm.slane %v3432, %v3435
        %v3437 = vsel %vm988, %v3260, %v3249
        %v3439 = vunpack.c.l.s4 1983009808
        %v3440 = vunpack.c.0.s8 %v3439
        %v3441 = vperm.slane %v3437, %v3440
        %v3442 = vrot.slane %v3261, 4
        %v3443 = vsel %vm988, %v3442, %v3259
        %v3445 = vunpack.c.l.s4 1983009808
        %v3446 = vunpack.c.0.s8 %v3445
        %v3447 = vperm.slane %v3443, %v3446
        %v3448 = vrot.slane %v3436, 4
        %v3449 = vsel %vm988, %v3448, %v3430
        %v3450 = vrot.slane %v3430, 4
        %v3451 = vsel %vm988, %v3436, %v3450
        %v3453 = vunpack.c.l.s4 1934713408
        %v3454 = vunpack.c.0.s8 %v3453
        %v3455 = vperm.slane %v3449, %v3454
        %v3457 = vunpack.c.l.s4 1934713408
        %v3458 = vunpack.c.0.s8 %v3457
        %v3459 = vperm.slane %v3451, %v3458
        %v3460 = vrot.slane %v3447, 4
        %v3461 = vsel %vm988, %v3460, %v3441
        %v3462 = vrot.slane %v3441, 4
        %v3463 = vsel %vm988, %v3447, %v3462
        %v3465 = vunpack.c.l.s4 1934713408
        %v3466 = vunpack.c.0.s8 %v3465
        %v3467 = vperm.slane %v3461, %v3466
        %v3469 = vunpack.c.l.s4 1934713408
        %v3470 = vunpack.c.0.s8 %v3469
        %v3471 = vperm.slane %v3463, %v3470
        %v3472 = vrot.slane %v3467, 4
        %v3473 = vsel %vm988, %v3472, %v3455
        %v3474 = vrot.slane %v3455, 4
        %v3475 = vsel %vm988, %v3467, %v3474
        %v3476 = vrot.slane %v3471, 4
        %v3477 = vsel %vm988, %v3476, %v3459
        %v3478 = vrot.slane %v3459, 4
        %v3479 = vsel %vm988, %v3471, %v3478
        %v3480 = vsel %vm988, %v3312, %v3293
        %v3482 = vunpack.c.l.s4 1983009808
        %v3483 = vunpack.c.0.s8 %v3482
        %v3484 = vperm.slane %v3480, %v3483
        %v3485 = vrot.slane %v3313, 4
        %v3486 = vsel %vm988, %v3485, %v3311
        %v3488 = vunpack.c.l.s4 1983009808
        %v3489 = vunpack.c.0.s8 %v3488
        %v3490 = vperm.slane %v3486, %v3489
        %v3491 = vsel %vm988, %v3316, %v3305
        %v3493 = vunpack.c.l.s4 1983009808
        %v3494 = vunpack.c.0.s8 %v3493
        %v3495 = vperm.slane %v3491, %v3494
        %v3496 = vrot.slane %v3317, 4
        %v3497 = vsel %vm988, %v3496, %v3315
        %v3499 = vunpack.c.l.s4 1983009808
        %v3500 = vunpack.c.0.s8 %v3499
        %v3501 = vperm.slane %v3497, %v3500
        %v3502 = vrot.slane %v3490, 4
        %v3503 = vsel %vm988, %v3502, %v3484
        %v3504 = vrot.slane %v3484, 4
        %v3505 = vsel %vm988, %v3490, %v3504
        %v3507 = vunpack.c.l.s4 1934713408
        %v3508 = vunpack.c.0.s8 %v3507
        %v3509 = vperm.slane %v3503, %v3508
        %v3511 = vunpack.c.l.s4 1934713408
        %v3512 = vunpack.c.0.s8 %v3511
        %v3513 = vperm.slane %v3505, %v3512
        %v3514 = vrot.slane %v3501, 4
        %v3515 = vsel %vm988, %v3514, %v3495
        %v3516 = vrot.slane %v3495, 4
        %v3517 = vsel %vm988, %v3501, %v3516
        %v3519 = vunpack.c.l.s4 1934713408
        %v3520 = vunpack.c.0.s8 %v3519
        %v3521 = vperm.slane %v3515, %v3520
        %v3523 = vunpack.c.l.s4 1934713408
        %v3524 = vunpack.c.0.s8 %v3523
        %v3525 = vperm.slane %v3517, %v3524
        %v3526 = vrot.slane %v3521, 4
        %v3527 = vsel %vm988, %v3526, %v3509
        %v3528 = vrot.slane %v3509, 4
        %v3529 = vsel %vm988, %v3521, %v3528
        %v3530 = vrot.slane %v3525, 4
        %v3531 = vsel %vm988, %v3530, %v3513
        %v3532 = vrot.slane %v3513, 4
        %v3533 = vsel %vm988, %v3525, %v3532
        %3538 = vrot.lane.b32.xlu0 %v3367, 32
        %v3539 = vpop.permute.xlu0 %3538
        %3540 = vrot.lane.b32.xlu0 %v3421, 32
        %v3541 = vpop.permute.xlu0 %3540
        %3542 = vrot.lane.b32.xlu0 %v3475, 32
        %v3543 = vpop.permute.xlu0 %3542
        %3544 = vrot.lane.b32.xlu0 %v3529, 32
        %v3545 = vpop.permute.xlu0 %3544
        %3554 = vrot.lane.b32.xlu0 %v3369, 64
        %v3555 = vpop.permute.xlu0 %3554
        %3556 = vrot.lane.b32.xlu0 %v3423, 64
        %v3557 = vpop.permute.xlu0 %3556
        %3558 = vrot.lane.b32.xlu0 %v3477, 64
        %v3559 = vpop.permute.xlu0 %3558
        %3560 = vrot.lane.b32.xlu0 %v3531, 64
        %v3561 = vpop.permute.xlu0 %3560
        %3570 = vrot.lane.b32.xlu0 %v3371, 96
        %v3571 = vpop.permute.xlu0 %3570
        %3572 = vrot.lane.b32.xlu0 %v3425, 96
        %v3573 = vpop.permute.xlu0 %3572
        %3574 = vrot.lane.b32.xlu0 %v3479, 96
        %v3575 = vpop.permute.xlu0 %3574
        %3576 = vrot.lane.b32.xlu0 %v3533, 96
        %v3577 = vpop.permute.xlu0 %3576
        %v3582 = vsel %vm2446, %v3365, %v3539
        %v3583 = vsel %vm2446, %v3419, %v3541
        %v3584 = vsel %vm2446, %v3473, %v3543
        %v3585 = vsel %vm2446, %v3527, %v3545
        %vm3586 = vcmask 523264
        %v3587 = vsel %vm3586, %v3582, %v3555
        %v3588 = vsel %vm3586, %v3583, %v3557
        %v3589 = vsel %vm3586, %v3584, %v3559
        %v3590 = vsel %vm3586, %v3585, %v3561
        %vm3591 = vcmask 785408
        %v3592 = vsel %vm3591, %v3587, %v3571
        %v3593 = vsel %vm3591, %v3588, %v3573
        %v3594 = vsel %vm3591, %v3589, %v3575
        %v3595 = vsel %vm3591, %v3590, %v3577
        %v3596 = vpack.c.bf16 %v3593, %v3592
        %v3597 = vpack.c.bf16 %v3595, %v3594
        %v3598 = vld [vmem:[%s576] sm:$0xf]
        %v3599 = vld [vmem:[%s576 + $0x4] sm:$0xf]
        %v3600 = vld [vmem:[%s576 + $0x8] sm:$0xf]
        %v3601 = vld [vmem:[%s576 + $0xc] sm:$0xf]
        %v3602 = vld [vmem:[%s576 + $0x10] sm:$0xf]
        %v3603 = vld [vmem:[%s576 + $0x14] sm:$0xf]
        %v3604 = vld [vmem:[%s576 + $0x18] sm:$0xf]
        %v3605 = vld [vmem:[%s576 + $0x1c] sm:$0xf]
        %v3606 = vld [vmem:[%s576 + $0x20] sm:$0xf]
        %v3607 = vld [vmem:[%s576 + $0x24] sm:$0xf]
        %v3608 = vld [vmem:[%s576 + $0x28] sm:$0xf]
        %v3609 = vld [vmem:[%s576 + $0x2c] sm:$0xf]
        %v3610 = vld [vmem:[%s576 + $0x30] sm:$0xf]
        %v3611 = vld [vmem:[%s576 + $0x34] sm:$0xf]
        %v3612 = vld [vmem:[%s576 + $0x38] sm:$0xf]
        %v3613 = vld [vmem:[%s576 + $0x3c] sm:$0xf]
        %v3630 = vunpack.c.l.b16 %v3598
        %v3631 = vunpack.c.l.b16 %v3599
        %v3632 = vunpack.c.l.b16 %v3600
        %v3633 = vunpack.c.l.b16 %v3601
        %v3634 = vunpack.c.l.b16 %v3602
        %v3635 = vunpack.c.l.b16 %v3603
        %v3636 = vunpack.c.l.b16 %v3604
        %v3637 = vunpack.c.l.b16 %v3605
        %v3638 = vunpack.c.l.b16 %v3606
        %v3639 = vunpack.c.l.b16 %v3607
        %v3640 = vunpack.c.l.b16 %v3608
        %v3641 = vunpack.c.l.b16 %v3609
        %v3642 = vunpack.c.l.b16 %v3610
        %v3643 = vunpack.c.l.b16 %v3611
        %v3644 = vunpack.c.l.b16 %v3612
        %v3645 = vunpack.c.l.b16 %v3613
        %v3646 = vpack.c.b16 %v3631, %v3630
        %v3647 = vpack.c.b16 %v3633, %v3632
        %v3648 = vpack.c.b16 %v3635, %v3634
        %v3649 = vpack.c.b16 %v3637, %v3636
        %v3650 = vpack.c.b16 %v3639, %v3638
        %v3651 = vpack.c.b16 %v3641, %v3640
        %v3652 = vpack.c.b16 %v3643, %v3642
        %v3653 = vpack.c.b16 %v3645, %v3644
        %3662 = vmatpush.bf16.msra.mxu0 %v3653
        %3663 = vmatpush.bf16.msra.mxu0 %v3652
        %3664 = vmatpush.bf16.msra.mxu0 %v3651
        %3665 = vmatpush.bf16.msra.mxu0 %v3650
        %3666 = vmatpush.bf16.msra.mxu0 %v3649
        %3667 = vmatpush.bf16.msra.mxu0 %v3648
        %3668 = vmatpush.bf16.msra.mxu0 %v3647
        %3669 = vmatpush.bf16.msra.mxu0 %v3646
        %3670 = vmatmul.bf16.gmra.mxu0 %v3596
        %v3671 = vpop.f32.mrf.mxu0
        %v3672 = vadd.f32 0.0, %v3671
        %v3673 = vpop.f32.mrf.mxu0
        %v3674 = vadd.f32 0.0, %v3673
        %3675 = vmatmul.bf16.gmra.mxu0 %v3597
        %v3676 = vpop.f32.mrf.mxu0
        %v3677 = vadd.f32 0.0, %v3676
        %v3678 = vpop.f32.mrf.mxu0
        %v3679 = vadd.f32 0.0, %v3678
        %3680 = vdwg.mxu0
        %v3681 = vadd.f32 %v720, %v3672
        %v3682 = vadd.f32 %v721, %v3674
        %v3683 = vadd.f32 %v722, %v3677
        %v3684 = vadd.f32 %v723, %v3679
        %v3685 = vld [vmem:[%s585] sm:$0x1]
        %v3686 = vld [vmem:[%s594] sm:$0x1]
        %3687 = vadd.xlane.f32.xlu0 %v3681
        %v3688 = vpop.xlane.xlu0 %3687
        %3689 = vadd.xlane.f32.xlu0 %v3682
        %v3690 = vpop.xlane.xlu0 %3689
        %3691 = vadd.xlane.f32.xlu0 %v3683
        %v3692 = vpop.xlane.xlu0 %3691
        %3693 = vadd.xlane.f32.xlu0 %v3684
        %v3694 = vpop.xlane.xlu0 %3693
        %v3695 = vrcp.pop 128.0
        %v3696 = vmul.f32 128.0, %v3695
        %v3697 = vsub.f32 1.0, %v3696
        %v3698 = vmul.f32 %v3695, %v3697
        %v3699 = vadd.f32 %v3695, %v3698
        %vm3700 = vweird.f32 %v3695
        %v3701 = vsel %vm3700, %v3695, %v3699
        %v3702 = vmul.f32 %v3688, %v3701
        %v3703 = vmul.f32 %v3690, %v3701
        %v3704 = vmul.f32 %v3692, %v3701
        %v3705 = vmul.f32 %v3694, %v3701
        %v3706 = vsub.f32 %v3681, %v3702
        %v3707 = vsub.f32 %v3682, %v3703
        %v3708 = vsub.f32 %v3683, %v3704
        %v3709 = vsub.f32 %v3684, %v3705
        %v3710 = vmul.f32 %v3706, %v3706
        %v3711 = vmul.f32 %v3707, %v3707
        %v3712 = vmul.f32 %v3708, %v3708
        %v3713 = vmul.f32 %v3709, %v3709
        %3714 = vadd.xlane.f32.xlu0 %v3710
        %v3715 = vpop.xlane.xlu0 %3714
        %3716 = vadd.xlane.f32.xlu0 %v3711
        %v3717 = vpop.xlane.xlu0 %3716
        %3718 = vadd.xlane.f32.xlu0 %v3712
        %v3719 = vpop.xlane.xlu0 %3718
        %3720 = vadd.xlane.f32.xlu0 %v3713
        %v3721 = vpop.xlane.xlu0 %3720
        %v3722 = vmul.f32 %v3715, %v3701
        %v3723 = vmul.f32 %v3717, %v3701
        %v3724 = vmul.f32 %v3719, %v3701
        %v3725 = vmul.f32 %v3721, %v3701
        %v3726 = vadd.f32 %v3722, 1e-05
        %v3727 = vadd.f32 %v3723, 1e-05
        %v3728 = vadd.f32 %v3724, 1e-05
        %v3729 = vadd.f32 %v3725, 1e-05
        %v3730 = vrsqrt.pop %v3726
        %v3731 = vmul.f32 %v3730, %v3726
        %v3732 = vmul.f32 %v3731, %v3730
        %v3733 = vmul.f32 0.5, %v3732
        %v3734 = vsub.f32 1.5, %v3733
        %v3735 = vmul.f32 %v3730, %v3734
        %vm3736 = vweird.f32 %v3726
        %vm3737 = vweird.f32 %v3730
        %vm3738 = vmor %vm3736, %vm3737
        %v3739 = vsel %vm3738, %v3730, %v3735
        %v3740 = vrsqrt.pop %v3727
        %v3741 = vmul.f32 %v3740, %v3727
        %v3742 = vmul.f32 %v3741, %v3740
        %v3743 = vmul.f32 0.5, %v3742
        %v3744 = vsub.f32 1.5, %v3743
        %v3745 = vmul.f32 %v3740, %v3744
        %vm3746 = vweird.f32 %v3727
        %vm3747 = vweird.f32 %v3740
        %vm3748 = vmor %vm3746, %vm3747
        %v3749 = vsel %vm3748, %v3740, %v3745
        %v3750 = vrsqrt.pop %v3728
        %v3751 = vmul.f32 %v3750, %v3728
        %v3752 = vmul.f32 %v3751, %v3750
        %v3753 = vmul.f32 0.5, %v3752
        %v3754 = vsub.f32 1.5, %v3753
        %v3755 = vmul.f32 %v3750, %v3754
        %vm3756 = vweird.f32 %v3728
        %vm3757 = vweird.f32 %v3750
        %vm3758 = vmor %vm3756, %vm3757
        %v3759 = vsel %vm3758, %v3750, %v3755
        %v3760 = vrsqrt.pop %v3729
        %v3761 = vmul.f32 %v3760, %v3729
        %v3762 = vmul.f32 %v3761, %v3760
        %v3763 = vmul.f32 0.5, %v3762
        %v3764 = vsub.f32 1.5, %v3763
        %v3765 = vmul.f32 %v3760, %v3764
        %vm3766 = vweird.f32 %v3729
        %vm3767 = vweird.f32 %v3760
        %vm3768 = vmor %vm3766, %vm3767
        %v3769 = vsel %vm3768, %v3760, %v3765
        %v3770 = vmul.f32 %v3706, %v3739
        %v3771 = vmul.f32 %v3707, %v3749
        %v3772 = vmul.f32 %v3708, %v3759
        %v3773 = vmul.f32 %v3709, %v3769
        %v3775 = vperm.slane %v3685, 0
        %v3777 = vmul.f32 %v3770, %v3775
        %v3778 = vmul.f32 %v3771, %v3775
        %v3779 = vmul.f32 %v3772, %v3775
        %v3780 = vmul.f32 %v3773, %v3775
        %v3782 = vperm.slane %v3686, 0
        %v3784 = vadd.f32 %v3777, %v3782
        %v3785 = vadd.f32 %v3778, %v3782
        %v3786 = vadd.f32 %v3779, %v3782
        %v3787 = vadd.f32 %v3780, %v3782
        %v3788 = vpack.c.bf16 %v3785, %v3784
        %v3789 = vpack.c.bf16 %v3787, %v3786
        %v3790 = vld [vmem:[%s604] sm:$0xff]
        %v3791 = vld [vmem:[%s604 + $0x8] sm:$0xff]
        %v3792 = vld [vmem:[%s604 + $0x10] sm:$0xff]
        %v3793 = vld [vmem:[%s604 + $0x18] sm:$0xff]
        %v3794 = vld [vmem:[%s604 + $0x20] sm:$0xff]
        %v3795 = vld [vmem:[%s604 + $0x28] sm:$0xff]
        %v3796 = vld [vmem:[%s604 + $0x30] sm:$0xff]
        %v3797 = vld [vmem:[%s604 + $0x38] sm:$0xff]
        %v3798 = vld [vmem:[%s604 + $0x40] sm:$0xff]
        %v3799 = vld [vmem:[%s604 + $0x48] sm:$0xff]
        %v3800 = vld [vmem:[%s604 + $0x50] sm:$0xff]
        %v3801 = vld [vmem:[%s604 + $0x58] sm:$0xff]
        %v3802 = vld [vmem:[%s604 + $0x60] sm:$0xff]
        %v3803 = vld [vmem:[%s604 + $0x68] sm:$0xff]
        %v3804 = vld [vmem:[%s604 + $0x70] sm:$0xff]
        %v3805 = vld [vmem:[%s604 + $0x78] sm:$0xff]
        %v3806 = vld [vmem:[%s699] sm:$0x3]
        %v3808 = vperm.slane %v3806, 0
        %v3809 = vperm.slane %v3806, 1
        %v3828 = vunpack.c.l.b16 %v3790
        %v3829 = vunpack.c.h.b16 %v3790
        %v3830 = vunpack.c.l.b16 %v3791
        %v3831 = vunpack.c.h.b16 %v3791
        %v3832 = vunpack.c.l.b16 %v3792
        %v3833 = vunpack.c.h.b16 %v3792
        %v3834 = vunpack.c.l.b16 %v3793
        %v3835 = vunpack.c.h.b16 %v3793
        %v3836 = vunpack.c.l.b16 %v3794
        %v3837 = vunpack.c.h.b16 %v3794
        %v3838 = vunpack.c.l.b16 %v3795
        %v3839 = vunpack.c.h.b16 %v3795
        %v3840 = vunpack.c.l.b16 %v3796
        %v3841 = vunpack.c.h.b16 %v3796
        %v3842 = vunpack.c.l.b16 %v3797
        %v3843 = vunpack.c.h.b16 %v3797
        %v3844 = vunpack.c.l.b16 %v3798
        %v3845 = vunpack.c.h.b16 %v3798
        %v3846 = vunpack.c.l.b16 %v3799
        %v3847 = vunpack.c.h.b16 %v3799
        %v3848 = vunpack.c.l.b16 %v3800
        %v3849 = vunpack.c.h.b16 %v3800
        %v3850 = vunpack.c.l.b16 %v3801
        %v3851 = vunpack.c.h.b16 %v3801
        %v3852 = vunpack.c.l.b16 %v3802
        %v3853 = vunpack.c.h.b16 %v3802
        %v3854 = vunpack.c.l.b16 %v3803
        %v3855 = vunpack.c.h.b16 %v3803
        %v3856 = vunpack.c.l.b16 %v3804
        %v3857 = vunpack.c.h.b16 %v3804
        %v3858 = vunpack.c.l.b16 %v3805
        %v3859 = vunpack.c.h.b16 %v3805
        %v3860 = vpack.c.b16 %v3830, %v3828
        %v3861 = vpack.c.b16 %v3831, %v3829
        %v3862 = vpack.c.b16 %v3834, %v3832
        %v3863 = vpack.c.b16 %v3835, %v3833
        %v3864 = vpack.c.b16 %v3838, %v3836
        %v3865 = vpack.c.b16 %v3839, %v3837
        %v3866 = vpack.c.b16 %v3842, %v3840
        %v3867 = vpack.c.b16 %v3843, %v3841
        %v3868 = vpack.c.b16 %v3846, %v3844
        %v3869 = vpack.c.b16 %v3847, %v3845
        %v3870 = vpack.c.b16 %v3850, %v3848
        %v3871 = vpack.c.b16 %v3851, %v3849
        %v3872 = vpack.c.b16 %v3854, %v3852
        %v3873 = vpack.c.b16 %v3855, %v3853
        %v3874 = vpack.c.b16 %v3858, %v3856
        %v3875 = vpack.c.b16 %v3859, %v3857
        %3892 = vmatpush.bf16.msra.mxu0 %v3874
        %3893 = vmatpush.bf16.msra.mxu0 %v3872
        %3894 = vmatpush.bf16.msra.mxu0 %v3870
        %3895 = vmatpush.bf16.msra.mxu0 %v3868
        %3896 = vmatpush.bf16.msra.mxu0 %v3866
        %3897 = vmatpush.bf16.msra.mxu0 %v3864
        %3898 = vmatpush.bf16.msra.mxu0 %v3862
        %3899 = vmatpush.bf16.msra.mxu0 %v3860
        %3900 = vmatmul.bf16.gmra.mxu0 %v3788
        %v3901 = vpop.f32.mrf.mxu0
        %v3902 = vadd.f32 %v3808, %v3901
        %v3903 = vpop.f32.mrf.mxu0
        %v3904 = vadd.f32 %v3808, %v3903
        %3905 = vmatmul.bf16.gmra.mxu0 %v3789
        %v3906 = vpop.f32.mrf.mxu0
        %v3907 = vadd.f32 %v3808, %v3906
        %v3908 = vpop.f32.mrf.mxu0
        %v3909 = vadd.f32 %v3808, %v3908
        %3910 = vdwg.mxu0
        %3911 = vmatpush.bf16.msra.mxu0 %v3875
        %3912 = vmatpush.bf16.msra.mxu0 %v3873
        %3913 = vmatpush.bf16.msra.mxu0 %v3871
        %3914 = vmatpush.bf16.msra.mxu0 %v3869
        %3915 = vmatpush.bf16.msra.mxu0 %v3867
        %3916 = vmatpush.bf16.msra.mxu0 %v3865
        %3917 = vmatpush.bf16.msra.mxu0 %v3863
        %3918 = vmatpush.bf16.msra.mxu0 %v3861
        %3919 = vmatmul.bf16.gmra.mxu0 %v3788
        %v3920 = vpop.f32.mrf.mxu0
        %v3921 = vadd.f32 %v3809, %v3920
        %v3922 = vpop.f32.mrf.mxu0
        %v3923 = vadd.f32 %v3809, %v3922
        %3924 = vmatmul.bf16.gmra.mxu0 %v3789
        %v3925 = vpop.f32.mrf.mxu0
        %v3926 = vadd.f32 %v3809, %v3925
        %v3927 = vpop.f32.mrf.mxu0
        %v3928 = vadd.f32 %v3809, %v3927
        %3929 = vdwg.mxu0
        %v3930 = vmax.f32 %v3902, 0.0
        %v3931 = vmax.f32 %v3921, 0.0
        %v3932 = vmax.f32 %v3904, 0.0
        %v3933 = vmax.f32 %v3923, 0.0
        %v3934 = vmax.f32 %v3907, 0.0
        %v3935 = vmax.f32 %v3926, 0.0
        %v3936 = vmax.f32 %v3909, 0.0
        %v3937 = vmax.f32 %v3928, 0.0
        %v3938 = vpack.c.bf16 %v3932, %v3930
        %v3939 = vpack.c.bf16 %v3933, %v3931
        %v3940 = vpack.c.bf16 %v3936, %v3934
        %v3941 = vpack.c.bf16 %v3937, %v3935
        %v3942 = vld [vmem:[%s614] sm:$0xf]
        %v3943 = vld [vmem:[%s614 + $0x4] sm:$0xf]
        %v3944 = vld [vmem:[%s614 + $0x8] sm:$0xf]
        %v3945 = vld [vmem:[%s614 + $0xc] sm:$0xf]
        %v3946 = vld [vmem:[%s614 + $0x10] sm:$0xf]
        %v3947 = vld [vmem:[%s614 + $0x14] sm:$0xf]
        %v3948 = vld [vmem:[%s614 + $0x18] sm:$0xf]
        %v3949 = vld [vmem:[%s614 + $0x1c] sm:$0xf]
        %v3950 = vld [vmem:[%s614 + $0x20] sm:$0xf]
        %v3951 = vld [vmem:[%s614 + $0x24] sm:$0xf]
        %v3952 = vld [vmem:[%s614 + $0x28] sm:$0xf]
        %v3953 = vld [vmem:[%s614 + $0x2c] sm:$0xf]
        %v3954 = vld [vmem:[%s614 + $0x30] sm:$0xf]
        %v3955 = vld [vmem:[%s614 + $0x34] sm:$0xf]
        %v3956 = vld [vmem:[%s614 + $0x38] sm:$0xf]
        %v3957 = vld [vmem:[%s614 + $0x3c] sm:$0xf]
        %v3958 = vld [vmem:[%s614 + $0x40] sm:$0xf]
        %v3959 = vld [vmem:[%s614 + $0x44] sm:$0xf]
        %v3960 = vld [vmem:[%s614 + $0x48] sm:$0xf]
        %v3961 = vld [vmem:[%s614 + $0x4c] sm:$0xf]
        %v3962 = vld [vmem:[%s614 + $0x50] sm:$0xf]
        %v3963 = vld [vmem:[%s614 + $0x54] sm:$0xf]
        %v3964 = vld [vmem:[%s614 + $0x58] sm:$0xf]
        %v3965 = vld [vmem:[%s614 + $0x5c] sm:$0xf]
        %v3966 = vld [vmem:[%s614 + $0x60] sm:$0xf]
        %v3967 = vld [vmem:[%s614 + $0x64] sm:$0xf]
        %v3968 = vld [vmem:[%s614 + $0x68] sm:$0xf]
        %v3969 = vld [vmem:[%s614 + $0x6c] sm:$0xf]
        %v3970 = vld [vmem:[%s614 + $0x70] sm:$0xf]
        %v3971 = vld [vmem:[%s614 + $0x74] sm:$0xf]
        %v3972 = vld [vmem:[%s614 + $0x78] sm:$0xf]
        %v3973 = vld [vmem:[%s614 + $0x7c] sm:$0xf]
        %v3974 = vld [vmem:[%s702] sm:$0x1]
        %v3976 = vperm.slane %v3974, 0
        %v4010 = vunpack.c.l.b16 %v3942
        %v4011 = vunpack.c.l.b16 %v3943
        %v4012 = vunpack.c.l.b16 %v3944
        %v4013 = vunpack.c.l.b16 %v3945
        %v4014 = vunpack.c.l.b16 %v3946
        %v4015 = vunpack.c.l.b16 %v3947
        %v4016 = vunpack.c.l.b16 %v3948
        %v4017 = vunpack.c.l.b16 %v3949
        %v4018 = vunpack.c.l.b16 %v3950
        %v4019 = vunpack.c.l.b16 %v3951
        %v4020 = vunpack.c.l.b16 %v3952
        %v4021 = vunpack.c.l.b16 %v3953
        %v4022 = vunpack.c.l.b16 %v3954
        %v4023 = vunpack.c.l.b16 %v3955
        %v4024 = vunpack.c.l.b16 %v3956
        %v4025 = vunpack.c.l.b16 %v3957
        %v4026 = vunpack.c.l.b16 %v3958
        %v4027 = vunpack.c.l.b16 %v3959
        %v4028 = vunpack.c.l.b16 %v3960
        %v4029 = vunpack.c.l.b16 %v3961
        %v4030 = vunpack.c.l.b16 %v3962
        %v4031 = vunpack.c.l.b16 %v3963
        %v4032 = vunpack.c.l.b16 %v3964
        %v4033 = vunpack.c.l.b16 %v3965
        %v4034 = vunpack.c.l.b16 %v3966
        %v4035 = vunpack.c.l.b16 %v3967
        %v4036 = vunpack.c.l.b16 %v3968
        %v4037 = vunpack.c.l.b16 %v3969
        %v4038 = vunpack.c.l.b16 %v3970
        %v4039 = vunpack.c.l.b16 %v3971
        %v4040 = vunpack.c.l.b16 %v3972
        %v4041 = vunpack.c.l.b16 %v3973
        %v4042 = vpack.c.b16 %v4011, %v4010
        %v4043 = vpack.c.b16 %v4013, %v4012
        %v4044 = vpack.c.b16 %v4015, %v4014
        %v4045 = vpack.c.b16 %v4017, %v4016
        %v4046 = vpack.c.b16 %v4019, %v4018
        %v4047 = vpack.c.b16 %v4021, %v4020
        %v4048 = vpack.c.b16 %v4023, %v4022
        %v4049 = vpack.c.b16 %v4025, %v4024
        %v4050 = vpack.c.b16 %v4027, %v4026
        %v4051 = vpack.c.b16 %v4029, %v4028
        %v4052 = vpack.c.b16 %v4031, %v4030
        %v4053 = vpack.c.b16 %v4033, %v4032
        %v4054 = vpack.c.b16 %v4035, %v4034
        %v4055 = vpack.c.b16 %v4037, %v4036
        %v4056 = vpack.c.b16 %v4039, %v4038
        %v4057 = vpack.c.b16 %v4041, %v4040
        %4074 = vmatpush.bf16.msra.mxu0 %v4049
        %4075 = vmatpush.bf16.msra.mxu0 %v4048
        %4076 = vmatpush.bf16.msra.mxu0 %v4047
        %4077 = vmatpush.bf16.msra.mxu0 %v4046
        %4078 = vmatpush.bf16.msra.mxu0 %v4045
        %4079 = vmatpush.bf16.msra.mxu0 %v4044
        %4080 = vmatpush.bf16.msra.mxu0 %v4043
        %4081 = vmatpush.bf16.msra.mxu0 %v4042
        %4082 = vmatmul.bf16.gmra.mxu0 %v3938
        %v4083 = vpop.f32.mrf.mxu0
        %v4084 = vadd.f32 %v3976, %v4083
        %v4085 = vpop.f32.mrf.mxu0
        %v4086 = vadd.f32 %v3976, %v4085
        %4087 = vmatmul.bf16.gmra.mxu0 %v3940
        %v4088 = vpop.f32.mrf.mxu0
        %v4089 = vadd.f32 %v3976, %v4088
        %v4090 = vpop.f32.mrf.mxu0
        %v4091 = vadd.f32 %v3976, %v4090
        %4092 = vdwg.mxu0
        %4093 = vmatpush.bf16.msra.mxu0 %v4057
        %4094 = vmatpush.bf16.msra.mxu0 %v4056
        %4095 = vmatpush.bf16.msra.mxu0 %v4055
        %4096 = vmatpush.bf16.msra.mxu0 %v4054
        %4097 = vmatpush.bf16.msra.mxu0 %v4053
        %4098 = vmatpush.bf16.msra.mxu0 %v4052
        %4099 = vmatpush.bf16.msra.mxu0 %v4051
        %4100 = vmatpush.bf16.msra.mxu0 %v4050
        %4101 = vmatmul.bf16.gmra.mxu0 %v3939
        %v4102 = vpop.f32.mrf.mxu0
        %v4103 = vadd.f32 %v4084, %v4102
        %v4104 = vpop.f32.mrf.mxu0
        %v4105 = vadd.f32 %v4086, %v4104
        %4106 = vmatmul.bf16.gmra.mxu0 %v3941
        %v4107 = vpop.f32.mrf.mxu0
        %v4108 = vadd.f32 %v4089, %v4107
        %v4109 = vpop.f32.mrf.mxu0
        %v4110 = vadd.f32 %v4091, %v4109
        %4111 = vdwg.mxu0
        %v4112 = vadd.f32 %v3784, %v4103
        %v4113 = vadd.f32 %v3785, %v4105
        %v4114 = vadd.f32 %v3786, %v4108
        %v4115 = vadd.f32 %v3787, %v4110
        %v4116 = vld [vmem:[%s705] sm:$0x1]
        %v4117 = vld [vmem:[%s623] sm:$0x1]
        %4118 = vadd.xlane.f32.xlu0 %v4112
        %v4119 = vpop.xlane.xlu0 %4118
        %4120 = vadd.xlane.f32.xlu0 %v4113
        %v4121 = vpop.xlane.xlu0 %4120
        %4122 = vadd.xlane.f32.xlu0 %v4114
        %v4123 = vpop.xlane.xlu0 %4122
        %4124 = vadd.xlane.f32.xlu0 %v4115
        %v4125 = vpop.xlane.xlu0 %4124
        %v4126 = vmul.f32 %v4119, %v3701
        %v4127 = vmul.f32 %v4121, %v3701
        %v4128 = vmul.f32 %v4123, %v3701
        %v4129 = vmul.f32 %v4125, %v3701
        %v4130 = vsub.f32 %v4112, %v4126
        %v4131 = vsub.f32 %v4113, %v4127
        %v4132 = vsub.f32 %v4114, %v4128
        %v4133 = vsub.f32 %v4115, %v4129
        %v4134 = vmul.f32 %v4130, %v4130
        %v4135 = vmul.f32 %v4131, %v4131
        %v4136 = vmul.f32 %v4132, %v4132
        %v4137 = vmul.f32 %v4133, %v4133
        %4138 = vadd.xlane.f32.xlu0 %v4134
        %v4139 = vpop.xlane.xlu0 %4138
        %4140 = vadd.xlane.f32.xlu0 %v4135
        %v4141 = vpop.xlane.xlu0 %4140
        %4142 = vadd.xlane.f32.xlu0 %v4136
        %v4143 = vpop.xlane.xlu0 %4142
        %4144 = vadd.xlane.f32.xlu0 %v4137
        %v4145 = vpop.xlane.xlu0 %4144
        %v4146 = vmul.f32 %v4139, %v3701
        %v4147 = vmul.f32 %v4141, %v3701
        %v4148 = vmul.f32 %v4143, %v3701
        %v4149 = vmul.f32 %v4145, %v3701
        %v4150 = vadd.f32 %v4146, 1e-05
        %v4151 = vadd.f32 %v4147, 1e-05
        %v4152 = vadd.f32 %v4148, 1e-05
        %v4153 = vadd.f32 %v4149, 1e-05
        %v4154 = vrsqrt.pop %v4150
        %v4155 = vmul.f32 %v4154, %v4150
        %v4156 = vmul.f32 %v4155, %v4154
        %v4157 = vmul.f32 0.5, %v4156
        %v4158 = vsub.f32 1.5, %v4157
        %v4159 = vmul.f32 %v4154, %v4158
        %vm4160 = vweird.f32 %v4150
        %vm4161 = vweird.f32 %v4154
        %vm4162 = vmor %vm4160, %vm4161
        %v4163 = vsel %vm4162, %v4154, %v4159
        %v4164 = vrsqrt.pop %v4151
        %v4165 = vmul.f32 %v4164, %v4151
        %v4166 = vmul.f32 %v4165, %v4164
        %v4167 = vmul.f32 0.5, %v4166
        %v4168 = vsub.f32 1.5, %v4167
        %v4169 = vmul.f32 %v4164, %v4168
        %vm4170 = vweird.f32 %v4151
        %vm4171 = vweird.f32 %v4164
        %vm4172 = vmor %vm4170, %vm4171
        %v4173 = vsel %vm4172, %v4164, %v4169
        %v4174 = vrsqrt.pop %v4152
        %v4175 = vmul.f32 %v4174, %v4152
        %v4176 = vmul.f32 %v4175, %v4174
        %v4177 = vmul.f32 0.5, %v4176
        %v4178 = vsub.f32 1.5, %v4177
        %v4179 = vmul.f32 %v4174, %v4178
        %vm4180 = vweird.f32 %v4152
        %vm4181 = vweird.f32 %v4174
        %vm4182 = vmor %vm4180, %vm4181
        %v4183 = vsel %vm4182, %v4174, %v4179
        %v4184 = vrsqrt.pop %v4153
        %v4185 = vmul.f32 %v4184, %v4153
        %v4186 = vmul.f32 %v4185, %v4184
        %v4187 = vmul.f32 0.5, %v4186
        %v4188 = vsub.f32 1.5, %v4187
        %v4189 = vmul.f32 %v4184, %v4188
        %vm4190 = vweird.f32 %v4153
        %vm4191 = vweird.f32 %v4184
        %vm4192 = vmor %vm4190, %vm4191
        %v4193 = vsel %vm4192, %v4184, %v4189
        %v4194 = vmul.f32 %v4130, %v4163
        %v4195 = vmul.f32 %v4131, %v4173
        %v4196 = vmul.f32 %v4132, %v4183
        %v4197 = vmul.f32 %v4133, %v4193
        %v4199 = vperm.slane %v4116, 0
        %v4201 = vmul.f32 %v4194, %v4199
        %v4202 = vmul.f32 %v4195, %v4199
        %v4203 = vmul.f32 %v4196, %v4199
        %v4204 = vmul.f32 %v4197, %v4199
        %v4206 = vperm.slane %v4117, 0
        %v4208 = vadd.f32 %v4201, %v4206
        %v4209 = vadd.f32 %v4202, %v4206
        %v4210 = vadd.f32 %v4203, %v4206
        %v4211 = vadd.f32 %v4204, %v4206
        %4212 = vst [vmem:[#allocation16] sm:$0xff] %v4208
        %4213 = vst [vmem:[#allocation16 + $0x8] sm:$0xff] %v4209
        %4214 = vst [vmem:[#allocation16 + $0x10] sm:$0xff] %v4210
        %4215 = vst [vmem:[#allocation16 + $0x18] sm:$0xff] %v4211
        // Predicated region
        $region101: #{tpu_custom_call.1} parent=63 // pred_check
          %p4216 = pneg %p352
        $region102: #{tpu_custom_call.1} parent=63 // pred_check_branch
          %4218 = sbr.rel (%p4216) target = $region104
        $region103: #{tpu_custom_call.1} parent=63 // pred_region
          %s4219 = smul.u32 2, %s40
          %4221 = vsyncadd [#allocation4], 0
          %s4222 = smul.addr %s4219, 2
          %s4223 = smul.addr %s4222, 8
          %s4224 = scalar_lea.hbm %s11, %s4223
          %s4225 = sshll.u32 [#allocation16], 4
          %s4226 = int_to_ptr.vmem [resolvable:$true] %s4225
          %s4227 = sshll.u32 %s4224, 4
          %s4228 = int_to_ptr.hbm [resolvable:$true] %s4227
          %4233 = dma.vmem_to_hbm [thread:$0]  %s4226, 512, %s4228, [#allocation4], 128, 128, 8
        $region104: #{tpu_custom_call.1} parent=63 // pred_fallthru
          _
        // Predicated region
        $region105: #{tpu_custom_call.1} parent=63 // pred_check
          %p4234 = pneg %p352
        $region106: #{tpu_custom_call.1} parent=63 // pred_check_branch
          %4236 = sbr.rel (%p4234) target = $region108
        $region107: #{tpu_custom_call.1} parent=63 // pred_region
          %4238 = dma.done [#allocation4], 512
        $region108: #{tpu_custom_call.1} parent=63 // pred_fallthru
          _
      $region64: #{tpu_custom_call.1} parent=5 // pred_fallthru
        _
      %p4239 = scmp.le.s32.totalorder 2, %s31
      // Predicated region
      $region109: #{tpu_custom_call.1} parent=5 // pred_check
        %p4240 = pneg %p4239
      $region110: #{tpu_custom_call.1} parent=5 // pred_check_branch
        %4242 = sbr.rel (%p4240) target = $region112
      $region111: #{tpu_custom_call.1} parent=5 // pred_region
        %s4243 = ssub.s32 %s31, 2
      $region112: #{tpu_custom_call.1} parent=5 // pred_fallthru
        _
    $region6: #{tpu_custom_call.1} parent=1 // loop_footer
      %s35 = sadd.s32 1, %s31
    $region7: #{tpu_custom_call.1} parent=1 // loop_footer_branch
      %30 = sbr.rel target = $region3
    $region8: #{tpu_custom_call.1} parent=1 // loop_exit
      _
    %4244 = vsyncpa [#allocation3], 1
    %s4245 = scalar_lea.sflag [#allocation3], 1
    %4246 = vsyncpa %s4245, 1
    %4247 = vsyncpa [#allocation6], 1
    %s4248 = scalar_lea.sflag [#allocation6], 1
    %4249 = vsyncpa %s4248, 1
    %4250 = vsyncpa [#allocation9], 1
    %s4251 = scalar_lea.sflag [#allocation9], 1
    %4252 = vsyncpa %s4251, 1
    %4253 = vsyncpa [#allocation12], 1
    %s4254 = scalar_lea.sflag [#allocation12], 1
    %4255 = vsyncpa %s4254, 1
    %4256 = vsyncpa [#allocation15], 1
    %s4257 = scalar_lea.sflag [#allocation15], 1
    %4258 = vsyncpa %s4257, 1
    %4259 = vsyncpa [#allocation4], 1
    %s4260 = scalar_lea.sflag [#allocation4], 1
    %4261 = vsyncpa %s4260, 1

</llo_original>
